<compile_context>
chip_gen: v7x
topology: tpu7x:2x2x1
jax: 0.10.0
libtpu: 0.0.40
codegen_flags: <defaults>
</compile_context>

<pallas_src>
import functools

import jax
import jax.numpy as jnp
from jax.experimental import pallas as pl
from jax.experimental.pallas import tpu as pltpu

MXU_DTYPE = jnp.bfloat16          # matmul inputs; accumulation stays f32
LN_EPS = 1e-5
BN_EPS = 1e-5
VMEM_LIMIT = 48 * 1024 * 1024     # fits v7x (64 MiB) and v5e/v6e (128 MiB)

_PARAMS_PAR1 = pltpu.CompilerParams(dimension_semantics=("parallel",),
                                    vmem_limit_bytes=VMEM_LIMIT)


# ------------------------------ helpers -------------------------------------

def _pick_row_tile(m, cap=256):
    """Largest (8,.)-aligned row tile <= cap dividing M, preferring >=2 grid steps."""
    for t in (256, 128, 64, 32, 16, 8):
        if t <= cap and t <= m // 2 and m % t == 0:
            return t
    for t in (256, 128, 64, 32, 16, 8):
        if t <= m and m % t == 0:
            return t
    return m


def _layernorm(x, g, b, eps):
    mean = jnp.mean(x, axis=-1, keepdims=True)
    var = jnp.mean(jnp.square(x - mean), axis=-1, keepdims=True)
    return (x - mean) * jax.lax.rsqrt(var + eps) * g + b


# ----------------------------- Pallas kernels -------------------------------

def _ffn_kernel(x_ref, ln_g_ref, ln_b_ref, w1_ref, b1_ref, w2_ref, b2_ref,
                o_ref, *, eps):
    """Fused: LN -> Linear -> Swish -> Linear -> half-step residual."""
    x = x_ref[...].astype(jnp.float32)                        # (Mt, D)
    h = _layernorm(x, ln_g_ref[...], ln_b_ref[...], eps)
    h = jnp.dot(h.astype(MXU_DTYPE), w1_ref[...],
                preferred_element_type=jnp.float32) + b1_ref[...]
    h = h * jax.nn.sigmoid(h)                                 # Swish (EUP)
    h = jnp.dot(h.astype(MXU_DTYPE), w2_ref[...],
                preferred_element_type=jnp.float32) + b2_ref[...]
    o_ref[...] = (x + 0.5 * h).astype(o_ref.dtype)


def _mhsa_convfront_kernel(x_ref, ag_ref, ab_ref, wqkv_ref, bqkv_ref, wo_ref, bo_ref,
                           cg_ref, cb_ref, pw1_w_ref, pw1_b_ref, dw_w_ref,
                           x3_ref, z_ref, psum_ref, psq_ref,
                           heads_scr, *, eps, num_heads, kernel_size):
    """MHSA (+residual) then conv-module front half (LN -> pw1 -> GLU -> DW conv)."""
    x = x_ref[0].astype(jnp.float32)                          # (T, D)
    T, D = x.shape
    dh = D // num_heads

    # ---------------- MHSA ----------------
    hn = _layernorm(x, ag_ref[...], ab_ref[...], eps)
    # single (T,D) x (D,3D) matmul for Q,K,V; 1/sqrt(dh) already folded into Wq.
    qkv = jnp.dot(hn.astype(MXU_DTYPE), wqkv_ref[...],
                  preferred_element_type=jnp.float32) + bqkv_ref[...]   # (T, 3D)
    qkv_mx = qkv.astype(MXU_DTYPE)                            # cast hoisted out of loop

    for h in range(num_heads):                                # static unroll over heads
        q = qkv_mx[:, h * dh:(h + 1) * dh]
        k = qkv_mx[:, D + h * dh:D + (h + 1) * dh]
        v = qkv_mx[:, 2 * D + h * dh:2 * D + (h + 1) * dh]
        # q @ k^T without an explicit transpose
        s = jax.lax.dot_general(q, k, (((1,), (1,)), ((), ())),
                                preferred_element_type=jnp.float32)      # (T, T)
        s = s - jnp.max(s, axis=-1, keepdims=True)
        p = jnp.exp(s)
        p = p / jnp.sum(p, axis=-1, keepdims=True)            # exact softmax
        head = jnp.dot(p.astype(MXU_DTYPE), v,
                       preferred_element_type=jnp.float32)               # (T, dh)
        heads_scr[:, h * dh:(h + 1) * dh] = head              # collect in VMEM scratch

    # one (T,D) x (D,D) output projection instead of H small-K matmuls
    attn = jnp.dot(heads_scr[...].astype(MXU_DTYPE), wo_ref[...],
                   preferred_element_type=jnp.float32) + bo_ref[...]
    x3 = x + attn
    x3_ref[0] = x3.astype(x3_ref.dtype)

    # ------------- Conv module front half -------------
    hc = _layernorm(x3, cg_ref[...], cb_ref[...], eps)
    h2 = jnp.dot(hc.astype(MXU_DTYPE), pw1_w_ref[...],
                 preferred_element_type=jnp.float32) + pw1_b_ref[...]    # (T, 2D)
    hc = h2[:, :D] * jax.nn.sigmoid(h2[:, D:])                # GLU, (T, D)

    # depthwise conv over time (SAME, zero padded at sequence edges):
    # per tap a sublane roll + boundary mask + VPU FMA -- O(T*D) work per tap,
    # no (M,M) band matrices, halo handled in-kernel.
    w_dw = dw_w_ref[...].astype(jnp.float32)                  # (K, D)
    pad = (kernel_size - 1) // 2
    t_idx = jax.lax.broadcasted_iota(jnp.int32, (T, 1), 0)
    acc = jnp.zeros((T, D), jnp.float32)
    for k in range(kernel_size):                              # static unroll
        off = k - pad
        if off <= -T or off >= T:
            continue                                          # tap reads only padding
        if off == 0:
            shifted = hc
        else:
            rolled = pltpu.roll(hc, shift=(-off) % T, axis=0)  # rolled[t] = hc[(t+off)%T]
            valid = (t_idx + off >= 0) & (t_idx + off < T)
            shifted = jnp.where(valid, rolled, 0.0)
        acc = acc + shifted * w_dw[k:k + 1, :]

    z_ref[0] = acc.astype(z_ref.dtype)
    # single-pass BatchNorm partial statistics for this sequence
    psum_ref[0] = jnp.sum(acc, axis=0, keepdims=True)
    psq_ref[0] = jnp.sum(acc * acc, axis=0, keepdims=True)


def _convback_ffn_kernel(z_ref, xres_ref, mean_ref, inv_ref, bn_g_ref, bn_b_ref,
                         pw2_w_ref, pw2_b_ref, ln_g_ref, ln_b_ref,
                         w1_ref, b1_ref, w2_ref, b2_ref, fg_ref, fb_ref,
                         o_ref, *, eps):
    """Conv-module back half (BN-apply -> Swish -> pw2 -> +x) + FFN2 + final LN."""
    z = z_ref[...].astype(jnp.float32)                        # (Mt, D) pre-BN conv act
    xr = xres_ref[...].astype(jnp.float32)                    # (Mt, D) conv residual

    y = (z - mean_ref[...]) * inv_ref[...] * bn_g_ref[...] + bn_b_ref[...]
    y = y * jax.nn.sigmoid(y)                                 # Swish
    y = jnp.dot(y.astype(MXU_DTYPE), pw2_w_ref[...],
                preferred_element_type=jnp.float32) + pw2_b_ref[...]
    x = xr + y                                                # conv module output

    # FFN module 2 (half-step) + final LayerNorm
    h = _layernorm(x, ln_g_ref[...], ln_b_ref[...], eps)
    h = jnp.dot(h.astype(MXU_DTYPE), w1_ref[...],
                preferred_element_type=jnp.float32) + b1_ref[...]
    h = h * jax.nn.sigmoid(h)
    h = jnp.dot(h.astype(MXU_DTYPE), w2_ref[...],
                preferred_element_type=jnp.float32) + b2_ref[...]
    out = x + 0.5 * h
    out = _layernorm(out, fg_ref[...], fb_ref[...], eps)
    o_ref[...] = out.astype(o_ref.dtype)


# ------------------------------ Pallas wrappers -----------------------------

def ffn_block(x2, ln_g, ln_b, w1, b1, w2, b2):
    M, D = x2.shape
    DF = w1.shape[1]
    mt = _pick_row_tile(M)
    row_spec = pl.BlockSpec((mt, D), lambda i: (i, 0))
    full = lambda shape: pl.BlockSpec(shape, lambda i: (0,) * len(shape))
    return pl.pallas_call(
        functools.partial(_ffn_kernel, eps=LN_EPS),
        out_shape=jax.ShapeDtypeStruct((M, D), x2.dtype),
        grid=(M // mt,),
        in_specs=[row_spec,
                  full((1, D)), full((1, D)),
                  full((D, DF)), full((1, DF)),
                  full((DF, D)), full((1, D))],
        out_specs=row_spec,
        compiler_params=_PARAMS_PAR1,
    )(x2, ln_g.reshape(1, D), ln_b.reshape(1, D),
      w1.astype(MXU_DTYPE), b1.reshape(1, DF),
      w2.astype(MXU_DTYPE), b2.reshape(1, D))


def mhsa_convfront_block(x, att_g, att_b, wqkv, bqkv, wo, bo,
                         cv_g, cv_b, pw1_w, pw1_b, dw_w, *, num_heads):
    B, T, D = x.shape
    D2 = pw1_w.shape[1]
    K = dw_w.shape[0]
    seq_spec = pl.BlockSpec((1, T, D), lambda b: (b, 0, 0))
    vec_spec = pl.BlockSpec((1, 1, D), lambda b: (b, 0, 0))
    full = lambda shape: pl.BlockSpec(shape, lambda b: (0,) * len(shape))
    kernel = functools.partial(_mhsa_convfront_kernel, eps=LN_EPS,
                               num_heads=num_heads, kernel_size=K)
    return pl.pallas_call(
        kernel,
        out_shape=(jax.ShapeDtypeStruct((B, T, D), x.dtype),       # x3 (attn residual)
                   jax.ShapeDtypeStruct((B, T, D), jnp.float32),   # z  (pre-BN conv act)
                   jax.ShapeDtypeStruct((B, 1, D), jnp.float32),   # per-seq sum
                   jax.ShapeDtypeStruct((B, 1, D), jnp.float32)),  # per-seq sum of sq
        grid=(B,),
        in_specs=[seq_spec,
                  full((1, D)), full((1, D)),
                  full((D, 3 * D)), full((1, 3 * D)),
                  full((D, D)), full((1, D)),
                  full((1, D)), full((1, D)),
                  full((D, D2)), full((1, D2)),
                  full((K, D))],
        out_specs=(seq_spec, seq_spec, vec_spec, vec_spec),
        scratch_shapes=[pltpu.VMEM((T, D), jnp.float32)],          # head-output scratch
        compiler_params=_PARAMS_PAR1,
    )(x, att_g.reshape(1, D), att_b.reshape(1, D),
      wqkv.astype(MXU_DTYPE), bqkv.reshape(1, 3 * D),
      wo.astype(MXU_DTYPE), bo.reshape(1, D),
      cv_g.reshape(1, D), cv_b.reshape(1, D),
      pw1_w.astype(MXU_DTYPE), pw1_b.reshape(1, D2),
      dw_w)


def convback_ffn_block(z, xres, mean, inv_std, bn_g, bn_b, pw2_w, pw2_b,
                       ln_g, ln_b, w1, b1, w2, b2, fg, fb):
    M, D = z.shape
    DF = w1.shape[1]
    mt = _pick_row_tile(M)
    row_spec = pl.BlockSpec((mt, D), lambda i: (i, 0))
    full = lambda shape: pl.BlockSpec(shape, lambda i: (0,) * len(shape))
    return pl.pallas_call(
        functools.partial(_convback_ffn_kernel, eps=LN_EPS),
        out_shape=jax.ShapeDtypeStruct((M, D), xres.dtype),
        grid=(M // mt,),
        in_specs=[row_spec, row_spec,
                  full((1, D)), full((1, D)), full((1, D)), full((1, D)),
                  full((D, D)), full((1, D)),
                  full((1, D)), full((1, D)),
                  full((D, DF)), full((1, DF)),
                  full((DF, D)), full((1, D)),
                  full((1, D)), full((1, D))],
        out_specs=row_spec,
        compiler_params=_PARAMS_PAR1,
    )(z, xres,
      mean.reshape(1, D), inv_std.reshape(1, D),
      bn_g.reshape(1, D), bn_b.reshape(1, D),
      pw2_w.astype(MXU_DTYPE), pw2_b.reshape(1, D),
      ln_g.reshape(1, D), ln_b.reshape(1, D),
      w1.astype(MXU_DTYPE), b1.reshape(1, DF),
      w2.astype(MXU_DTYPE), b2.reshape(1, D),
      fg.reshape(1, D), fb.reshape(1, D))


# ----------------------------- parameter setup ------------------------------

def init_params(key, d_model, ff_expansion=4, conv_expansion=2, conv_kernel=31):
    ks = iter(jax.random.split(key, 64))

    def w(shape, scale=0.05):
        return scale * jax.random.normal(next(ks), shape, jnp.float32)

    def zeros(n):
        return jnp.zeros((n,), jnp.float32)

    def ones(n):
        return jnp.ones((n,), jnp.float32)

    d_ff = d_model * ff_expansion
    d_cv = d_model * conv_expansion
    return {
        # FF module 1
        "ff1_ln_g": ones(d_model), "ff1_ln_b": zeros(d_model),
        "ff1_w1": w((d_model, d_ff)), "ff1_b1": zeros(d_ff),
        "ff1_w2": w((d_ff, d_model)), "ff1_b2": zeros(d_model),
        # MHSA module
        "att_ln_g": ones(d_model), "att_ln_b": zeros(d_model),
        "wq": w((d_model, d_model)), "bq": zeros(d_model),
        "wk": w((d_model, d_model)), "bk": zeros(d_model),
        "wv": w((d_model, d_model)), "bv": zeros(d_model),
        "wo": w((d_model, d_model)), "bo": zeros(d_model),
        # Conv module
        "conv_ln_g": ones(d_model), "conv_ln_b": zeros(d_model),
        "pw1_w": w((d_model, d_cv)), "pw1_b": zeros(d_cv),
        "dw_w": w((conv_kernel, d_model)),
        "bn_g": ones(d_model), "bn_b": zeros(d_model),
        "pw2_w": w((d_model, d_model)), "pw2_b": zeros(d_model),
        # FF module 2
        "ff2_ln_g": ones(d_model), "ff2_ln_b": zeros(d_model),
        "ff2_w1": w((d_model, d_ff)), "ff2_b1": zeros(d_ff),
        "ff2_w2": w((d_ff, d_model)), "ff2_b2": zeros(d_model),
        # Final LN
        "final_ln_g": ones(d_model), "final_ln_b": zeros(d_model),
    }


# ------------------------------ forward pass --------------------------------

def middle_forward(x, p, num_attention_heads):
    B, T, D = x.shape
    H = num_attention_heads
    assert D % H == 0
    dh = D // H
    M = B * T

    # ---- Feed-forward module 1 (half-step residual), row-tiled kernel ----
    x2 = ffn_block(x.reshape(M, D), p["ff1_ln_g"], p["ff1_ln_b"],
                   p["ff1_w1"], p["ff1_b1"], p["ff1_w2"], p["ff1_b2"])

    # ---- MHSA module + conv-module front half, fused per-sequence kernel ----
    scale = 1.0 / (dh ** 0.5)
    wqkv = jnp.concatenate([p["wq"] * scale, p["wk"], p["wv"]], axis=1)
    bqkv = jnp.concatenate([p["bq"] * scale, p["bk"], p["bv"]])
    x3, z, psum, psq = mhsa_convfront_block(
        x2.reshape(B, T, D), p["att_ln_g"], p["att_ln_b"], wqkv, bqkv,
        p["wo"], p["bo"], p["conv_ln_g"], p["conv_ln_b"],
        p["pw1_w"], p["pw1_b"], p["dw_w"], num_heads=H)

    # ---- BatchNorm statistics (training mode): tiny (D,) reduction in XLA ----
    cnt = float(M)
    mean = jnp.sum(psum, axis=(0, 1)) / cnt
    var = jnp.maximum(jnp.sum(psq, axis=(0, 1)) / cnt - mean * mean, 0.0)
    inv_std = jax.lax.rsqrt(var + BN_EPS)

    # ---- Conv back half + FFN module 2 + final LayerNorm, fused row-tiled kernel ----
    out = convback_ffn_block(z.reshape(M, D), x3.reshape(M, D),
                             mean, inv_std, p["bn_g"], p["bn_b"],
                             p["pw2_w"], p["pw2_b"],
                             p["ff2_ln_g"], p["ff2_ln_b"],
                             p["ff2_w1"], p["ff2_b1"], p["ff2_w2"], p["ff2_b2"],
                             p["final_ln_g"], p["final_ln_b"])
    return out.reshape(B, T, D)


# --------------------------------- main --------------------------------------

if __name__ == "__main__":
    ENCODER_DIM = 32
    NUM_HEADS = 4
    B, T = 2, 8

    key = jax.random.PRNGKey(0)
    k_x, k_p = jax.random.split(key)
    ipt = jax.random.normal(k_x, (B, T, ENCODER_DIM), jnp.float32)
    params = init_params(k_p, ENCODER_DIM)

    fwd = jax.jit(functools.partial(middle_forward, num_attention_heads=NUM_HEADS))
    out = fwd(ipt, params)
    out = jax.block_until_ready(out)

    assert out.shape == (B, T, ENCODER_DIM)
    assert bool(jnp.all(jnp.isfinite(out)))
    print("KERNEL_OK")
</pallas_src>

<mosaic_0001>
module attributes {stable_mosaic.version = 11 : i64} {
  func.func @_ffn_kernel(%arg0: i32, %arg1: memref<8x32xf32, #tpu.memory_space<vmem>>, %arg2: memref<1x32xf32, #tpu.memory_space<vmem>>, %arg3: memref<1x32xf32, #tpu.memory_space<vmem>>, %arg4: memref<32x128xbf16, #tpu.memory_space<vmem>>, %arg5: memref<1x128xf32, #tpu.memory_space<vmem>>, %arg6: memref<128x32xbf16, #tpu.memory_space<vmem>>, %arg7: memref<1x32xf32, #tpu.memory_space<vmem>>, %arg8: memref<8x32xf32, #tpu.memory_space<vmem>>) attributes {dimension_semantics = [#tpu.dimension_semantics<parallel>], iteration_bounds = array<i64: 2>, scalar_prefetch = 0 : i64, scratch_operands = 0 : i64, tpu.core_type = #tpu.core_type<tc>, window_params = [{transform_indices = @transform_0, window_bounds = array<i64: 8, 32>}, {pipeline_mode = #tpu.pipeline_mode<synchronous>, transform_indices = @transform_1, window_bounds = array<i64: 1, 32>}, {pipeline_mode = #tpu.pipeline_mode<synchronous>, transform_indices = @transform_2, window_bounds = array<i64: 1, 32>}, {pipeline_mode = #tpu.pipeline_mode<synchronous>, transform_indices = @transform_3, window_bounds = array<i64: 32, 128>}, {pipeline_mode = #tpu.pipeline_mode<synchronous>, transform_indices = @transform_4, window_bounds = array<i64: 1, 128>}, {pipeline_mode = #tpu.pipeline_mode<synchronous>, transform_indices = @transform_5, window_bounds = array<i64: 128, 32>}, {pipeline_mode = #tpu.pipeline_mode<synchronous>, transform_indices = @transform_6, window_bounds = array<i64: 1, 32>}, {transform_indices = @transform_7, window_bounds = array<i64: 8, 32>}]} {
    %c0 = arith.constant 0 : index
    %c0_0 = arith.constant 0 : index
    %0 = vector.load %arg1[%c0, %c0_0] : memref<8x32xf32, #tpu.memory_space<vmem>>, vector<8x32xf32>
    %c0_1 = arith.constant 0 : index
    %c0_2 = arith.constant 0 : index
    %1 = vector.load %arg2[%c0_1, %c0_2] : memref<1x32xf32, #tpu.memory_space<vmem>>, vector<1x32xf32>
    %c0_3 = arith.constant 0 : index
    %c0_4 = arith.constant 0 : index
    %2 = vector.load %arg3[%c0_3, %c0_4] : memref<1x32xf32, #tpu.memory_space<vmem>>, vector<1x32xf32>
    %cst = arith.constant dense<0.000000e+00> : vector<8xf32>
    %3 = vector.multi_reduction <add>, %0, %cst [1] : vector<8x32xf32> to vector<8xf32>
    %4 = vector.shape_cast %3 : vector<8xf32> to vector<8x1xf32>
    %cst_5 = arith.constant 3.200000e+01 : f32
    %5 = vector.broadcast %cst_5 : f32 to vector<8x1xf32>
    %6 = arith.divf %4, %5 : vector<8x1xf32>
    %7 = vector.broadcast %6 : vector<8x1xf32> to vector<8x32xf32>
    %8 = arith.subf %0, %7 : vector<8x32xf32>
    %9 = arith.mulf %8, %8 : vector<8x32xf32>
    %cst_6 = arith.constant dense<0.000000e+00> : vector<8xf32>
    %10 = vector.multi_reduction <add>, %9, %cst_6 [1] : vector<8x32xf32> to vector<8xf32>
    %11 = vector.shape_cast %10 : vector<8xf32> to vector<8x1xf32>
    %cst_7 = arith.constant 3.200000e+01 : f32
    %12 = vector.broadcast %cst_7 : f32 to vector<8x1xf32>
    %13 = arith.divf %11, %12 : vector<8x1xf32>
    %14 = vector.broadcast %6 : vector<8x1xf32> to vector<8x32xf32>
    %15 = arith.subf %0, %14 : vector<8x32xf32>
    %cst_8 = arith.constant 9.99999974E-6 : f32
    %16 = vector.broadcast %cst_8 : f32 to vector<8x1xf32>
    %17 = arith.addf %13, %16 : vector<8x1xf32>
    %18 = math.rsqrt %17 : vector<8x1xf32>
    %19 = vector.broadcast %18 : vector<8x1xf32> to vector<8x32xf32>
    %20 = arith.mulf %15, %19 : vector<8x32xf32>
    %21 = vector.broadcast %1 : vector<1x32xf32> to vector<8x32xf32>
    %22 = arith.mulf %20, %21 : vector<8x32xf32>
    %23 = vector.broadcast %2 : vector<1x32xf32> to vector<8x32xf32>
    %24 = arith.addf %22, %23 : vector<8x32xf32>
    %25 = arith.truncf %24 : vector<8x32xf32> to vector<8x32xbf16>
    %c0_9 = arith.constant 0 : index
    %c0_10 = arith.constant 0 : index
    %26 = vector.load %arg4[%c0_9, %c0_10] : memref<32x128xbf16, #tpu.memory_space<vmem>>, vector<32x128xbf16>
    %cst_11 = arith.constant dense<0.000000e+00> : vector<8x128xf32>
    %27 = tpu.matmul %25, %26, %cst_11 {dimension_numbers = #tpu.dot_dimension_numbers<[1], [0], [0], [1], [0, 0, 1, 1], [], []>} : vector<8x32xbf16>, vector<32x128xbf16>, vector<8x128xf32> -> vector<8x128xf32>
    %c0_12 = arith.constant 0 : index
    %c0_13 = arith.constant 0 : index
    %28 = vector.load %arg5[%c0_12, %c0_13] : memref<1x128xf32, #tpu.memory_space<vmem>>, vector<1x128xf32>
    %29 = vector.broadcast %28 : vector<1x128xf32> to vector<8x128xf32>
    %30 = arith.addf %27, %29 : vector<8x128xf32>
    %31 = arith.negf %30 : vector<8x128xf32>
    %32 = math.exp %31 : vector<8x128xf32>
    %cst_14 = arith.constant 1.000000e+00 : f32
    %33 = vector.broadcast %cst_14 : f32 to vector<8x128xf32>
    %34 = arith.addf %33, %32 : vector<8x128xf32>
    %35 = arith.divf %33, %34 : vector<8x128xf32>
    %36 = arith.mulf %30, %35 : vector<8x128xf32>
    %37 = arith.truncf %36 : vector<8x128xf32> to vector<8x128xbf16>
    %c0_15 = arith.constant 0 : index
    %c0_16 = arith.constant 0 : index
    %38 = vector.load %arg6[%c0_15, %c0_16] : memref<128x32xbf16, #tpu.memory_space<vmem>>, vector<128x32xbf16>
    %cst_17 = arith.constant dense<0.000000e+00> : vector<8x32xf32>
    %39 = tpu.matmul %37, %38, %cst_17 {dimension_numbers = #tpu.dot_dimension_numbers<[1], [0], [0], [1], [0, 0, 1, 1], [], []>} : vector<8x128xbf16>, vector<128x32xbf16>, vector<8x32xf32> -> vector<8x32xf32>
    %c0_18 = arith.constant 0 : index
    %c0_19 = arith.constant 0 : index
    %40 = vector.load %arg7[%c0_18, %c0_19] : memref<1x32xf32, #tpu.memory_space<vmem>>, vector<1x32xf32>
    %41 = vector.broadcast %40 : vector<1x32xf32> to vector<8x32xf32>
    %42 = arith.addf %39, %41 : vector<8x32xf32>
    %cst_20 = arith.constant 5.000000e-01 : f32
    %43 = vector.broadcast %cst_20 : f32 to vector<8x32xf32>
    %44 = arith.mulf %43, %42 : vector<8x32xf32>
    %45 = arith.addf %0, %44 : vector<8x32xf32>
    %c0_21 = arith.constant 0 : index
    %c0_22 = arith.constant 0 : index
    %46 = vector.load %arg8[%c0_21, %c0_22] : memref<8x32xf32, #tpu.memory_space<vmem>>, vector<8x32xf32>
    tpu.vector_store %arg8[%c0_21, %c0_22], %45 {strides = array<i32>} : memref<8x32xf32, #tpu.memory_space<vmem>>, vector<8x32xf32>,
    return
  }
  func.func @transform_0(%arg0: i32) -> (i32, i32) {
    %c0_i32 = arith.constant 0 : i32
    %c0_i32_0 = arith.constant 0 : i32
    return %arg0, %c0_i32 : i32, i32
  }
  func.func @transform_1(%arg0: i32) -> (i32, i32) {
    %c0_i32 = arith.constant 0 : i32
    %c0_i32_0 = arith.constant 0 : i32
    %c0_i32_1 = arith.constant 0 : i32
    return %c0_i32, %c0_i32_0 : i32, i32
  }
  func.func @transform_2(%arg0: i32) -> (i32, i32) {
    %c0_i32 = arith.constant 0 : i32
    %c0_i32_0 = arith.constant 0 : i32
    %c0_i32_1 = arith.constant 0 : i32
    return %c0_i32, %c0_i32_0 : i32, i32
  }
  func.func @transform_3(%arg0: i32) -> (i32, i32) {
    %c0_i32 = arith.constant 0 : i32
    %c0_i32_0 = arith.constant 0 : i32
    %c0_i32_1 = arith.constant 0 : i32
    return %c0_i32, %c0_i32_0 : i32, i32
  }
  func.func @transform_4(%arg0: i32) -> (i32, i32) {
    %c0_i32 = arith.constant 0 : i32
    %c0_i32_0 = arith.constant 0 : i32
    %c0_i32_1 = arith.constant 0 : i32
    return %c0_i32, %c0_i32_0 : i32, i32
  }
  func.func @transform_5(%arg0: i32) -> (i32, i32) {
    %c0_i32 = arith.constant 0 : i32
    %c0_i32_0 = arith.constant 0 : i32
    %c0_i32_1 = arith.constant 0 : i32
    return %c0_i32, %c0_i32_0 : i32, i32
  }
  func.func @transform_6(%arg0: i32) -> (i32, i32) {
    %c0_i32 = arith.constant 0 : i32
    %c0_i32_0 = arith.constant 0 : i32
    %c0_i32_1 = arith.constant 0 : i32
    return %c0_i32, %c0_i32_0 : i32, i32
  }
  func.func @transform_7(%arg0: i32) -> (i32, i32) {
    %c0_i32 = arith.constant 0 : i32
    %c0_i32_0 = arith.constant 0 : i32
    return %arg0, %c0_i32 : i32, i32
  }
}

module attributes {stable_mosaic.version = 11 : i64} {
  func.func @_convback_ffn_kernel(%arg0: i32, %arg1: memref<8x32xf32, #tpu.memory_space<vmem>>, %arg2: memref<8x32xf32, #tpu.memory_space<vmem>>, %arg3: memref<1x32xf32, #tpu.memory_space<vmem>>, %arg4: memref<1x32xf32, #tpu.memory_space<vmem>>, %arg5: memref<1x32xf32, #tpu.memory_space<vmem>>, %arg6: memref<1x32xf32, #tpu.memory_space<vmem>>, %arg7: memref<32x32xbf16, #tpu.memory_space<vmem>>, %arg8: memref<1x32xf32, #tpu.memory_space<vmem>>, %arg9: memref<1x32xf32, #tpu.memory_space<vmem>>, %arg10: memref<1x32xf32, #tpu.memory_space<vmem>>, %arg11: memref<32x128xbf16, #tpu.memory_space<vmem>>, %arg12: memref<1x128xf32, #tpu.memory_space<vmem>>, %arg13: memref<128x32xbf16, #tpu.memory_space<vmem>>, %arg14: memref<1x32xf32, #tpu.memory_space<vmem>>, %arg15: memref<1x32xf32, #tpu.memory_space<vmem>>, %arg16: memref<1x32xf32, #tpu.memory_space<vmem>>, %arg17: memref<8x32xf32, #tpu.memory_space<vmem>>) attributes {dimension_semantics = [#tpu.dimension_semantics<parallel>], iteration_bounds = array<i64: 2>, scalar_prefetch = 0 : i64, scratch_operands = 0 : i64, tpu.core_type = #tpu.core_type<tc>, window_params = [{transform_indices = @transform_0, window_bounds = array<i64: 8, 32>}, {transform_indices = @transform_1, window_bounds = array<i64: 8, 32>}, {pipeline_mode = #tpu.pipeline_mode<synchronous>, transform_indices = @transform_2, window_bounds = array<i64: 1, 32>}, {pipeline_mode = #tpu.pipeline_mode<synchronous>, transform_indices = @transform_3, window_bounds = array<i64: 1, 32>}, {pipeline_mode = #tpu.pipeline_mode<synchronous>, transform_indices = @transform_4, window_bounds = array<i64: 1, 32>}, {pipeline_mode = #tpu.pipeline_mode<synchronous>, transform_indices = @transform_5, window_bounds = array<i64: 1, 32>}, {pipeline_mode = #tpu.pipeline_mode<synchronous>, transform_indices = @transform_6, window_bounds = array<i64: 32, 32>}, {pipeline_mode = #tpu.pipeline_mode<synchronous>, transform_indices = @transform_7, window_bounds = array<i64: 1, 32>}, {pipeline_mode = #tpu.pipeline_mode<synchronous>, transform_indices = @transform_8, window_bounds = array<i64: 1, 32>}, {pipeline_mode = #tpu.pipeline_mode<synchronous>, transform_indices = @transform_9, window_bounds = array<i64: 1, 32>}, {pipeline_mode = #tpu.pipeline_mode<synchronous>, transform_indices = @transform_10, window_bounds = array<i64: 32, 128>}, {pipeline_mode = #tpu.pipeline_mode<synchronous>, transform_indices = @transform_11, window_bounds = array<i64: 1, 128>}, {pipeline_mode = #tpu.pipeline_mode<synchronous>, transform_indices = @transform_12, window_bounds = array<i64: 128, 32>}, {pipeline_mode = #tpu.pipeline_mode<synchronous>, transform_indices = @transform_13, window_bounds = array<i64: 1, 32>}, {pipeline_mode = #tpu.pipeline_mode<synchronous>, transform_indices = @transform_14, window_bounds = array<i64: 1, 32>}, {pipeline_mode = #tpu.pipeline_mode<synchronous>, transform_indices = @transform_15, window_bounds = array<i64: 1, 32>}, {transform_indices = @transform_16, window_bounds = array<i64: 8, 32>}]} {
    %c0 = arith.constant 0 : index
    %c0_0 = arith.constant 0 : index
    %0 = vector.load %arg1[%c0, %c0_0] : memref<8x32xf32, #tpu.memory_space<vmem>>, vector<8x32xf32>
    %c0_1 = arith.constant 0 : index
    %c0_2 = arith.constant 0 : index
    %1 = vector.load %arg2[%c0_1, %c0_2] : memref<8x32xf32, #tpu.memory_space<vmem>>, vector<8x32xf32>
    %c0_3 = arith.constant 0 : index
    %c0_4 = arith.constant 0 : index
    %2 = vector.load %arg3[%c0_3, %c0_4] : memref<1x32xf32, #tpu.memory_space<vmem>>, vector<1x32xf32>
    %3 = vector.broadcast %2 : vector<1x32xf32> to vector<8x32xf32>
    %4 = arith.subf %0, %3 : vector<8x32xf32>
    %c0_5 = arith.constant 0 : index
    %c0_6 = arith.constant 0 : index
    %5 = vector.load %arg4[%c0_5, %c0_6] : memref<1x32xf32, #tpu.memory_space<vmem>>, vector<1x32xf32>
    %6 = vector.broadcast %5 : vector<1x32xf32> to vector<8x32xf32>
    %7 = arith.mulf %4, %6 : vector<8x32xf32>
    %c0_7 = arith.constant 0 : index
    %c0_8 = arith.constant 0 : index
    %8 = vector.load %arg5[%c0_7, %c0_8] : memref<1x32xf32, #tpu.memory_space<vmem>>, vector<1x32xf32>
    %9 = vector.broadcast %8 : vector<1x32xf32> to vector<8x32xf32>
    %10 = arith.mulf %7, %9 : vector<8x32xf32>
    %c0_9 = arith.constant 0 : index
    %c0_10 = arith.constant 0 : index
    %11 = vector.load %arg6[%c0_9, %c0_10] : memref<1x32xf32, #tpu.memory_space<vmem>>, vector<1x32xf32>
    %12 = vector.broadcast %11 : vector<1x32xf32> to vector<8x32xf32>
    %13 = arith.addf %10, %12 : vector<8x32xf32>
    %14 = arith.negf %13 : vector<8x32xf32>
    %15 = math.exp %14 : vector<8x32xf32>
    %cst = arith.constant 1.000000e+00 : f32
    %16 = vector.broadcast %cst : f32 to vector<8x32xf32>
    %17 = arith.addf %16, %15 : vector<8x32xf32>
    %18 = arith.divf %16, %17 : vector<8x32xf32>
    %19 = arith.mulf %13, %18 : vector<8x32xf32>
    %20 = arith.truncf %19 : vector<8x32xf32> to vector<8x32xbf16>
    %c0_11 = arith.constant 0 : index
    %c0_12 = arith.constant 0 : index
    %21 = vector.load %arg7[%c0_11, %c0_12] : memref<32x32xbf16, #tpu.memory_space<vmem>>, vector<32x32xbf16>
    %cst_13 = arith.constant dense<0.000000e+00> : vector<8x32xf32>
    %22 = tpu.matmul %20, %21, %cst_13 {dimension_numbers = #tpu.dot_dimension_numbers<[1], [0], [0], [1], [0, 0, 1, 1], [], []>} : vector<8x32xbf16>, vector<32x32xbf16>, vector<8x32xf32> -> vector<8x32xf32>
    %c0_14 = arith.constant 0 : index
    %c0_15 = arith.constant 0 : index
    %23 = vector.load %arg8[%c0_14, %c0_15] : memref<1x32xf32, #tpu.memory_space<vmem>>, vector<1x32xf32>
    %24 = vector.broadcast %23 : vector<1x32xf32> to vector<8x32xf32>
    %25 = arith.addf %22, %24 : vector<8x32xf32>
    %26 = arith.addf %1, %25 : vector<8x32xf32>
    %c0_16 = arith.constant 0 : index
    %c0_17 = arith.constant 0 : index
    %27 = vector.load %arg9[%c0_16, %c0_17] : memref<1x32xf32, #tpu.memory_space<vmem>>, vector<1x32xf32>
    %c0_18 = arith.constant 0 : index
    %c0_19 = arith.constant 0 : index
    %28 = vector.load %arg10[%c0_18, %c0_19] : memref<1x32xf32, #tpu.memory_space<vmem>>, vector<1x32xf32>
    %cst_20 = arith.constant dense<0.000000e+00> : vector<8xf32>
    %29 = vector.multi_reduction <add>, %26, %cst_20 [1] : vector<8x32xf32> to vector<8xf32>
    %30 = vector.shape_cast %29 : vector<8xf32> to vector<8x1xf32>
    %cst_21 = arith.constant 3.200000e+01 : f32
    %31 = vector.broadcast %cst_21 : f32 to vector<8x1xf32>
    %32 = arith.divf %30, %31 : vector<8x1xf32>
    %33 = vector.broadcast %32 : vector<8x1xf32> to vector<8x32xf32>
    %34 = arith.subf %26, %33 : vector<8x32xf32>
    %35 = arith.mulf %34, %34 : vector<8x32xf32>
    %cst_22 = arith.constant dense<0.000000e+00> : vector<8xf32>
    %36 = vector.multi_reduction <add>, %35, %cst_22 [1] : vector<8x32xf32> to vector<8xf32>
    %37 = vector.shape_cast %36 : vector<8xf32> to vector<8x1xf32>
    %cst_23 = arith.constant 3.200000e+01 : f32
    %38 = vector.broadcast %cst_23 : f32 to vector<8x1xf32>
    %39 = arith.divf %37, %38 : vector<8x1xf32>
    %40 = vector.broadcast %32 : vector<8x1xf32> to vector<8x32xf32>
    %41 = arith.subf %26, %40 : vector<8x32xf32>
    %cst_24 = arith.constant 9.99999974E-6 : f32
    %42 = vector.broadcast %cst_24 : f32 to vector<8x1xf32>
    %43 = arith.addf %39, %42 : vector<8x1xf32>
    %44 = math.rsqrt %43 : vector<8x1xf32>
    %45 = vector.broadcast %44 : vector<8x1xf32> to vector<8x32xf32>
    %46 = arith.mulf %41, %45 : vector<8x32xf32>
    %47 = vector.broadcast %27 : vector<1x32xf32> to vector<8x32xf32>
    %48 = arith.mulf %46, %47 : vector<8x32xf32>
    %49 = vector.broadcast %28 : vector<1x32xf32> to vector<8x32xf32>
    %50 = arith.addf %48, %49 : vector<8x32xf32>
    %51 = arith.truncf %50 : vector<8x32xf32> to vector<8x32xbf16>
    %c0_25 = arith.constant 0 : index
    %c0_26 = arith.constant 0 : index
    %52 = vector.load %arg11[%c0_25, %c0_26] : memref<32x128xbf16, #tpu.memory_space<vmem>>, vector<32x128xbf16>
    %cst_27 = arith.constant dense<0.000000e+00> : vector<8x128xf32>
    %53 = tpu.matmul %51, %52, %cst_27 {dimension_numbers = #tpu.dot_dimension_numbers<[1], [0], [0], [1], [0, 0, 1, 1], [], []>} : vector<8x32xbf16>, vector<32x128xbf16>, vector<8x128xf32> -> vector<8x128xf32>
    %c0_28 = arith.constant 0 : index
    %c0_29 = arith.constant 0 : index
    %54 = vector.load %arg12[%c0_28, %c0_29] : memref<1x128xf32, #tpu.memory_space<vmem>>, vector<1x128xf32>
    %55 = vector.broadcast %54 : vector<1x128xf32> to vector<8x128xf32>
    %56 = arith.addf %53, %55 : vector<8x128xf32>
    %57 = arith.negf %56 : vector<8x128xf32>
    %58 = math.exp %57 : vector<8x128xf32>
    %cst_30 = arith.constant 1.000000e+00 : f32
    %59 = vector.broadcast %cst_30 : f32 to vector<8x128xf32>
    %60 = arith.addf %59, %58 : vector<8x128xf32>
    %61 = arith.divf %59, %60 : vector<8x128xf32>
    %62 = arith.mulf %56, %61 : vector<8x128xf32>
    %63 = arith.truncf %62 : vector<8x128xf32> to vector<8x128xbf16>
    %c0_31 = arith.constant 0 : index
    %c0_32 = arith.constant 0 : index
    %64 = vector.load %arg13[%c0_31, %c0_32] : memref<128x32xbf16, #tpu.memory_space<vmem>>, vector<128x32xbf16>
    %cst_33 = arith.constant dense<0.000000e+00> : vector<8x32xf32>
    %65 = tpu.matmul %63, %64, %cst_33 {dimension_numbers = #tpu.dot_dimension_numbers<[1], [0], [0], [1], [0, 0, 1, 1], [], []>} : vector<8x128xbf16>, vector<128x32xbf16>, vector<8x32xf32> -> vector<8x32xf32>
    %c0_34 = arith.constant 0 : index
    %c0_35 = arith.constant 0 : index
    %66 = vector.load %arg14[%c0_34, %c0_35] : memref<1x32xf32, #tpu.memory_space<vmem>>, vector<1x32xf32>
    %67 = vector.broadcast %66 : vector<1x32xf32> to vector<8x32xf32>
    %68 = arith.addf %65, %67 : vector<8x32xf32>
    %cst_36 = arith.constant 5.000000e-01 : f32
    %69 = vector.broadcast %cst_36 : f32 to vector<8x32xf32>
    %70 = arith.mulf %69, %68 : vector<8x32xf32>
    %71 = arith.addf %26, %70 : vector<8x32xf32>
    %c0_37 = arith.constant 0 : index
    %c0_38 = arith.constant 0 : index
    %72 = vector.load %arg15[%c0_37, %c0_38] : memref<1x32xf32, #tpu.memory_space<vmem>>, vector<1x32xf32>
    %c0_39 = arith.constant 0 : index
    %c0_40 = arith.constant 0 : index
    %73 = vector.load %arg16[%c0_39, %c0_40] : memref<1x32xf32, #tpu.memory_space<vmem>>, vector<1x32xf32>
    %cst_41 = arith.constant dense<0.000000e+00> : vector<8xf32>
    %74 = vector.multi_reduction <add>, %71, %cst_41 [1] : vector<8x32xf32> to vector<8xf32>
    %75 = vector.shape_cast %74 : vector<8xf32> to vector<8x1xf32>
    %cst_42 = arith.constant 3.200000e+01 : f32
    %76 = vector.broadcast %cst_42 : f32 to vector<8x1xf32>
    %77 = arith.divf %75, %76 : vector<8x1xf32>
    %78 = vector.broadcast %77 : vector<8x1xf32> to vector<8x32xf32>
    %79 = arith.subf %71, %78 : vector<8x32xf32>
    %80 = arith.mulf %79, %79 : vector<8x32xf32>
    %cst_43 = arith.constant dense<0.000000e+00> : vector<8xf32>
    %81 = vector.multi_reduction <add>, %80, %cst_43 [1] : vector<8x32xf32> to vector<8xf32>
    %82 = vector.shape_cast %81 : vector<8xf32> to vector<8x1xf32>
    %cst_44 = arith.constant 3.200000e+01 : f32
    %83 = vector.broadcast %cst_44 : f32 to vector<8x1xf32>
    %84 = arith.divf %82, %83 : vector<8x1xf32>
    %85 = vector.broadcast %77 : vector<8x1xf32> to vector<8x32xf32>
    %86 = arith.subf %71, %85 : vector<8x32xf32>
    %cst_45 = arith.constant 9.99999974E-6 : f32
    %87 = vector.broadcast %cst_45 : f32 to vector<8x1xf32>
    %88 = arith.addf %84, %87 : vector<8x1xf32>
    %89 = math.rsqrt %88 : vector<8x1xf32>
    %90 = vector.broadcast %89 : vector<8x1xf32> to vector<8x32xf32>
    %91 = arith.mulf %86, %90 : vector<8x32xf32>
    %92 = vector.broadcast %72 : vector<1x32xf32> to vector<8x32xf32>
    %93 = arith.mulf %91, %92 : vector<8x32xf32>
    %94 = vector.broadcast %73 : vector<1x32xf32> to vector<8x32xf32>
    %95 = arith.addf %93, %94 : vector<8x32xf32>
    %c0_46 = arith.constant 0 : index
    %c0_47 = arith.constant 0 : index
    %96 = vector.load %arg17[%c0_46, %c0_47] : memref<8x32xf32, #tpu.memory_space<vmem>>, vector<8x32xf32>
    tpu.vector_store %arg17[%c0_46, %c0_47], %95 {strides = array<i32>} : memref<8x32xf32, #tpu.memory_space<vmem>>, vector<8x32xf32>,
    return
  }
  func.func @transform_0(%arg0: i32) -> (i32, i32) {
    %c0_i32 = arith.constant 0 : i32
    %c0_i32_0 = arith.constant 0 : i32
    return %arg0, %c0_i32 : i32, i32
  }
  func.func @transform_1(%arg0: i32) -> (i32, i32) {
    %c0_i32 = arith.constant 0 : i32
    %c0_i32_0 = arith.constant 0 : i32
    return %arg0, %c0_i32 : i32, i32
  }
  func.func @transform_2(%arg0: i32) -> (i32, i32) {
    %c0_i32 = arith.constant 0 : i32
    %c0_i32_0 = arith.constant 0 : i32
    %c0_i32_1 = arith.constant 0 : i32
    return %c0_i32, %c0_i32_0 : i32, i32
  }
  func.func @transform_3(%arg0: i32) -> (i32, i32) {
    %c0_i32 = arith.constant 0 : i32
    %c0_i32_0 = arith.constant 0 : i32
    %c0_i32_1 = arith.constant 0 : i32
    return %c0_i32, %c0_i32_0 : i32, i32
  }
  func.func @transform_4(%arg0: i32) -> (i32, i32) {
    %c0_i32 = arith.constant 0 : i32
    %c0_i32_0 = arith.constant 0 : i32
    %c0_i32_1 = arith.constant 0 : i32
    return %c0_i32, %c0_i32_0 : i32, i32
  }
  func.func @transform_5(%arg0: i32) -> (i32, i32) {
    %c0_i32 = arith.constant 0 : i32
    %c0_i32_0 = arith.constant 0 : i32
    %c0_i32_1 = arith.constant 0 : i32
    return %c0_i32, %c0_i32_0 : i32, i32
  }
  func.func @transform_6(%arg0: i32) -> (i32, i32) {
    %c0_i32 = arith.constant 0 : i32
    %c0_i32_0 = arith.constant 0 : i32
    %c0_i32_1 = arith.constant 0 : i32
    return %c0_i32, %c0_i32_0 : i32, i32
  }
  func.func @transform_7(%arg0: i32) -> (i32, i32) {
    %c0_i32 = arith.constant 0 : i32
    %c0_i32_0 = arith.constant 0 : i32
    %c0_i32_1 = arith.constant 0 : i32
    return %c0_i32, %c0_i32_0 : i32, i32
  }
  func.func @transform_8(%arg0: i32) -> (i32, i32) {
    %c0_i32 = arith.constant 0 : i32
    %c0_i32_0 = arith.constant 0 : i32
    %c0_i32_1 = arith.constant 0 : i32
    return %c0_i32, %c0_i32_0 : i32, i32
  }
  func.func @transform_9(%arg0: i32) -> (i32, i32) {
    %c0_i32 = arith.constant 0 : i32
    %c0_i32_0 = arith.constant 0 : i32
    %c0_i32_1 = arith.constant 0 : i32
    return %c0_i32, %c0_i32_0 : i32, i32
  }
  func.func @transform_10(%arg0: i32) -> (i32, i32) {
    %c0_i32 = arith.constant 0 : i32
    %c0_i32_0 = arith.constant 0 : i32
    %c0_i32_1 = arith.constant 0 : i32
    return %c0_i32, %c0_i32_0 : i32, i32
  }
  func.func @transform_11(%arg0: i32) -> (i32, i32) {
    %c0_i32 = arith.constant 0 : i32
    %c0_i32_0 = arith.constant 0 : i32
    %c0_i32_1 = arith.constant 0 : i32
    return %c0_i32, %c0_i32_0 : i32, i32
  }
  func.func @transform_12(%arg0: i32) -> (i32, i32) {
    %c0_i32 = arith.constant 0 : i32
    %c0_i32_0 = arith.constant 0 : i32
    %c0_i32_1 = arith.constant 0 : i32
    return %c0_i32, %c0_i32_0 : i32, i32
  }
  func.func @transform_13(%arg0: i32) -> (i32, i32) {
    %c0_i32 = arith.constant 0 : i32
    %c0_i32_0 = arith.constant 0 : i32
    %c0_i32_1 = arith.constant 0 : i32
    return %c0_i32, %c0_i32_0 : i32, i32
  }
  func.func @transform_14(%arg0: i32) -> (i32, i32) {
    %c0_i32 = arith.constant 0 : i32
    %c0_i32_0 = arith.constant 0 : i32
    %c0_i32_1 = arith.constant 0 : i32
    return %c0_i32, %c0_i32_0 : i32, i32
  }
  func.func @transform_15(%arg0: i32) -> (i32, i32) {
    %c0_i32 = arith.constant 0 : i32
    %c0_i32_0 = arith.constant 0 : i32
    %c0_i32_1 = arith.constant 0 : i32
    return %c0_i32, %c0_i32_0 : i32, i32
  }
  func.func @transform_16(%arg0: i32) -> (i32, i32) {
    %c0_i32 = arith.constant 0 : i32
    %c0_i32_0 = arith.constant 0 : i32
    return %arg0, %c0_i32 : i32, i32
  }
}

module attributes {stable_mosaic.version = 11 : i64} {
  func.func @_mhsa_convfront_kernel(%arg0: i32, %arg1: memref<1x8x32xf32, #tpu.memory_space<vmem>>, %arg2: memref<1x32xf32, #tpu.memory_space<vmem>>, %arg3: memref<1x32xf32, #tpu.memory_space<vmem>>, %arg4: memref<32x96xbf16, #tpu.memory_space<vmem>>, %arg5: memref<1x96xf32, #tpu.memory_space<vmem>>, %arg6: memref<32x32xbf16, #tpu.memory_space<vmem>>, %arg7: memref<1x32xf32, #tpu.memory_space<vmem>>, %arg8: memref<1x32xf32, #tpu.memory_space<vmem>>, %arg9: memref<1x32xf32, #tpu.memory_space<vmem>>, %arg10: memref<32x64xbf16, #tpu.memory_space<vmem>>, %arg11: memref<1x64xf32, #tpu.memory_space<vmem>>, %arg12: memref<31x32xf32, #tpu.memory_space<vmem>>, %arg13: memref<1x8x32xf32, #tpu.memory_space<vmem>>, %arg14: memref<1x8x32xf32, #tpu.memory_space<vmem>>, %arg15: memref<1x1x32xf32, #tpu.memory_space<vmem>>, %arg16: memref<1x1x32xf32, #tpu.memory_space<vmem>>, %arg17: memref<8x32xf32, #tpu.memory_space<vmem>>) attributes {dimension_semantics = [#tpu.dimension_semantics<parallel>], iteration_bounds = array<i64: 2>, scalar_prefetch = 0 : i64, scratch_operands = 1 : i64, tpu.core_type = #tpu.core_type<tc>, window_params = [{transform_indices = @transform_0, window_bounds = array<i64: 1, 8, 32>}, {pipeline_mode = #tpu.pipeline_mode<synchronous>, transform_indices = @transform_1, window_bounds = array<i64: 1, 32>}, {pipeline_mode = #tpu.pipeline_mode<synchronous>, transform_indices = @transform_2, window_bounds = array<i64: 1, 32>}, {pipeline_mode = #tpu.pipeline_mode<synchronous>, transform_indices = @transform_3, window_bounds = array<i64: 32, 96>}, {pipeline_mode = #tpu.pipeline_mode<synchronous>, transform_indices = @transform_4, window_bounds = array<i64: 1, 96>}, {pipeline_mode = #tpu.pipeline_mode<synchronous>, transform_indices = @transform_5, window_bounds = array<i64: 32, 32>}, {pipeline_mode = #tpu.pipeline_mode<synchronous>, transform_indices = @transform_6, window_bounds = array<i64: 1, 32>}, {pipeline_mode = #tpu.pipeline_mode<synchronous>, transform_indices = @transform_7, window_bounds = array<i64: 1, 32>}, {pipeline_mode = #tpu.pipeline_mode<synchronous>, transform_indices = @transform_8, window_bounds = array<i64: 1, 32>}, {pipeline_mode = #tpu.pipeline_mode<synchronous>, transform_indices = @transform_9, window_bounds = array<i64: 32, 64>}, {pipeline_mode = #tpu.pipeline_mode<synchronous>, transform_indices = @transform_10, window_bounds = array<i64: 1, 64>}, {pipeline_mode = #tpu.pipeline_mode<synchronous>, transform_indices = @transform_11, window_bounds = array<i64: 31, 32>}, {transform_indices = @transform_12, window_bounds = array<i64: 1, 8, 32>}, {transform_indices = @transform_13, window_bounds = array<i64: 1, 8, 32>}, {transform_indices = @transform_14, window_bounds = array<i64: 1, 1, 32>}, {transform_indices = @transform_15, window_bounds = array<i64: 1, 1, 32>}]} {
    %c0 = arith.constant 0 : index
    %c0_0 = arith.constant 0 : index
    %c0_1 = arith.constant 0 : index
    %0 = vector.load %arg1[%c0, %c0_0, %c0_1] : memref<1x8x32xf32, #tpu.memory_space<vmem>>, vector<1x8x32xf32>
    %1 = vector.shape_cast %0 : vector<1x8x32xf32> to vector<8x32xf32>
    %c0_2 = arith.constant 0 : index
    %c0_3 = arith.constant 0 : index
    %2 = vector.load %arg2[%c0_2, %c0_3] : memref<1x32xf32, #tpu.memory_space<vmem>>, vector<1x32xf32>
    %c0_4 = arith.constant 0 : index
    %c0_5 = arith.constant 0 : index
    %3 = vector.load %arg3[%c0_4, %c0_5] : memref<1x32xf32, #tpu.memory_space<vmem>>, vector<1x32xf32>
    %cst = arith.constant dense<0.000000e+00> : vector<8xf32>
    %4 = vector.multi_reduction <add>, %1, %cst [1] : vector<8x32xf32> to vector<8xf32>
    %5 = vector.shape_cast %4 : vector<8xf32> to vector<8x1xf32>
    %cst_6 = arith.constant 3.200000e+01 : f32
    %6 = vector.broadcast %cst_6 : f32 to vector<8x1xf32>
    %7 = arith.divf %5, %6 : vector<8x1xf32>
    %8 = vector.broadcast %7 : vector<8x1xf32> to vector<8x32xf32>
    %9 = arith.subf %1, %8 : vector<8x32xf32>
    %10 = arith.mulf %9, %9 : vector<8x32xf32>
    %cst_7 = arith.constant dense<0.000000e+00> : vector<8xf32>
    %11 = vector.multi_reduction <add>, %10, %cst_7 [1] : vector<8x32xf32> to vector<8xf32>
    %12 = vector.shape_cast %11 : vector<8xf32> to vector<8x1xf32>
    %cst_8 = arith.constant 3.200000e+01 : f32
    %13 = vector.broadcast %cst_8 : f32 to vector<8x1xf32>
    %14 = arith.divf %12, %13 : vector<8x1xf32>
    %15 = vector.broadcast %7 : vector<8x1xf32> to vector<8x32xf32>
    %16 = arith.subf %1, %15 : vector<8x32xf32>
    %cst_9 = arith.constant 9.99999974E-6 : f32
    %17 = vector.broadcast %cst_9 : f32 to vector<8x1xf32>
    %18 = arith.addf %14, %17 : vector<8x1xf32>
    %19 = math.rsqrt %18 : vector<8x1xf32>
    %20 = vector.broadcast %19 : vector<8x1xf32> to vector<8x32xf32>
    %21 = arith.mulf %16, %20 : vector<8x32xf32>
    %22 = vector.broadcast %2 : vector<1x32xf32> to vector<8x32xf32>
    %23 = arith.mulf %21, %22 : vector<8x32xf32>
    %24 = vector.broadcast %3 : vector<1x32xf32> to vector<8x32xf32>
    %25 = arith.addf %23, %24 : vector<8x32xf32>
    %26 = arith.truncf %25 : vector<8x32xf32> to vector<8x32xbf16>
    %c0_10 = arith.constant 0 : index
    %c0_11 = arith.constant 0 : index
    %27 = vector.load %arg4[%c0_10, %c0_11] : memref<32x96xbf16, #tpu.memory_space<vmem>>, vector<32x96xbf16>
    %cst_12 = arith.constant dense<0.000000e+00> : vector<8x96xf32>
    %28 = tpu.matmul %26, %27, %cst_12 {dimension_numbers = #tpu.dot_dimension_numbers<[1], [0], [0], [1], [0, 0, 1, 1], [], []>} : vector<8x32xbf16>, vector<32x96xbf16>, vector<8x96xf32> -> vector<8x96xf32>
    %c0_13 = arith.constant 0 : index
    %c0_14 = arith.constant 0 : index
    %29 = vector.load %arg5[%c0_13, %c0_14] : memref<1x96xf32, #tpu.memory_space<vmem>>, vector<1x96xf32>
    %30 = vector.broadcast %29 : vector<1x96xf32> to vector<8x96xf32>
    %31 = arith.addf %28, %30 : vector<8x96xf32>
    %32 = arith.truncf %31 : vector<8x96xf32> to vector<8x96xbf16>
    %33 = vector.extract_strided_slice %32 {offsets = [0, 0], sizes = [8, 8], strides = [1, 1]} : vector<8x96xbf16> to vector<8x8xbf16>
    %34 = vector.extract_strided_slice %32 {offsets = [0, 32], sizes = [8, 8], strides = [1, 1]} : vector<8x96xbf16> to vector<8x8xbf16>
    %35 = vector.extract_strided_slice %32 {offsets = [0, 64], sizes = [8, 8], strides = [1, 1]} : vector<8x96xbf16> to vector<8x8xbf16>
    %cst_15 = arith.constant dense<0.000000e+00> : vector<8x8xf32>
    %36 = tpu.matmul %33, %34, %cst_15 {dimension_numbers = #tpu.dot_dimension_numbers<[1], [1], [0], [0], [0, 0, 1, 0], [], []>} : vector<8x8xbf16>, vector<8x8xbf16>, vector<8x8xf32> -> vector<8x8xf32>
    %cst_16 = arith.constant dense<0xFF800000> : vector<8xf32>
    %37 = vector.multi_reduction <maximumf>, %36, %cst_16 [1] : vector<8x8xf32> to vector<8xf32>
    %38 = vector.shape_cast %37 : vector<8xf32> to vector<8x1xf32>
    %39 = vector.broadcast %38 : vector<8x1xf32> to vector<8x8xf32>
    %40 = arith.subf %36, %39 : vector<8x8xf32>
    %41 = math.exp %40 : vector<8x8xf32>
    %cst_17 = arith.constant dense<0.000000e+00> : vector<8xf32>
    %42 = vector.multi_reduction <add>, %41, %cst_17 [1] : vector<8x8xf32> to vector<8xf32>
    %43 = vector.shape_cast %42 : vector<8xf32> to vector<8x1xf32>
    %44 = vector.broadcast %43 : vector<8x1xf32> to vector<8x8xf32>
    %45 = arith.divf %41, %44 : vector<8x8xf32>
    %46 = arith.truncf %45 : vector<8x8xf32> to vector<8x8xbf16>
    %cst_18 = arith.constant dense<0.000000e+00> : vector<8x8xf32>
    %47 = tpu.matmul %46, %35, %cst_18 {dimension_numbers = #tpu.dot_dimension_numbers<[1], [0], [0], [1], [0, 0, 1, 1], [], []>} : vector<8x8xbf16>, vector<8x8xbf16>, vector<8x8xf32> -> vector<8x8xf32>
    %c0_19 = arith.constant 0 : index
    %c0_20 = arith.constant 0 : index
    %48 = vector.load %arg17[%c0_19, %c0_20] : memref<8x32xf32, #tpu.memory_space<vmem>>, vector<8x8xf32>
    tpu.vector_store %arg17[%c0_19, %c0_20], %47 {strides = array<i32>} : memref<8x32xf32, #tpu.memory_space<vmem>>, vector<8x8xf32>,
    %49 = vector.extract_strided_slice %32 {offsets = [0, 8], sizes = [8, 8], strides = [1, 1]} : vector<8x96xbf16> to vector<8x8xbf16>
    %50 = vector.extract_strided_slice %32 {offsets = [0, 40], sizes = [8, 8], strides = [1, 1]} : vector<8x96xbf16> to vector<8x8xbf16>
    %51 = vector.extract_strided_slice %32 {offsets = [0, 72], sizes = [8, 8], strides = [1, 1]} : vector<8x96xbf16> to vector<8x8xbf16>
    %cst_21 = arith.constant dense<0.000000e+00> : vector<8x8xf32>
    %52 = tpu.matmul %49, %50, %cst_21 {dimension_numbers = #tpu.dot_dimension_numbers<[1], [1], [0], [0], [0, 0, 1, 0], [], []>} : vector<8x8xbf16>, vector<8x8xbf16>, vector<8x8xf32> -> vector<8x8xf32>
    %cst_22 = arith.constant dense<0xFF800000> : vector<8xf32>
    %53 = vector.multi_reduction <maximumf>, %52, %cst_22 [1] : vector<8x8xf32> to vector<8xf32>
    %54 = vector.shape_cast %53 : vector<8xf32> to vector<8x1xf32>
    %55 = vector.broadcast %54 : vector<8x1xf32> to vector<8x8xf32>
    %56 = arith.subf %52, %55 : vector<8x8xf32>
    %57 = math.exp %56 : vector<8x8xf32>
    %cst_23 = arith.constant dense<0.000000e+00> : vector<8xf32>
    %58 = vector.multi_reduction <add>, %57, %cst_23 [1] : vector<8x8xf32> to vector<8xf32>
    %59 = vector.shape_cast %58 : vector<8xf32> to vector<8x1xf32>
    %60 = vector.broadcast %59 : vector<8x1xf32> to vector<8x8xf32>
    %61 = arith.divf %57, %60 : vector<8x8xf32>
    %62 = arith.truncf %61 : vector<8x8xf32> to vector<8x8xbf16>
    %cst_24 = arith.constant dense<0.000000e+00> : vector<8x8xf32>
    %63 = tpu.matmul %62, %51, %cst_24 {dimension_numbers = #tpu.dot_dimension_numbers<[1], [0], [0], [1], [0, 0, 1, 1], [], []>} : vector<8x8xbf16>, vector<8x8xbf16>, vector<8x8xf32> -> vector<8x8xf32>
    %c0_25 = arith.constant 0 : index
    %c8 = arith.constant 8 : index
    %64 = vector.load %arg17[%c0_25, %c8] : memref<8x32xf32, #tpu.memory_space<vmem>>, vector<8x8xf32>
    tpu.vector_store %arg17[%c0_25, %c8], %63 {strides = array<i32>} : memref<8x32xf32, #tpu.memory_space<vmem>>, vector<8x8xf32>,
    %65 = vector.extract_strided_slice %32 {offsets = [0, 16], sizes = [8, 8], strides = [1, 1]} : vector<8x96xbf16> to vector<8x8xbf16>
    %66 = vector.extract_strided_slice %32 {offsets = [0, 48], sizes = [8, 8], strides = [1, 1]} : vector<8x96xbf16> to vector<8x8xbf16>
    %67 = vector.extract_strided_slice %32 {offsets = [0, 80], sizes = [8, 8], strides = [1, 1]} : vector<8x96xbf16> to vector<8x8xbf16>
    %cst_26 = arith.constant dense<0.000000e+00> : vector<8x8xf32>
    %68 = tpu.matmul %65, %66, %cst_26 {dimension_numbers = #tpu.dot_dimension_numbers<[1], [1], [0], [0], [0, 0, 1, 0], [], []>} : vector<8x8xbf16>, vector<8x8xbf16>, vector<8x8xf32> -> vector<8x8xf32>
    %cst_27 = arith.constant dense<0xFF800000> : vector<8xf32>
    %69 = vector.multi_reduction <maximumf>, %68, %cst_27 [1] : vector<8x8xf32> to vector<8xf32>
    %70 = vector.shape_cast %69 : vector<8xf32> to vector<8x1xf32>
    %71 = vector.broadcast %70 : vector<8x1xf32> to vector<8x8xf32>
    %72 = arith.subf %68, %71 : vector<8x8xf32>
    %73 = math.exp %72 : vector<8x8xf32>
    %cst_28 = arith.constant dense<0.000000e+00> : vector<8xf32>
    %74 = vector.multi_reduction <add>, %73, %cst_28 [1] : vector<8x8xf32> to vector<8xf32>
    %75 = vector.shape_cast %74 : vector<8xf32> to vector<8x1xf32>
    %76 = vector.broadcast %75 : vector<8x1xf32> to vector<8x8xf32>
    %77 = arith.divf %73, %76 : vector<8x8xf32>
    %78 = arith.truncf %77 : vector<8x8xf32> to vector<8x8xbf16>
    %cst_29 = arith.constant dense<0.000000e+00> : vector<8x8xf32>
    %79 = tpu.matmul %78, %67, %cst_29 {dimension_numbers = #tpu.dot_dimension_numbers<[1], [0], [0], [1], [0, 0, 1, 1], [], []>} : vector<8x8xbf16>, vector<8x8xbf16>, vector<8x8xf32> -> vector<8x8xf32>
    %c0_30 = arith.constant 0 : index
    %c16 = arith.constant 16 : index
    %80 = vector.load %arg17[%c0_30, %c16] : memref<8x32xf32, #tpu.memory_space<vmem>>, vector<8x8xf32>
    tpu.vector_store %arg17[%c0_30, %c16], %79 {strides = array<i32>} : memref<8x32xf32, #tpu.memory_space<vmem>>, vector<8x8xf32>,
    %81 = vector.extract_strided_slice %32 {offsets = [0, 24], sizes = [8, 8], strides = [1, 1]} : vector<8x96xbf16> to vector<8x8xbf16>
    %82 = vector.extract_strided_slice %32 {offsets = [0, 56], sizes = [8, 8], strides = [1, 1]} : vector<8x96xbf16> to vector<8x8xbf16>
    %83 = vector.extract_strided_slice %32 {offsets = [0, 88], sizes = [8, 8], strides = [1, 1]} : vector<8x96xbf16> to vector<8x8xbf16>
    %cst_31 = arith.constant dense<0.000000e+00> : vector<8x8xf32>
    %84 = tpu.matmul %81, %82, %cst_31 {dimension_numbers = #tpu.dot_dimension_numbers<[1], [1], [0], [0], [0, 0, 1, 0], [], []>} : vector<8x8xbf16>, vector<8x8xbf16>, vector<8x8xf32> -> vector<8x8xf32>
    %cst_32 = arith.constant dense<0xFF800000> : vector<8xf32>
    %85 = vector.multi_reduction <maximumf>, %84, %cst_32 [1] : vector<8x8xf32> to vector<8xf32>
    %86 = vector.shape_cast %85 : vector<8xf32> to vector<8x1xf32>
    %87 = vector.broadcast %86 : vector<8x1xf32> to vector<8x8xf32>
    %88 = arith.subf %84, %87 : vector<8x8xf32>
    %89 = math.exp %88 : vector<8x8xf32>
    %cst_33 = arith.constant dense<0.000000e+00> : vector<8xf32>
    %90 = vector.multi_reduction <add>, %89, %cst_33 [1] : vector<8x8xf32> to vector<8xf32>
    %91 = vector.shape_cast %90 : vector<8xf32> to vector<8x1xf32>
    %92 = vector.broadcast %91 : vector<8x1xf32> to vector<8x8xf32>
    %93 = arith.divf %89, %92 : vector<8x8xf32>
    %94 = arith.truncf %93 : vector<8x8xf32> to vector<8x8xbf16>
    %cst_34 = arith.constant dense<0.000000e+00> : vector<8x8xf32>
    %95 = tpu.matmul %94, %83, %cst_34 {dimension_numbers = #tpu.dot_dimension_numbers<[1], [0], [0], [1], [0, 0, 1, 1], [], []>} : vector<8x8xbf16>, vector<8x8xbf16>, vector<8x8xf32> -> vector<8x8xf32>
    %c0_35 = arith.constant 0 : index
    %c24 = arith.constant 24 : index
    %96 = vector.load %arg17[%c0_35, %c24] : memref<8x32xf32, #tpu.memory_space<vmem>>, vector<8x8xf32>
    tpu.vector_store %arg17[%c0_35, %c24], %95 {strides = array<i32>} : memref<8x32xf32, #tpu.memory_space<vmem>>, vector<8x8xf32>,
    %c0_36 = arith.constant 0 : index
    %c0_37 = arith.constant 0 : index
    %97 = vector.load %arg17[%c0_36, %c0_37] : memref<8x32xf32, #tpu.memory_space<vmem>>, vector<8x32xf32>
    %98 = arith.truncf %97 : vector<8x32xf32> to vector<8x32xbf16>
    %c0_38 = arith.constant 0 : index
    %c0_39 = arith.constant 0 : index
    %99 = vector.load %arg6[%c0_38, %c0_39] : memref<32x32xbf16, #tpu.memory_space<vmem>>, vector<32x32xbf16>
    %cst_40 = arith.constant dense<0.000000e+00> : vector<8x32xf32>
    %100 = tpu.matmul %98, %99, %cst_40 {dimension_numbers = #tpu.dot_dimension_numbers<[1], [0], [0], [1], [0, 0, 1, 1], [], []>} : vector<8x32xbf16>, vector<32x32xbf16>, vector<8x32xf32> -> vector<8x32xf32>
    %c0_41 = arith.constant 0 : index
    %c0_42 = arith.constant 0 : index
    %101 = vector.load %arg7[%c0_41, %c0_42] : memref<1x32xf32, #tpu.memory_space<vmem>>, vector<1x32xf32>
    %102 = vector.broadcast %101 : vector<1x32xf32> to vector<8x32xf32>
    %103 = arith.addf %100, %102 : vector<8x32xf32>
    %104 = arith.addf %1, %103 : vector<8x32xf32>
    %c0_43 = arith.constant 0 : index
    %c0_44 = arith.constant 0 : index
    %c0_45 = arith.constant 0 : index
    %105 = vector.load %arg13[%c0_43, %c0_44, %c0_45] : memref<1x8x32xf32, #tpu.memory_space<vmem>>, vector<1x8x32xf32>
    %106 = vector.shape_cast %105 : vector<1x8x32xf32> to vector<8x32xf32>
    %107 = vector.shape_cast %104 : vector<8x32xf32> to vector<1x8x32xf32>
    tpu.vector_store %arg13[%c0_43, %c0_44, %c0_45], %107 {strides = array<i32>} : memref<1x8x32xf32, #tpu.memory_space<vmem>>, vector<1x8x32xf32>,
    %c0_46 = arith.constant 0 : index
    %c0_47 = arith.constant 0 : index
    %108 = vector.load %arg8[%c0_46, %c0_47] : memref<1x32xf32, #tpu.memory_space<vmem>>, vector<1x32xf32>
    %c0_48 = arith.constant 0 : index
    %c0_49 = arith.constant 0 : index
    %109 = vector.load %arg9[%c0_48, %c0_49] : memref<1x32xf32, #tpu.memory_space<vmem>>, vector<1x32xf32>
    %cst_50 = arith.constant dense<0.000000e+00> : vector<8xf32>
    %110 = vector.multi_reduction <add>, %104, %cst_50 [1] : vector<8x32xf32> to vector<8xf32>
    %111 = vector.shape_cast %110 : vector<8xf32> to vector<8x1xf32>
    %cst_51 = arith.constant 3.200000e+01 : f32
    %112 = vector.broadcast %cst_51 : f32 to vector<8x1xf32>
    %113 = arith.divf %111, %112 : vector<8x1xf32>
    %114 = vector.broadcast %113 : vector<8x1xf32> to vector<8x32xf32>
    %115 = arith.subf %104, %114 : vector<8x32xf32>
    %116 = arith.mulf %115, %115 : vector<8x32xf32>
    %cst_52 = arith.constant dense<0.000000e+00> : vector<8xf32>
    %117 = vector.multi_reduction <add>, %116, %cst_52 [1] : vector<8x32xf32> to vector<8xf32>
    %118 = vector.shape_cast %117 : vector<8xf32> to vector<8x1xf32>
    %cst_53 = arith.constant 3.200000e+01 : f32
    %119 = vector.broadcast %cst_53 : f32 to vector<8x1xf32>
    %120 = arith.divf %118, %119 : vector<8x1xf32>
    %121 = vector.broadcast %113 : vector<8x1xf32> to vector<8x32xf32>
    %122 = arith.subf %104, %121 : vector<8x32xf32>
    %cst_54 = arith.constant 9.99999974E-6 : f32
    %123 = vector.broadcast %cst_54 : f32 to vector<8x1xf32>
    %124 = arith.addf %120, %123 : vector<8x1xf32>
    %125 = math.rsqrt %124 : vector<8x1xf32>
    %126 = vector.broadcast %125 : vector<8x1xf32> to vector<8x32xf32>
    %127 = arith.mulf %122, %126 : vector<8x32xf32>
    %128 = vector.broadcast %108 : vector<1x32xf32> to vector<8x32xf32>
    %129 = arith.mulf %127, %128 : vector<8x32xf32>
    %130 = vector.broadcast %109 : vector<1x32xf32> to vector<8x32xf32>
    %131 = arith.addf %129, %130 : vector<8x32xf32>
    %132 = arith.truncf %131 : vector<8x32xf32> to vector<8x32xbf16>
    %c0_55 = arith.constant 0 : index
    %c0_56 = arith.constant 0 : index
    %133 = vector.load %arg10[%c0_55, %c0_56] : memref<32x64xbf16, #tpu.memory_space<vmem>>, vector<32x64xbf16>
    %cst_57 = arith.constant dense<0.000000e+00> : vector<8x64xf32>
    %134 = tpu.matmul %132, %133, %cst_57 {dimension_numbers = #tpu.dot_dimension_numbers<[1], [0], [0], [1], [0, 0, 1, 1], [], []>} : vector<8x32xbf16>, vector<32x64xbf16>, vector<8x64xf32> -> vector<8x64xf32>
    %c0_58 = arith.constant 0 : index
    %c0_59 = arith.constant 0 : index
    %135 = vector.load %arg11[%c0_58, %c0_59] : memref<1x64xf32, #tpu.memory_space<vmem>>, vector<1x64xf32>
    %136 = vector.broadcast %135 : vector<1x64xf32> to vector<8x64xf32>
    %137 = arith.addf %134, %136 : vector<8x64xf32>
    %138 = vector.extract_strided_slice %137 {offsets = [0, 0], sizes = [8, 32], strides = [1, 1]} : vector<8x64xf32> to vector<8x32xf32>
    %139 = vector.extract_strided_slice %137 {offsets = [0, 32], sizes = [8, 32], strides = [1, 1]} : vector<8x64xf32> to vector<8x32xf32>
    %140 = arith.negf %139 : vector<8x32xf32>
    %141 = math.exp %140 : vector<8x32xf32>
    %cst_60 = arith.constant 1.000000e+00 : f32
    %142 = vector.broadcast %cst_60 : f32 to vector<8x32xf32>
    %143 = arith.addf %142, %141 : vector<8x32xf32>
    %144 = arith.divf %142, %143 : vector<8x32xf32>
    %145 = arith.mulf %138, %144 : vector<8x32xf32>
    %c0_61 = arith.constant 0 : index
    %c0_62 = arith.constant 0 : index
    %146 = vector.load %arg12[%c0_61, %c0_62] : memref<31x32xf32, #tpu.memory_space<vmem>>, vector<31x32xf32>
    %147 = tpu.iota {dimensions = array<i32: 0>} : vector<8x1xi32>
    %cst_63 = arith.constant 0.000000e+00 : f32
    %148 = vector.broadcast %cst_63 : f32 to vector<8x32xf32>
    %c7_i32 = arith.constant 7 : i32
    %149 = tpu.dynamic_rotate %145 by %c7_i32 dim 0 : vector<8x32xf32>, i32 -> vector<8x32xf32>
    %c-7_i32 = arith.constant -7 : i32
    %150 = vector.broadcast %c-7_i32 : i32 to vector<8x1xi32>
    %151 = arith.addi %147, %150 : vector<8x1xi32>
    %c0_i32 = arith.constant 0 : i32
    %152 = vector.broadcast %c0_i32 : i32 to vector<8x1xi32>
    %153 = arith.cmpi sge, %151, %152 : vector<8x1xi32>
    %c-7_i32_64 = arith.constant -7 : i32
    %154 = vector.broadcast %c-7_i32_64 : i32 to vector<8x1xi32>
    %155 = arith.addi %147, %154 : vector<8x1xi32>
    %c8_i32 = arith.constant 8 : i32
    %156 = vector.broadcast %c8_i32 : i32 to vector<8x1xi32>
    %157 = arith.cmpi slt, %155, %156 : vector<8x1xi32>
    %158 = arith.andi %153, %157 : vector<8x1xi1>
    %cst_65 = arith.constant 0.000000e+00 : f32
    %159 = vector.shape_cast %158 : vector<8x1xi1> to vector<8x1xi1>
    %160 = vector.broadcast %159 : vector<8x1xi1> to vector<8x32xi1>
    %161 = vector.broadcast %cst_65 : f32 to vector<8x32xf32>
    %162 = arith.select %160, %149, %161 : vector<8x32xi1>, vector<8x32xf32>
    %163 = vector.extract_strided_slice %146 {offsets = [8, 0], sizes = [1, 32], strides = [1, 1]} : vector<31x32xf32> to vector<1x32xf32>
    %164 = vector.broadcast %163 : vector<1x32xf32> to vector<8x32xf32>
    %165 = arith.mulf %162, %164 : vector<8x32xf32>
    %166 = arith.addf %148, %165 : vector<8x32xf32>
    %c6_i32 = arith.constant 6 : i32
    %167 = tpu.dynamic_rotate %145 by %c6_i32 dim 0 : vector<8x32xf32>, i32 -> vector<8x32xf32>
    %c-6_i32 = arith.constant -6 : i32
    %168 = vector.broadcast %c-6_i32 : i32 to vector<8x1xi32>
    %169 = arith.addi %147, %168 : vector<8x1xi32>
    %c0_i32_66 = arith.constant 0 : i32
    %170 = vector.broadcast %c0_i32_66 : i32 to vector<8x1xi32>
    %171 = arith.cmpi sge, %169, %170 : vector<8x1xi32>
    %c-6_i32_67 = arith.constant -6 : i32
    %172 = vector.broadcast %c-6_i32_67 : i32 to vector<8x1xi32>
    %173 = arith.addi %147, %172 : vector<8x1xi32>
    %c8_i32_68 = arith.constant 8 : i32
    %174 = vector.broadcast %c8_i32_68 : i32 to vector<8x1xi32>
    %175 = arith.cmpi slt, %173, %174 : vector<8x1xi32>
    %176 = arith.andi %171, %175 : vector<8x1xi1>
    %cst_69 = arith.constant 0.000000e+00 : f32
    %177 = vector.shape_cast %176 : vector<8x1xi1> to vector<8x1xi1>
    %178 = vector.broadcast %177 : vector<8x1xi1> to vector<8x32xi1>
    %179 = vector.broadcast %cst_69 : f32 to vector<8x32xf32>
    %180 = arith.select %178, %167, %179 : vector<8x32xi1>, vector<8x32xf32>
    %181 = vector.extract_strided_slice %146 {offsets = [9, 0], sizes = [1, 32], strides = [1, 1]} : vector<31x32xf32> to vector<1x32xf32>
    %182 = vector.broadcast %181 : vector<1x32xf32> to vector<8x32xf32>
    %183 = arith.mulf %180, %182 : vector<8x32xf32>
    %184 = arith.addf %166, %183 : vector<8x32xf32>
    %c5_i32 = arith.constant 5 : i32
    %185 = tpu.dynamic_rotate %145 by %c5_i32 dim 0 : vector<8x32xf32>, i32 -> vector<8x32xf32>
    %c-5_i32 = arith.constant -5 : i32
    %186 = vector.broadcast %c-5_i32 : i32 to vector<8x1xi32>
    %187 = arith.addi %147, %186 : vector<8x1xi32>
    %c0_i32_70 = arith.constant 0 : i32
    %188 = vector.broadcast %c0_i32_70 : i32 to vector<8x1xi32>
    %189 = arith.cmpi sge, %187, %188 : vector<8x1xi32>
    %c-5_i32_71 = arith.constant -5 : i32
    %190 = vector.broadcast %c-5_i32_71 : i32 to vector<8x1xi32>
    %191 = arith.addi %147, %190 : vector<8x1xi32>
    %c8_i32_72 = arith.constant 8 : i32
    %192 = vector.broadcast %c8_i32_72 : i32 to vector<8x1xi32>
    %193 = arith.cmpi slt, %191, %192 : vector<8x1xi32>
    %194 = arith.andi %189, %193 : vector<8x1xi1>
    %cst_73 = arith.constant 0.000000e+00 : f32
    %195 = vector.shape_cast %194 : vector<8x1xi1> to vector<8x1xi1>
    %196 = vector.broadcast %195 : vector<8x1xi1> to vector<8x32xi1>
    %197 = vector.broadcast %cst_73 : f32 to vector<8x32xf32>
    %198 = arith.select %196, %185, %197 : vector<8x32xi1>, vector<8x32xf32>
    %199 = vector.extract_strided_slice %146 {offsets = [10, 0], sizes = [1, 32], strides = [1, 1]} : vector<31x32xf32> to vector<1x32xf32>
    %200 = vector.broadcast %199 : vector<1x32xf32> to vector<8x32xf32>
    %201 = arith.mulf %198, %200 : vector<8x32xf32>
    %202 = arith.addf %184, %201 : vector<8x32xf32>
    %c4_i32 = arith.constant 4 : i32
    %203 = tpu.dynamic_rotate %145 by %c4_i32 dim 0 : vector<8x32xf32>, i32 -> vector<8x32xf32>
    %c-4_i32 = arith.constant -4 : i32
    %204 = vector.broadcast %c-4_i32 : i32 to vector<8x1xi32>
    %205 = arith.addi %147, %204 : vector<8x1xi32>
    %c0_i32_74 = arith.constant 0 : i32
    %206 = vector.broadcast %c0_i32_74 : i32 to vector<8x1xi32>
    %207 = arith.cmpi sge, %205, %206 : vector<8x1xi32>
    %c-4_i32_75 = arith.constant -4 : i32
    %208 = vector.broadcast %c-4_i32_75 : i32 to vector<8x1xi32>
    %209 = arith.addi %147, %208 : vector<8x1xi32>
    %c8_i32_76 = arith.constant 8 : i32
    %210 = vector.broadcast %c8_i32_76 : i32 to vector<8x1xi32>
    %211 = arith.cmpi slt, %209, %210 : vector<8x1xi32>
    %212 = arith.andi %207, %211 : vector<8x1xi1>
    %cst_77 = arith.constant 0.000000e+00 : f32
    %213 = vector.shape_cast %212 : vector<8x1xi1> to vector<8x1xi1>
    %214 = vector.broadcast %213 : vector<8x1xi1> to vector<8x32xi1>
    %215 = vector.broadcast %cst_77 : f32 to vector<8x32xf32>
    %216 = arith.select %214, %203, %215 : vector<8x32xi1>, vector<8x32xf32>
    %217 = vector.extract_strided_slice %146 {offsets = [11, 0], sizes = [1, 32], strides = [1, 1]} : vector<31x32xf32> to vector<1x32xf32>
    %218 = vector.broadcast %217 : vector<1x32xf32> to vector<8x32xf32>
    %219 = arith.mulf %216, %218 : vector<8x32xf32>
    %220 = arith.addf %202, %219 : vector<8x32xf32>
    %c3_i32 = arith.constant 3 : i32
    %221 = tpu.dynamic_rotate %145 by %c3_i32 dim 0 : vector<8x32xf32>, i32 -> vector<8x32xf32>
    %c-3_i32 = arith.constant -3 : i32
    %222 = vector.broadcast %c-3_i32 : i32 to vector<8x1xi32>
    %223 = arith.addi %147, %222 : vector<8x1xi32>
    %c0_i32_78 = arith.constant 0 : i32
    %224 = vector.broadcast %c0_i32_78 : i32 to vector<8x1xi32>
    %225 = arith.cmpi sge, %223, %224 : vector<8x1xi32>
    %c-3_i32_79 = arith.constant -3 : i32
    %226 = vector.broadcast %c-3_i32_79 : i32 to vector<8x1xi32>
    %227 = arith.addi %147, %226 : vector<8x1xi32>
    %c8_i32_80 = arith.constant 8 : i32
    %228 = vector.broadcast %c8_i32_80 : i32 to vector<8x1xi32>
    %229 = arith.cmpi slt, %227, %228 : vector<8x1xi32>
    %230 = arith.andi %225, %229 : vector<8x1xi1>
    %cst_81 = arith.constant 0.000000e+00 : f32
    %231 = vector.shape_cast %230 : vector<8x1xi1> to vector<8x1xi1>
    %232 = vector.broadcast %231 : vector<8x1xi1> to vector<8x32xi1>
    %233 = vector.broadcast %cst_81 : f32 to vector<8x32xf32>
    %234 = arith.select %232, %221, %233 : vector<8x32xi1>, vector<8x32xf32>
    %235 = vector.extract_strided_slice %146 {offsets = [12, 0], sizes = [1, 32], strides = [1, 1]} : vector<31x32xf32> to vector<1x32xf32>
    %236 = vector.broadcast %235 : vector<1x32xf32> to vector<8x32xf32>
    %237 = arith.mulf %234, %236 : vector<8x32xf32>
    %238 = arith.addf %220, %237 : vector<8x32xf32>
    %c2_i32 = arith.constant 2 : i32
    %239 = tpu.dynamic_rotate %145 by %c2_i32 dim 0 : vector<8x32xf32>, i32 -> vector<8x32xf32>
    %c-2_i32 = arith.constant -2 : i32
    %240 = vector.broadcast %c-2_i32 : i32 to vector<8x1xi32>
    %241 = arith.addi %147, %240 : vector<8x1xi32>
    %c0_i32_82 = arith.constant 0 : i32
    %242 = vector.broadcast %c0_i32_82 : i32 to vector<8x1xi32>
    %243 = arith.cmpi sge, %241, %242 : vector<8x1xi32>
    %c-2_i32_83 = arith.constant -2 : i32
    %244 = vector.broadcast %c-2_i32_83 : i32 to vector<8x1xi32>
    %245 = arith.addi %147, %244 : vector<8x1xi32>
    %c8_i32_84 = arith.constant 8 : i32
    %246 = vector.broadcast %c8_i32_84 : i32 to vector<8x1xi32>
    %247 = arith.cmpi slt, %245, %246 : vector<8x1xi32>
    %248 = arith.andi %243, %247 : vector<8x1xi1>
    %cst_85 = arith.constant 0.000000e+00 : f32
    %249 = vector.shape_cast %248 : vector<8x1xi1> to vector<8x1xi1>
    %250 = vector.broadcast %249 : vector<8x1xi1> to vector<8x32xi1>
    %251 = vector.broadcast %cst_85 : f32 to vector<8x32xf32>
    %252 = arith.select %250, %239, %251 : vector<8x32xi1>, vector<8x32xf32>
    %253 = vector.extract_strided_slice %146 {offsets = [13, 0], sizes = [1, 32], strides = [1, 1]} : vector<31x32xf32> to vector<1x32xf32>
    %254 = vector.broadcast %253 : vector<1x32xf32> to vector<8x32xf32>
    %255 = arith.mulf %252, %254 : vector<8x32xf32>
    %256 = arith.addf %238, %255 : vector<8x32xf32>
    %c1_i32 = arith.constant 1 : i32
    %257 = tpu.dynamic_rotate %145 by %c1_i32 dim 0 : vector<8x32xf32>, i32 -> vector<8x32xf32>
    %c-1_i32 = arith.constant -1 : i32
    %258 = vector.broadcast %c-1_i32 : i32 to vector<8x1xi32>
    %259 = arith.addi %147, %258 : vector<8x1xi32>
    %c0_i32_86 = arith.constant 0 : i32
    %260 = vector.broadcast %c0_i32_86 : i32 to vector<8x1xi32>
    %261 = arith.cmpi sge, %259, %260 : vector<8x1xi32>
    %c-1_i32_87 = arith.constant -1 : i32
    %262 = vector.broadcast %c-1_i32_87 : i32 to vector<8x1xi32>
    %263 = arith.addi %147, %262 : vector<8x1xi32>
    %c8_i32_88 = arith.constant 8 : i32
    %264 = vector.broadcast %c8_i32_88 : i32 to vector<8x1xi32>
    %265 = arith.cmpi slt, %263, %264 : vector<8x1xi32>
    %266 = arith.andi %261, %265 : vector<8x1xi1>
    %cst_89 = arith.constant 0.000000e+00 : f32
    %267 = vector.shape_cast %266 : vector<8x1xi1> to vector<8x1xi1>
    %268 = vector.broadcast %267 : vector<8x1xi1> to vector<8x32xi1>
    %269 = vector.broadcast %cst_89 : f32 to vector<8x32xf32>
    %270 = arith.select %268, %257, %269 : vector<8x32xi1>, vector<8x32xf32>
    %271 = vector.extract_strided_slice %146 {offsets = [14, 0], sizes = [1, 32], strides = [1, 1]} : vector<31x32xf32> to vector<1x32xf32>
    %272 = vector.broadcast %271 : vector<1x32xf32> to vector<8x32xf32>
    %273 = arith.mulf %270, %272 : vector<8x32xf32>
    %274 = arith.addf %256, %273 : vector<8x32xf32>
    %275 = vector.extract_strided_slice %146 {offsets = [15, 0], sizes = [1, 32], strides = [1, 1]} : vector<31x32xf32> to vector<1x32xf32>
    %276 = vector.broadcast %275 : vector<1x32xf32> to vector<8x32xf32>
    %277 = arith.mulf %145, %276 : vector<8x32xf32>
    %278 = arith.addf %274, %277 : vector<8x32xf32>
    %c7_i32_90 = arith.constant 7 : i32
    %279 = tpu.dynamic_rotate %145 by %c7_i32_90 dim 0 : vector<8x32xf32>, i32 -> vector<8x32xf32>
    %c1_i32_91 = arith.constant 1 : i32
    %280 = vector.broadcast %c1_i32_91 : i32 to vector<8x1xi32>
    %281 = arith.addi %147, %280 : vector<8x1xi32>
    %c0_i32_92 = arith.constant 0 : i32
    %282 = vector.broadcast %c0_i32_92 : i32 to vector<8x1xi32>
    %283 = arith.cmpi sge, %281, %282 : vector<8x1xi32>
    %c1_i32_93 = arith.constant 1 : i32
    %284 = vector.broadcast %c1_i32_93 : i32 to vector<8x1xi32>
    %285 = arith.addi %147, %284 : vector<8x1xi32>
    %c8_i32_94 = arith.constant 8 : i32
    %286 = vector.broadcast %c8_i32_94 : i32 to vector<8x1xi32>
    %287 = arith.cmpi slt, %285, %286 : vector<8x1xi32>
    %288 = arith.andi %283, %287 : vector<8x1xi1>
    %cst_95 = arith.constant 0.000000e+00 : f32
    %289 = vector.shape_cast %288 : vector<8x1xi1> to vector<8x1xi1>
    %290 = vector.broadcast %289 : vector<8x1xi1> to vector<8x32xi1>
    %291 = vector.broadcast %cst_95 : f32 to vector<8x32xf32>
    %292 = arith.select %290, %279, %291 : vector<8x32xi1>, vector<8x32xf32>
    %293 = vector.extract_strided_slice %146 {offsets = [16, 0], sizes = [1, 32], strides = [1, 1]} : vector<31x32xf32> to vector<1x32xf32>
    %294 = vector.broadcast %293 : vector<1x32xf32> to vector<8x32xf32>
    %295 = arith.mulf %292, %294 : vector<8x32xf32>
    %296 = arith.addf %278, %295 : vector<8x32xf32>
    %c6_i32_96 = arith.constant 6 : i32
    %297 = tpu.dynamic_rotate %145 by %c6_i32_96 dim 0 : vector<8x32xf32>, i32 -> vector<8x32xf32>
    %c2_i32_97 = arith.constant 2 : i32
    %298 = vector.broadcast %c2_i32_97 : i32 to vector<8x1xi32>
    %299 = arith.addi %147, %298 : vector<8x1xi32>
    %c0_i32_98 = arith.constant 0 : i32
    %300 = vector.broadcast %c0_i32_98 : i32 to vector<8x1xi32>
    %301 = arith.cmpi sge, %299, %300 : vector<8x1xi32>
    %c2_i32_99 = arith.constant 2 : i32
    %302 = vector.broadcast %c2_i32_99 : i32 to vector<8x1xi32>
    %303 = arith.addi %147, %302 : vector<8x1xi32>
    %c8_i32_100 = arith.constant 8 : i32
    %304 = vector.broadcast %c8_i32_100 : i32 to vector<8x1xi32>
    %305 = arith.cmpi slt, %303, %304 : vector<8x1xi32>
    %306 = arith.andi %301, %305 : vector<8x1xi1>
    %cst_101 = arith.constant 0.000000e+00 : f32
    %307 = vector.shape_cast %306 : vector<8x1xi1> to vector<8x1xi1>
    %308 = vector.broadcast %307 : vector<8x1xi1> to vector<8x32xi1>
    %309 = vector.broadcast %cst_101 : f32 to vector<8x32xf32>
    %310 = arith.select %308, %297, %309 : vector<8x32xi1>, vector<8x32xf32>
    %311 = vector.extract_strided_slice %146 {offsets = [17, 0], sizes = [1, 32], strides = [1, 1]} : vector<31x32xf32> to vector<1x32xf32>
    %312 = vector.broadcast %311 : vector<1x32xf32> to vector<8x32xf32>
    %313 = arith.mulf %310, %312 : vector<8x32xf32>
    %314 = arith.addf %296, %313 : vector<8x32xf32>
    %c5_i32_102 = arith.constant 5 : i32
    %315 = tpu.dynamic_rotate %145 by %c5_i32_102 dim 0 : vector<8x32xf32>, i32 -> vector<8x32xf32>
    %c3_i32_103 = arith.constant 3 : i32
    %316 = vector.broadcast %c3_i32_103 : i32 to vector<8x1xi32>
    %317 = arith.addi %147, %316 : vector<8x1xi32>
    %c0_i32_104 = arith.constant 0 : i32
    %318 = vector.broadcast %c0_i32_104 : i32 to vector<8x1xi32>
    %319 = arith.cmpi sge, %317, %318 : vector<8x1xi32>
    %c3_i32_105 = arith.constant 3 : i32
    %320 = vector.broadcast %c3_i32_105 : i32 to vector<8x1xi32>
    %321 = arith.addi %147, %320 : vector<8x1xi32>
    %c8_i32_106 = arith.constant 8 : i32
    %322 = vector.broadcast %c8_i32_106 : i32 to vector<8x1xi32>
    %323 = arith.cmpi slt, %321, %322 : vector<8x1xi32>
    %324 = arith.andi %319, %323 : vector<8x1xi1>
    %cst_107 = arith.constant 0.000000e+00 : f32
    %325 = vector.shape_cast %324 : vector<8x1xi1> to vector<8x1xi1>
    %326 = vector.broadcast %325 : vector<8x1xi1> to vector<8x32xi1>
    %327 = vector.broadcast %cst_107 : f32 to vector<8x32xf32>
    %328 = arith.select %326, %315, %327 : vector<8x32xi1>, vector<8x32xf32>
    %329 = vector.extract_strided_slice %146 {offsets = [18, 0], sizes = [1, 32], strides = [1, 1]} : vector<31x32xf32> to vector<1x32xf32>
    %330 = vector.broadcast %329 : vector<1x32xf32> to vector<8x32xf32>
    %331 = arith.mulf %328, %330 : vector<8x32xf32>
    %332 = arith.addf %314, %331 : vector<8x32xf32>
    %c4_i32_108 = arith.constant 4 : i32
    %333 = tpu.dynamic_rotate %145 by %c4_i32_108 dim 0 : vector<8x32xf32>, i32 -> vector<8x32xf32>
    %c4_i32_109 = arith.constant 4 : i32
    %334 = vector.broadcast %c4_i32_109 : i32 to vector<8x1xi32>
    %335 = arith.addi %147, %334 : vector<8x1xi32>
    %c0_i32_110 = arith.constant 0 : i32
    %336 = vector.broadcast %c0_i32_110 : i32 to vector<8x1xi32>
    %337 = arith.cmpi sge, %335, %336 : vector<8x1xi32>
    %c4_i32_111 = arith.constant 4 : i32
    %338 = vector.broadcast %c4_i32_111 : i32 to vector<8x1xi32>
    %339 = arith.addi %147, %338 : vector<8x1xi32>
    %c8_i32_112 = arith.constant 8 : i32
    %340 = vector.broadcast %c8_i32_112 : i32 to vector<8x1xi32>
    %341 = arith.cmpi slt, %339, %340 : vector<8x1xi32>
    %342 = arith.andi %337, %341 : vector<8x1xi1>
    %cst_113 = arith.constant 0.000000e+00 : f32
    %343 = vector.shape_cast %342 : vector<8x1xi1> to vector<8x1xi1>
    %344 = vector.broadcast %343 : vector<8x1xi1> to vector<8x32xi1>
    %345 = vector.broadcast %cst_113 : f32 to vector<8x32xf32>
    %346 = arith.select %344, %333, %345 : vector<8x32xi1>, vector<8x32xf32>
    %347 = vector.extract_strided_slice %146 {offsets = [19, 0], sizes = [1, 32], strides = [1, 1]} : vector<31x32xf32> to vector<1x32xf32>
    %348 = vector.broadcast %347 : vector<1x32xf32> to vector<8x32xf32>
    %349 = arith.mulf %346, %348 : vector<8x32xf32>
    %350 = arith.addf %332, %349 : vector<8x32xf32>
    %c3_i32_114 = arith.constant 3 : i32
    %351 = tpu.dynamic_rotate %145 by %c3_i32_114 dim 0 : vector<8x32xf32>, i32 -> vector<8x32xf32>
    %c5_i32_115 = arith.constant 5 : i32
    %352 = vector.broadcast %c5_i32_115 : i32 to vector<8x1xi32>
    %353 = arith.addi %147, %352 : vector<8x1xi32>
    %c0_i32_116 = arith.constant 0 : i32
    %354 = vector.broadcast %c0_i32_116 : i32 to vector<8x1xi32>
    %355 = arith.cmpi sge, %353, %354 : vector<8x1xi32>
    %c5_i32_117 = arith.constant 5 : i32
    %356 = vector.broadcast %c5_i32_117 : i32 to vector<8x1xi32>
    %357 = arith.addi %147, %356 : vector<8x1xi32>
    %c8_i32_118 = arith.constant 8 : i32
    %358 = vector.broadcast %c8_i32_118 : i32 to vector<8x1xi32>
    %359 = arith.cmpi slt, %357, %358 : vector<8x1xi32>
    %360 = arith.andi %355, %359 : vector<8x1xi1>
    %cst_119 = arith.constant 0.000000e+00 : f32
    %361 = vector.shape_cast %360 : vector<8x1xi1> to vector<8x1xi1>
    %362 = vector.broadcast %361 : vector<8x1xi1> to vector<8x32xi1>
    %363 = vector.broadcast %cst_119 : f32 to vector<8x32xf32>
    %364 = arith.select %362, %351, %363 : vector<8x32xi1>, vector<8x32xf32>
    %365 = vector.extract_strided_slice %146 {offsets = [20, 0], sizes = [1, 32], strides = [1, 1]} : vector<31x32xf32> to vector<1x32xf32>
    %366 = vector.broadcast %365 : vector<1x32xf32> to vector<8x32xf32>
    %367 = arith.mulf %364, %366 : vector<8x32xf32>
    %368 = arith.addf %350, %367 : vector<8x32xf32>
    %c2_i32_120 = arith.constant 2 : i32
    %369 = tpu.dynamic_rotate %145 by %c2_i32_120 dim 0 : vector<8x32xf32>, i32 -> vector<8x32xf32>
    %c6_i32_121 = arith.constant 6 : i32
    %370 = vector.broadcast %c6_i32_121 : i32 to vector<8x1xi32>
    %371 = arith.addi %147, %370 : vector<8x1xi32>
    %c0_i32_122 = arith.constant 0 : i32
    %372 = vector.broadcast %c0_i32_122 : i32 to vector<8x1xi32>
    %373 = arith.cmpi sge, %371, %372 : vector<8x1xi32>
    %c6_i32_123 = arith.constant 6 : i32
    %374 = vector.broadcast %c6_i32_123 : i32 to vector<8x1xi32>
    %375 = arith.addi %147, %374 : vector<8x1xi32>
    %c8_i32_124 = arith.constant 8 : i32
    %376 = vector.broadcast %c8_i32_124 : i32 to vector<8x1xi32>
    %377 = arith.cmpi slt, %375, %376 : vector<8x1xi32>
    %378 = arith.andi %373, %377 : vector<8x1xi1>
    %cst_125 = arith.constant 0.000000e+00 : f32
    %379 = vector.shape_cast %378 : vector<8x1xi1> to vector<8x1xi1>
    %380 = vector.broadcast %379 : vector<8x1xi1> to vector<8x32xi1>
    %381 = vector.broadcast %cst_125 : f32 to vector<8x32xf32>
    %382 = arith.select %380, %369, %381 : vector<8x32xi1>, vector<8x32xf32>
    %383 = vector.extract_strided_slice %146 {offsets = [21, 0], sizes = [1, 32], strides = [1, 1]} : vector<31x32xf32> to vector<1x32xf32>
    %384 = vector.broadcast %383 : vector<1x32xf32> to vector<8x32xf32>
    %385 = arith.mulf %382, %384 : vector<8x32xf32>
    %386 = arith.addf %368, %385 : vector<8x32xf32>
    %c1_i32_126 = arith.constant 1 : i32
    %387 = tpu.dynamic_rotate %145 by %c1_i32_126 dim 0 : vector<8x32xf32>, i32 -> vector<8x32xf32>
    %c7_i32_127 = arith.constant 7 : i32
    %388 = vector.broadcast %c7_i32_127 : i32 to vector<8x1xi32>
    %389 = arith.addi %147, %388 : vector<8x1xi32>
    %c0_i32_128 = arith.constant 0 : i32
    %390 = vector.broadcast %c0_i32_128 : i32 to vector<8x1xi32>
    %391 = arith.cmpi sge, %389, %390 : vector<8x1xi32>
    %c7_i32_129 = arith.constant 7 : i32
    %392 = vector.broadcast %c7_i32_129 : i32 to vector<8x1xi32>
    %393 = arith.addi %147, %392 : vector<8x1xi32>
    %c8_i32_130 = arith.constant 8 : i32
    %394 = vector.broadcast %c8_i32_130 : i32 to vector<8x1xi32>
    %395 = arith.cmpi slt, %393, %394 : vector<8x1xi32>
    %396 = arith.andi %391, %395 : vector<8x1xi1>
    %cst_131 = arith.constant 0.000000e+00 : f32
    %397 = vector.shape_cast %396 : vector<8x1xi1> to vector<8x1xi1>
    %398 = vector.broadcast %397 : vector<8x1xi1> to vector<8x32xi1>
    %399 = vector.broadcast %cst_131 : f32 to vector<8x32xf32>
    %400 = arith.select %398, %387, %399 : vector<8x32xi1>, vector<8x32xf32>
    %401 = vector.extract_strided_slice %146 {offsets = [22, 0], sizes = [1, 32], strides = [1, 1]} : vector<31x32xf32> to vector<1x32xf32>
    %402 = vector.broadcast %401 : vector<1x32xf32> to vector<8x32xf32>
    %403 = arith.mulf %400, %402 : vector<8x32xf32>
    %404 = arith.addf %386, %403 : vector<8x32xf32>
    %c0_132 = arith.constant 0 : index
    %c0_133 = arith.constant 0 : index
    %c0_134 = arith.constant 0 : index
    %405 = vector.load %arg14[%c0_132, %c0_133, %c0_134] : memref<1x8x32xf32, #tpu.memory_space<vmem>>, vector<1x8x32xf32>
    %406 = vector.shape_cast %405 : vector<1x8x32xf32> to vector<8x32xf32>
    %407 = vector.shape_cast %404 : vector<8x32xf32> to vector<1x8x32xf32>
    tpu.vector_store %arg14[%c0_132, %c0_133, %c0_134], %407 {strides = array<i32>} : memref<1x8x32xf32, #tpu.memory_space<vmem>>, vector<1x8x32xf32>,
    %cst_135 = arith.constant dense<0.000000e+00> : vector<32xf32>
    %408 = vector.multi_reduction <add>, %404, %cst_135 [0] : vector<8x32xf32> to vector<32xf32>
    %409 = vector.shape_cast %408 : vector<32xf32> to vector<1x32xf32>
    %c0_136 = arith.constant 0 : index
    %c0_137 = arith.constant 0 : index
    %c0_138 = arith.constant 0 : index
    %410 = vector.load %arg15[%c0_136, %c0_137, %c0_138] : memref<1x1x32xf32, #tpu.memory_space<vmem>>, vector<1x1x32xf32>
    %411 = vector.shape_cast %410 : vector<1x1x32xf32> to vector<1x32xf32>
    %412 = vector.shape_cast %409 : vector<1x32xf32> to vector<1x1x32xf32>
    tpu.vector_store %arg15[%c0_136, %c0_137, %c0_138], %412 {strides = array<i32>} : memref<1x1x32xf32, #tpu.memory_space<vmem>>, vector<1x1x32xf32>,
    %413 = arith.mulf %404, %404 : vector<8x32xf32>
    %cst_139 = arith.constant dense<0.000000e+00> : vector<32xf32>
    %414 = vector.multi_reduction <add>, %413, %cst_139 [0] : vector<8x32xf32> to vector<32xf32>
    %415 = vector.shape_cast %414 : vector<32xf32> to vector<1x32xf32>
    %c0_140 = arith.constant 0 : index
    %c0_141 = arith.constant 0 : index
    %c0_142 = arith.constant 0 : index
    %416 = vector.load %arg16[%c0_140, %c0_141, %c0_142] : memref<1x1x32xf32, #tpu.memory_space<vmem>>, vector<1x1x32xf32>
    %417 = vector.shape_cast %416 : vector<1x1x32xf32> to vector<1x32xf32>
    %418 = vector.shape_cast %415 : vector<1x32xf32> to vector<1x1x32xf32>
    tpu.vector_store %arg16[%c0_140, %c0_141, %c0_142], %418 {strides = array<i32>} : memref<1x1x32xf32, #tpu.memory_space<vmem>>, vector<1x1x32xf32>,
    return
  }
  func.func @transform_0(%arg0: i32) -> (i32, i32, i32) {
    %c0_i32 = arith.constant 0 : i32
    %c0_i32_0 = arith.constant 0 : i32
    %c0_i32_1 = arith.constant 0 : i32
    return %arg0, %c0_i32, %c0_i32_0 : i32, i32, i32
  }
  func.func @transform_1(%arg0: i32) -> (i32, i32) {
    %c0_i32 = arith.constant 0 : i32
    %c0_i32_0 = arith.constant 0 : i32
    %c0_i32_1 = arith.constant 0 : i32
    return %c0_i32, %c0_i32_0 : i32, i32
  }
  func.func @transform_2(%arg0: i32) -> (i32, i32) {
    %c0_i32 = arith.constant 0 : i32
    %c0_i32_0 = arith.constant 0 : i32
    %c0_i32_1 = arith.constant 0 : i32
    return %c0_i32, %c0_i32_0 : i32, i32
  }
  func.func @transform_3(%arg0: i32) -> (i32, i32) {
    %c0_i32 = arith.constant 0 : i32
    %c0_i32_0 = arith.constant 0 : i32
    %c0_i32_1 = arith.constant 0 : i32
    return %c0_i32, %c0_i32_0 : i32, i32
  }
  func.func @transform_4(%arg0: i32) -> (i32, i32) {
    %c0_i32 = arith.constant 0 : i32
    %c0_i32_0 = arith.constant 0 : i32
    %c0_i32_1 = arith.constant 0 : i32
    return %c0_i32, %c0_i32_0 : i32, i32
  }
  func.func @transform_5(%arg0: i32) -> (i32, i32) {
    %c0_i32 = arith.constant 0 : i32
    %c0_i32_0 = arith.constant 0 : i32
    %c0_i32_1 = arith.constant 0 : i32
    return %c0_i32, %c0_i32_0 : i32, i32
  }
  func.func @transform_6(%arg0: i32) -> (i32, i32) {
    %c0_i32 = arith.constant 0 : i32
    %c0_i32_0 = arith.constant 0 : i32
    %c0_i32_1 = arith.constant 0 : i32
    return %c0_i32, %c0_i32_0 : i32, i32
  }
  func.func @transform_7(%arg0: i32) -> (i32, i32) {
    %c0_i32 = arith.constant 0 : i32
    %c0_i32_0 = arith.constant 0 : i32
    %c0_i32_1 = arith.constant 0 : i32
    return %c0_i32, %c0_i32_0 : i32, i32
  }
  func.func @transform_8(%arg0: i32) -> (i32, i32) {
    %c0_i32 = arith.constant 0 : i32
    %c0_i32_0 = arith.constant 0 : i32
    %c0_i32_1 = arith.constant 0 : i32
    return %c0_i32, %c0_i32_0 : i32, i32
  }
  func.func @transform_9(%arg0: i32) -> (i32, i32) {
    %c0_i32 = arith.constant 0 : i32
    %c0_i32_0 = arith.constant 0 : i32
    %c0_i32_1 = arith.constant 0 : i32
    return %c0_i32, %c0_i32_0 : i32, i32
  }
  func.func @transform_10(%arg0: i32) -> (i32, i32) {
    %c0_i32 = arith.constant 0 : i32
    %c0_i32_0 = arith.constant 0 : i32
    %c0_i32_1 = arith.constant 0 : i32
    return %c0_i32, %c0_i32_0 : i32, i32
  }
  func.func @transform_11(%arg0: i32) -> (i32, i32) {
    %c0_i32 = arith.constant 0 : i32
    %c0_i32_0 = arith.constant 0 : i32
    %c0_i32_1 = arith.constant 0 : i32
    return %c0_i32, %c0_i32_0 : i32, i32
  }
  func.func @transform_12(%arg0: i32) -> (i32, i32, i32) {
    %c0_i32 = arith.constant 0 : i32
    %c0_i32_0 = arith.constant 0 : i32
    %c0_i32_1 = arith.constant 0 : i32
    return %arg0, %c0_i32, %c0_i32_0 : i32, i32, i32
  }
  func.func @transform_13(%arg0: i32) -> (i32, i32, i32) {
    %c0_i32 = arith.constant 0 : i32
    %c0_i32_0 = arith.constant 0 : i32
    %c0_i32_1 = arith.constant 0 : i32
    return %arg0, %c0_i32, %c0_i32_0 : i32, i32, i32
  }
  func.func @transform_14(%arg0: i32) -> (i32, i32, i32) {
    %c0_i32 = arith.constant 0 : i32
    %c0_i32_0 = arith.constant 0 : i32
    %c0_i32_1 = arith.constant 0 : i32
    return %arg0, %c0_i32, %c0_i32_0 : i32, i32, i32
  }
  func.func @transform_15(%arg0: i32) -> (i32, i32, i32) {
    %c0_i32 = arith.constant 0 : i32
    %c0_i32_0 = arith.constant 0 : i32
    %c0_i32_1 = arith.constant 0 : i32
    return %arg0, %c0_i32, %c0_i32_0 : i32, i32, i32
  }
}

</mosaic_0001>

<llo_original>
// kernel: middle_forward.3
$region0: #{middle_forward.3}
  #allocation0 [shape = 'u32[]', space=smem, size = 0x4, offset = 0x4, fixed_abs, tag = 'smem constant byte address 0x4 - core index']
  #allocation1 [shape = 'u32[144,128]{1,0:T(1,128)}', space=vmem, size = 0x12000, scoped, tag = 'internal scratch']
  %s0 = inlined_call_operand.vmem [shape: f32[16,32], index: 0, kind: input, shape index: {}]
  %s1 = inlined_call_operand.vmem [shape: f32[1,32], index: 1, kind: input, shape index: {}]
  %s2 = inlined_call_operand.vmem [shape: f32[1,32], index: 2, kind: input, shape index: {}]
  %s3 = inlined_call_operand.vmem [shape: bf16[32,128], index: 3, kind: input, shape index: {}]
  %s4 = inlined_call_operand.vmem [shape: f32[1,128], index: 4, kind: input, shape index: {}]
  %s5 = inlined_call_operand.vmem [shape: bf16[128,32], index: 5, kind: input, shape index: {}]
  %s6 = inlined_call_operand.vmem [shape: f32[1,32], index: 6, kind: input, shape index: {}]
  %s7 = inlined_call_operand.vmem [shape: f32[16,32], index: 7, kind: output, shape index: {}]
  %s8 = sld [smem:[#allocation0]]
  $region61: #{middle_forward.3} parent=0
    _
  %s10 = ssub.s32 1, %s8
  %s11 = scalar_select 0, %s10, %s8
  loop: start=0, step=1, limit=4
  $region2: #{middle_forward.3} parent=0 // loop_pre_header
    _
  $region3: #{middle_forward.3} parent=0 // loop_header
    %s13 = sphi 0, %s17
    %p14 = scmp.ge.s32.totalorder %s13, 4
    %s23 = sphi 0, %s25
    %s26 = sphi 0, %s23
    %s27 = sphi 0, %s26
    %s43 = sphi 0, %s27
    %s47 = sphi 0, %s47
    %s49 = sphi 0, %s47
    %s50 = sphi 0, %s49
    %s64 = sphi 0, %s50
    %s68 = sphi 0, %s68
    %s70 = sphi 0, %s68
    %s71 = sphi 0, %s70
    %s85 = sphi 0, %s71
    %s89 = sphi 0, %s89
    %s91 = sphi 0, %s89
    %s92 = sphi 0, %s91
    %s106 = sphi 0, %s92
    %s110 = sphi 0, %s110
    %s112 = sphi 0, %s110
    %s113 = sphi 0, %s112
    %s127 = sphi 0, %s113
    %s131 = sphi 0, %s131
    %s133 = sphi 0, %s131
    %s134 = sphi 0, %s133
    %s148 = sphi 0, %s134
    %s152 = sphi 0, %s152
    %s154 = sphi 0, %s152
    %s155 = sphi 0, %s154
    %s169 = sphi 0, %s155
    %s175 = sphi 0, %s177
    %s178 = sphi 0, %s175
    %s179 = sphi 0, %s178
    %s195 = sphi 0, %s179
  $region4: #{middle_forward.3} parent=0 // loop_header_branch
    %16 = sbr.rel (%p14) target = $region8
  $region5: #{middle_forward.3} parent=0 // loop_body
    %s18 = ssub.s32 %s13, 1
    %s19 = ssub.s32 %s13, 2
    %s20 = sadd.s32 %s13, 1
    %s21 = ssub.s32 %s13, %s20
    %p22 = scmp.eq.s32.totalorder %s21, 0
    %s24 = sadd.s32 %s23, 1
    %s25 = scalar_select %p22, %s23, %s24
    %p28 = pneg %p22
    %p29 = scmp.eq.s32.totalorder %s13, 1
    %p30 = por %p28, %p29
    %p31 = scmp.ne.s32.totalorder %s23, %s26
    %p32 = scmp.eq.s32.totalorder %s13, 0
    %p33 = por %p31, %p32
    %p34 = scmp.ne.s32.totalorder %s23, %s26
    %p35 = scmp.eq.s32.totalorder %s18, 1
    %p36 = por %p34, %p35
    %p37 = scmp.ne.s32.totalorder %s26, %s27
    %p38 = scmp.eq.s32.totalorder %s18, 0
    %p39 = por %p37, %p38
    %p40 = scmp.ne.s32.totalorder %s26, %s27
    %p41 = scmp.eq.s32.totalorder %s19, 1
    %p42 = por %p40, %p41
    %p44 = scmp.ne.s32.totalorder %s27, %s43
    %p45 = scmp.eq.s32.totalorder %s19, 0
    %p46 = por %p44, %p45
    %s48 = sadd.s32 %s47, 1
    %p51 = scmp.eq.s32.totalorder %s13, 1
    %p52 = scmp.ne.s32.totalorder %s47, %s49
    %p53 = scmp.eq.s32.totalorder %s13, 0
    %p54 = por %p52, %p53
    %p55 = scmp.ne.s32.totalorder %s47, %s49
    %p56 = scmp.eq.s32.totalorder %s18, 1
    %p57 = por %p55, %p56
    %p58 = scmp.ne.s32.totalorder %s49, %s50
    %p59 = scmp.eq.s32.totalorder %s18, 0
    %p60 = por %p58, %p59
    %p61 = scmp.ne.s32.totalorder %s49, %s50
    %p62 = scmp.eq.s32.totalorder %s19, 1
    %p63 = por %p61, %p62
    %p65 = scmp.ne.s32.totalorder %s50, %s64
    %p66 = scmp.eq.s32.totalorder %s19, 0
    %p67 = por %p65, %p66
    %s69 = sadd.s32 %s68, 1
    %p72 = scmp.eq.s32.totalorder %s13, 1
    %p73 = scmp.ne.s32.totalorder %s68, %s70
    %p74 = scmp.eq.s32.totalorder %s13, 0
    %p75 = por %p73, %p74
    %p76 = scmp.ne.s32.totalorder %s68, %s70
    %p77 = scmp.eq.s32.totalorder %s18, 1
    %p78 = por %p76, %p77
    %p79 = scmp.ne.s32.totalorder %s70, %s71
    %p80 = scmp.eq.s32.totalorder %s18, 0
    %p81 = por %p79, %p80
    %p82 = scmp.ne.s32.totalorder %s70, %s71
    %p83 = scmp.eq.s32.totalorder %s19, 1
    %p84 = por %p82, %p83
    %p86 = scmp.ne.s32.totalorder %s71, %s85
    %p87 = scmp.eq.s32.totalorder %s19, 0
    %p88 = por %p86, %p87
    %s90 = sadd.s32 %s89, 1
    %p93 = scmp.eq.s32.totalorder %s13, 1
    %p94 = scmp.ne.s32.totalorder %s89, %s91
    %p95 = scmp.eq.s32.totalorder %s13, 0
    %p96 = por %p94, %p95
    %p97 = scmp.ne.s32.totalorder %s89, %s91
    %p98 = scmp.eq.s32.totalorder %s18, 1
    %p99 = por %p97, %p98
    %p100 = scmp.ne.s32.totalorder %s91, %s92
    %p101 = scmp.eq.s32.totalorder %s18, 0
    %p102 = por %p100, %p101
    %p103 = scmp.ne.s32.totalorder %s91, %s92
    %p104 = scmp.eq.s32.totalorder %s19, 1
    %p105 = por %p103, %p104
    %p107 = scmp.ne.s32.totalorder %s92, %s106
    %p108 = scmp.eq.s32.totalorder %s19, 0
    %p109 = por %p107, %p108
    %s111 = sadd.s32 %s110, 1
    %p114 = scmp.eq.s32.totalorder %s13, 1
    %p115 = scmp.ne.s32.totalorder %s110, %s112
    %p116 = scmp.eq.s32.totalorder %s13, 0
    %p117 = por %p115, %p116
    %p118 = scmp.ne.s32.totalorder %s110, %s112
    %p119 = scmp.eq.s32.totalorder %s18, 1
    %p120 = por %p118, %p119
    %p121 = scmp.ne.s32.totalorder %s112, %s113
    %p122 = scmp.eq.s32.totalorder %s18, 0
    %p123 = por %p121, %p122
    %p124 = scmp.ne.s32.totalorder %s112, %s113
    %p125 = scmp.eq.s32.totalorder %s19, 1
    %p126 = por %p124, %p125
    %p128 = scmp.ne.s32.totalorder %s113, %s127
    %p129 = scmp.eq.s32.totalorder %s19, 0
    %p130 = por %p128, %p129
    %s132 = sadd.s32 %s131, 1
    %p135 = scmp.eq.s32.totalorder %s13, 1
    %p136 = scmp.ne.s32.totalorder %s131, %s133
    %p137 = scmp.eq.s32.totalorder %s13, 0
    %p138 = por %p136, %p137
    %p139 = scmp.ne.s32.totalorder %s131, %s133
    %p140 = scmp.eq.s32.totalorder %s18, 1
    %p141 = por %p139, %p140
    %p142 = scmp.ne.s32.totalorder %s133, %s134
    %p143 = scmp.eq.s32.totalorder %s18, 0
    %p144 = por %p142, %p143
    %p145 = scmp.ne.s32.totalorder %s133, %s134
    %p146 = scmp.eq.s32.totalorder %s19, 1
    %p147 = por %p145, %p146
    %p149 = scmp.ne.s32.totalorder %s134, %s148
    %p150 = scmp.eq.s32.totalorder %s19, 0
    %p151 = por %p149, %p150
    %s153 = sadd.s32 %s152, 1
    %p156 = scmp.eq.s32.totalorder %s13, 1
    %p157 = scmp.ne.s32.totalorder %s152, %s154
    %p158 = scmp.eq.s32.totalorder %s13, 0
    %p159 = por %p157, %p158
    %p160 = scmp.ne.s32.totalorder %s152, %s154
    %p161 = scmp.eq.s32.totalorder %s18, 1
    %p162 = por %p160, %p161
    %p163 = scmp.ne.s32.totalorder %s154, %s155
    %p164 = scmp.eq.s32.totalorder %s18, 0
    %p165 = por %p163, %p164
    %p166 = scmp.ne.s32.totalorder %s154, %s155
    %p167 = scmp.eq.s32.totalorder %s19, 1
    %p168 = por %p166, %p167
    %p170 = scmp.ne.s32.totalorder %s155, %s169
    %p171 = scmp.eq.s32.totalorder %s19, 0
    %p172 = por %p170, %p171
    %s173 = ssub.s32 %s13, %s20
    %p174 = scmp.eq.s32.totalorder %s173, 0
    %s176 = sadd.s32 %s175, 1
    %s177 = scalar_select %p174, %s175, %s176
    %p180 = pneg %p174
    %p181 = scmp.eq.s32.totalorder %s13, 1
    %p182 = por %p180, %p181
    %p183 = scmp.ne.s32.totalorder %s175, %s178
    %p184 = scmp.eq.s32.totalorder %s13, 0
    %p185 = por %p183, %p184
    %p186 = scmp.ne.s32.totalorder %s175, %s178
    %p187 = scmp.eq.s32.totalorder %s18, 1
    %p188 = por %p186, %p187
    %p189 = scmp.ne.s32.totalorder %s178, %s179
    %p190 = scmp.eq.s32.totalorder %s18, 0
    %p191 = por %p189, %p190
    %p192 = scmp.ne.s32.totalorder %s178, %s179
    %p193 = scmp.eq.s32.totalorder %s19, 1
    %p194 = por %p192, %p193
    %p196 = scmp.ne.s32.totalorder %s179, %s195
    %p197 = scmp.eq.s32.totalorder %s19, 0
    %p198 = por %p196, %p197
    %p199 = scmp.le.s32.totalorder 1, %s13
    %p200 = scmp.lt.s32.totalorder %s13, 3
    %p201 = pnand %p199, %p200
    %p202 = pneg %p201
    // Predicated region
    $region9: #{middle_forward.3} parent=5 // pred_check
      _
    $region10: #{middle_forward.3} parent=5 // pred_check_branch
      %204 = sbr.rel (%p201) target = $region12
    $region11: #{middle_forward.3} parent=5 // pred_region
      %s205 = ssub.s32 %s13, 1
      // Predicated region
      $region13: #{middle_forward.3} parent=11 // pred_check
        %p206 = pneg %p60
      $region14: #{middle_forward.3} parent=11 // pred_check_branch
        %208 = sbr.rel (%p206) target = $region16
      $region15: #{middle_forward.3} parent=11 // pred_region
        _
      $region16: #{middle_forward.3} parent=11 // pred_fallthru
        _
      // Predicated region
      $region17: #{middle_forward.3} parent=11 // pred_check
        %p209 = pneg %p81
      $region18: #{middle_forward.3} parent=11 // pred_check_branch
        %211 = sbr.rel (%p209) target = $region20
      $region19: #{middle_forward.3} parent=11 // pred_region
        _
      $region20: #{middle_forward.3} parent=11 // pred_fallthru
        _
      // Predicated region
      $region21: #{middle_forward.3} parent=11 // pred_check
        %p212 = pneg %p102
      $region22: #{middle_forward.3} parent=11 // pred_check_branch
        %214 = sbr.rel (%p212) target = $region24
      $region23: #{middle_forward.3} parent=11 // pred_region
        _
      $region24: #{middle_forward.3} parent=11 // pred_fallthru
        _
      // Predicated region
      $region25: #{middle_forward.3} parent=11 // pred_check
        %p215 = pneg %p123
      $region26: #{middle_forward.3} parent=11 // pred_check_branch
        %217 = sbr.rel (%p215) target = $region28
      $region27: #{middle_forward.3} parent=11 // pred_region
        _
      $region28: #{middle_forward.3} parent=11 // pred_fallthru
        _
      // Predicated region
      $region29: #{middle_forward.3} parent=11 // pred_check
        %p218 = pneg %p144
      $region30: #{middle_forward.3} parent=11 // pred_check_branch
        %220 = sbr.rel (%p218) target = $region32
      $region31: #{middle_forward.3} parent=11 // pred_region
        _
      $region32: #{middle_forward.3} parent=11 // pred_fallthru
        _
      // Predicated region
      $region33: #{middle_forward.3} parent=11 // pred_check
        %p221 = pneg %p165
      $region34: #{middle_forward.3} parent=11 // pred_check_branch
        %223 = sbr.rel (%p221) target = $region36
      $region35: #{middle_forward.3} parent=11 // pred_region
        _
      $region36: #{middle_forward.3} parent=11 // pred_fallthru
        _
    $region12: #{middle_forward.3} parent=5 // pred_fallthru
      _
    %p224 = scmp.lt.s32.totalorder %s13, 2
    // Predicated region
    $region37: #{middle_forward.3} parent=5 // pred_check
      %p225 = pneg %p224
    $region38: #{middle_forward.3} parent=5 // pred_check_branch
      %227 = sbr.rel (%p225) target = $region40
    $region39: #{middle_forward.3} parent=5 // pred_region
      // Predicated region
      $region41: #{middle_forward.3} parent=39 // pred_check
        %p228 = pneg %p33
      $region42: #{middle_forward.3} parent=39 // pred_check_branch
        %230 = sbr.rel (%p228) target = $region44
      $region43: #{middle_forward.3} parent=39 // pred_region
        %p231 = scmp.lt.s32.totalorder %s13, 1
        %s232 = scalar_select %p231, %s13, 1
        %s233 = smul.addr %s232, 8
        %s234 = scalar_lea.vmem %s0, %s233
      $region44: #{middle_forward.3} parent=39 // pred_fallthru
        _
    $region40: #{middle_forward.3} parent=5 // pred_fallthru
      _
    %p235 = scmp.le.s32.totalorder 1, %s13
    %p236 = scmp.lt.s32.totalorder %s13, 3
    %p237 = pnand %p235, %p236
    %p238 = pneg %p237
    // Predicated region
    $region45: #{middle_forward.3} parent=5 // pred_check
      _
    $region46: #{middle_forward.3} parent=5 // pred_check_branch
      %240 = sbr.rel (%p237) target = $region48
    $region47: #{middle_forward.3} parent=5 // pred_region
      %s241 = ssub.s32 %s13, 1
      %p242 = scmp.lt.s32.totalorder %s18, 1
      %s243 = scalar_select %p242, %s18, 1
      %s244 = smul.addr %s243, 8
      %s245 = scalar_lea.vmem %s0, %s244
      %p246 = pneg %p39
      %p247 = pneg %p36
      %p248 = pneg %p60
      %p249 = pneg %p57
      %p250 = pneg %p81
      %p251 = pneg %p78
      %p252 = pneg %p102
      %p253 = pneg %p99
      %p254 = pneg %p123
      %p255 = pneg %p120
      %p256 = pneg %p144
      %p257 = pneg %p141
      %p258 = pneg %p165
      %p259 = pneg %p162
      %p260 = pneg %p191
      %p261 = pneg %p188
      %p262 = scmp.lt.s32.totalorder %s18, 1
      %s263 = scalar_select %p262, %s18, 1
      %s264 = smul.addr %s263, 8
      %s265 = scalar_lea.vmem %s7, %s264
      %p266 = scmp.lt.s32.totalorder %s18, 1
      %s267 = scalar_select %p266, %s18, 1
      %s268 = smul.addr %s267, 8
      %s269 = scalar_lea.vmem %s0, %s268
      %p270 = scmp.lt.s32.totalorder %s18, 1
      %s271 = scalar_select %p270, %s18, 1
      %s272 = smul.addr %s271, 8
      %s273 = scalar_lea.vmem %s7, %s272
      %v275 = vld [vmem:[%s269] sm:$0xff]
      %v276 = vld [vmem:[%s1] sm:$0x1]
      %v277 = vld [vmem:[%s2] sm:$0x1]
      %vm278 = vcmask 261120
      %v279 = vsel %vm278, %v275, 0.0
      %280 = vadd.xlane.f32.xlu0 %v279
      %v281 = vpop.xlane.xlu0 %280
      %v282 = vrcp.pop 32.0
      %v283 = vmul.f32 %v281, %v282
      %v284 = vsub.f32 %v275, %v283
      %v285 = vmul.f32 %v284, %v284
      %v286 = vsel %vm278, %v285, 0.0
      %287 = vadd.xlane.f32.xlu0 %v286
      %v288 = vpop.xlane.xlu0 %287
      %v289 = vmul.f32 %v288, %v282
      %v290 = vadd.f32 %v289, 1e-05
      %v291 = vrsqrt.pop %v290
      %v292 = vmul.f32 %v284, %v291
      %v294 = vlaneseq
      %v295 = vshrl.u32 %v294, 7
      %v296 = vsub.s32 0, %v295
      %v297 = vrot.slane %v276, %v296
      %v299 = vmul.f32 %v292, %v297
      %v301 = vlaneseq
      %v302 = vshrl.u32 %v301, 7
      %v303 = vsub.s32 0, %v302
      %v304 = vrot.slane %v277, %v303
      %v306 = vadd.f32 %v299, %v304
      %v307 = vpack.c.bf16 %v306, %v306
      %v308 = vld [vmem:[%s3] sm:$0xf]
      %v309 = vld [vmem:[%s3 + $0x4] sm:$0xf]
      %v310 = vld [vmem:[%s3 + $0x8] sm:$0xf]
      %v311 = vld [vmem:[%s3 + $0xc] sm:$0xf]
      %v312 = vld [vmem:[%s4] sm:$0x1]
      %v314 = vlaneseq
      %v315 = vshrl.u32 %v314, 7
      %v316 = vsub.s32 0, %v315
      %v317 = vrot.slane %v312, %v316
      %v323 = vunpack.c.l.b16 %v308
      %v324 = vunpack.c.l.b16 %v309
      %v325 = vunpack.c.l.b16 %v310
      %v326 = vunpack.c.l.b16 %v311
      %v327 = vpack.c.b16 %v324, %v323
      %v328 = vpack.c.b16 %v326, %v325
      %v332 = vsel %vm278, %v307, 0
      %334 = vmatprep.subr.bf16.mxu0 0
      %335 = vmatpush1.bf16.msra.mxu0 %v327
      %336 = vmatprep.subr.bf16.mxu0 0
      %337 = vmatpush1.bf16.msra.mxu0 %v328
      %338 = vmatprep.subr.bf16.mxu0 0
      %339 = vmatpush1.bf16.msra.mxu0 0
      %340 = vmatprep.subr.bf16.mxu0 0
      %341 = vmatpush1.bf16.msra.mxu0 0
      %342 = vmatprep.subr.bf16.mxu0 0
      %343 = vmatpush1.bf16.msra.mxu0 0
      %344 = vmatprep.subr.bf16.mxu0 0
      %345 = vmatpush1.bf16.msra.mxu0 0
      %346 = vmatprep.subr.bf16.mxu0 0
      %347 = vmatpush1.bf16.msra.mxu0 0
      %348 = vmatprep.subr.bf16.mxu0 0
      %349 = vmatpush1.bf16.msra.mxu0 0
      %350 = vmatprep.subr.bf16.mxu0 0
      %351 = vmatpush1.bf16.msra.mxu0 0
      %352 = vmatprep.subr.bf16.mxu0 0
      %353 = vmatpush1.bf16.msra.mxu0 0
      %354 = vmatprep.subr.bf16.mxu0 0
      %355 = vmatpush1.bf16.msra.mxu0 0
      %356 = vmatprep.subr.bf16.mxu0 0
      %357 = vmatpush1.bf16.msra.mxu0 0
      %358 = vmatprep.subr.bf16.mxu0 0
      %359 = vmatpush1.bf16.msra.mxu0 0
      %360 = vmatprep.subr.bf16.mxu0 0
      %361 = vmatpush1.bf16.msra.mxu0 0
      %362 = vmatprep.subr.bf16.mxu0 0
      %363 = vmatpush1.bf16.msra.mxu0 0
      %364 = vmatprep.subr.bf16.mxu0 0
      %365 = vmatpush1.bf16.msra.mxu0 0
      %366 = vmatprep.mubr.bf16.mxu0 0
      %367 = vmatmul.mubr.bf16.gmra.mrb[0].mxu0 %v332
      %v368 = vpop.f32.mrb[0].mxu0
      %v369 = vadd.f32 %v317, %v368
      %v370 = vpop.f32.mrb[0].mxu0
      %v371 = vpop.f32.mrb[0].mxu0
      %v372 = vpop.f32.mrb[0].mxu0
      %373 = vdwg.mxu0
      %v374 = vxor.u32 %v369, 2147483648
      %v375 = vmul.f32 %v374, 1.442695
      %v376 = vpow.pop %v375
      %v377 = vadd.f32 %v376, 1.0
      %v378 = vrcp.pop %v377
      %v379 = vmul.f32 1.0, %v378
      %v380 = vmul.f32 %v369, %v379
      %v381 = vpack.c.bf16 %v380, %v380
      %v382 = vld [vmem:[%s5] sm:$0xf]
      %v383 = vld [vmem:[%s5 + $0x4] sm:$0xf]
      %v384 = vld [vmem:[%s5 + $0x8] sm:$0xf]
      %v385 = vld [vmem:[%s5 + $0xc] sm:$0xf]
      %v386 = vld [vmem:[%s5 + $0x10] sm:$0xf]
      %v387 = vld [vmem:[%s5 + $0x14] sm:$0xf]
      %v388 = vld [vmem:[%s5 + $0x18] sm:$0xf]
      %v389 = vld [vmem:[%s5 + $0x1c] sm:$0xf]
      %v390 = vld [vmem:[%s5 + $0x20] sm:$0xf]
      %v391 = vld [vmem:[%s5 + $0x24] sm:$0xf]
      %v392 = vld [vmem:[%s5 + $0x28] sm:$0xf]
      %v393 = vld [vmem:[%s5 + $0x2c] sm:$0xf]
      %v394 = vld [vmem:[%s5 + $0x30] sm:$0xf]
      %v395 = vld [vmem:[%s5 + $0x34] sm:$0xf]
      %v396 = vld [vmem:[%s5 + $0x38] sm:$0xf]
      %v397 = vld [vmem:[%s5 + $0x3c] sm:$0xf]
      %v398 = vld [vmem:[%s6] sm:$0x1]
      %v400 = vlaneseq
      %v401 = vshrl.u32 %v400, 7
      %v402 = vsub.s32 0, %v401
      %v403 = vrot.slane %v398, %v402
      %v421 = vunpack.c.l.b16 %v382
      %v422 = vunpack.c.l.b16 %v383
      %v423 = vunpack.c.l.b16 %v384
      %v424 = vunpack.c.l.b16 %v385
      %v425 = vunpack.c.l.b16 %v386
      %v426 = vunpack.c.l.b16 %v387
      %v427 = vunpack.c.l.b16 %v388
      %v428 = vunpack.c.l.b16 %v389
      %v429 = vunpack.c.l.b16 %v390
      %v430 = vunpack.c.l.b16 %v391
      %v431 = vunpack.c.l.b16 %v392
      %v432 = vunpack.c.l.b16 %v393
      %v433 = vunpack.c.l.b16 %v394
      %v434 = vunpack.c.l.b16 %v395
      %v435 = vunpack.c.l.b16 %v396
      %v436 = vunpack.c.l.b16 %v397
      %v437 = vpack.c.b16 %v422, %v421
      %v438 = vpack.c.b16 %v424, %v423
      %v439 = vpack.c.b16 %v426, %v425
      %v440 = vpack.c.b16 %v428, %v427
      %v441 = vpack.c.b16 %v430, %v429
      %v442 = vpack.c.b16 %v432, %v431
      %v443 = vpack.c.b16 %v434, %v433
      %v444 = vpack.c.b16 %v436, %v435
      %453 = vmatprep.subr.bf16.mxu0 0
      %454 = vmatpush1.bf16.msra.mxu0 %v437
      %455 = vmatprep.subr.bf16.mxu0 0
      %456 = vmatpush1.bf16.msra.mxu0 %v438
      %457 = vmatprep.subr.bf16.mxu0 0
      %458 = vmatpush1.bf16.msra.mxu0 %v439
      %459 = vmatprep.subr.bf16.mxu0 0
      %460 = vmatpush1.bf16.msra.mxu0 %v440
      %461 = vmatprep.subr.bf16.mxu0 0
      %462 = vmatpush1.bf16.msra.mxu0 %v441
      %463 = vmatprep.subr.bf16.mxu0 0
      %464 = vmatpush1.bf16.msra.mxu0 %v442
      %465 = vmatprep.subr.bf16.mxu0 0
      %466 = vmatpush1.bf16.msra.mxu0 %v443
      %467 = vmatprep.subr.bf16.mxu0 0
      %468 = vmatpush1.bf16.msra.mxu0 %v444
      %469 = vmatprep.subr.bf16.mxu0 0
      %470 = vmatpush1.bf16.msra.mxu0 0
      %471 = vmatprep.subr.bf16.mxu0 0
      %472 = vmatpush1.bf16.msra.mxu0 0
      %473 = vmatprep.subr.bf16.mxu0 0
      %474 = vmatpush1.bf16.msra.mxu0 0
      %475 = vmatprep.subr.bf16.mxu0 0
      %476 = vmatpush1.bf16.msra.mxu0 0
      %477 = vmatprep.subr.bf16.mxu0 0
      %478 = vmatpush1.bf16.msra.mxu0 0
      %479 = vmatprep.subr.bf16.mxu0 0
      %480 = vmatpush1.bf16.msra.mxu0 0
      %481 = vmatprep.subr.bf16.mxu0 0
      %482 = vmatpush1.bf16.msra.mxu0 0
      %483 = vmatprep.subr.bf16.mxu0 0
      %484 = vmatpush1.bf16.msra.mxu0 0
      %485 = vmatprep.mubr.bf16.mxu0 0
      %486 = vmatmul.mubr.bf16.gmra.mrb[0].mxu0 %v381
      %v487 = vpop.f32.mrb[0].mxu0
      %v488 = vadd.f32 %v403, %v487
      %v489 = vpop.f32.mrb[0].mxu0
      %v490 = vpop.f32.mrb[0].mxu0
      %v491 = vpop.f32.mrb[0].mxu0
      %492 = vdwg.mxu0
      %v493 = vmul.f32 %v488, 0.5
      %v494 = vadd.f32 %v275, %v493
      %495 = vst.msk [vmem:[%s273] sm:$0xff] %vm278, %v494
      %p496 = scmp.lt.s32.totalorder %s18, 1
      %s497 = scalar_select %p496, %s18, 1
      %s498 = smul.addr %s497, 8
      %s499 = scalar_lea.vmem %s7, %s498
      // Predicated region
      $region49: #{middle_forward.3} parent=47 // pred_check
        %p500 = pneg %p188
      $region50: #{middle_forward.3} parent=47 // pred_check_branch
        %502 = sbr.rel (%p500) target = $region52
      $region51: #{middle_forward.3} parent=47 // pred_region
        _
      $region52: #{middle_forward.3} parent=47 // pred_fallthru
        _
    $region48: #{middle_forward.3} parent=5 // pred_fallthru
      _
    %p503 = scmp.le.s32.totalorder 2, %s13
    // Predicated region
    $region53: #{middle_forward.3} parent=5 // pred_check
      %p504 = pneg %p503
    $region54: #{middle_forward.3} parent=5 // pred_check_branch
      %506 = sbr.rel (%p504) target = $region56
    $region55: #{middle_forward.3} parent=5 // pred_region
      %s507 = ssub.s32 %s13, 2
      // Predicated region
      $region57: #{middle_forward.3} parent=55 // pred_check
        %p508 = pneg %p194
      $region58: #{middle_forward.3} parent=55 // pred_check_branch
        %510 = sbr.rel (%p508) target = $region60
      $region59: #{middle_forward.3} parent=55 // pred_region
        %p511 = scmp.lt.s32.totalorder %s19, 1
        %s512 = scalar_select %p511, %s19, 1
        %s513 = smul.addr %s512, 8
        %s514 = scalar_lea.vmem %s7, %s513
      $region60: #{middle_forward.3} parent=55 // pred_fallthru
        _
    $region56: #{middle_forward.3} parent=5 // pred_fallthru
      _
  $region6: #{middle_forward.3} parent=0 // loop_footer
    %s17 = sadd.s32 1, %s13
  $region7: #{middle_forward.3} parent=0 // loop_footer_branch
    %12 = sbr.rel target = $region3
  $region8: #{middle_forward.3} parent=0 // loop_exit
    _

// kernel: middle_forward.5
$region0: #{middle_forward.5}
  #allocation0 [shape = 'u32[]', space=smem, size = 0x4, offset = 0x4, fixed_abs, tag = 'smem constant byte address 0x4 - core index']
  #allocation1 [shape = 'u32[144,128]{1,0:T(1,128)}', space=vmem, size = 0x12000, scoped, tag = 'internal scratch']
  %s0 = inlined_call_operand.vmem [shape: f32[16,32], index: 0, kind: input, shape index: {}]
  %s1 = inlined_call_operand.vmem [shape: f32[16,32], index: 1, kind: input, shape index: {}]
  %s2 = inlined_call_operand.vmem [shape: f32[1,32], index: 2, kind: input, shape index: {}]
  %s3 = inlined_call_operand.vmem [shape: f32[1,32], index: 3, kind: input, shape index: {}]
  %s4 = inlined_call_operand.vmem [shape: f32[1,32], index: 4, kind: input, shape index: {}]
  %s5 = inlined_call_operand.vmem [shape: f32[1,32], index: 5, kind: input, shape index: {}]
  %s6 = inlined_call_operand.vmem [shape: bf16[32,32], index: 6, kind: input, shape index: {}]
  %s7 = inlined_call_operand.vmem [shape: f32[1,32], index: 7, kind: input, shape index: {}]
  %s8 = inlined_call_operand.vmem [shape: f32[1,32], index: 8, kind: input, shape index: {}]
  %s9 = inlined_call_operand.vmem [shape: f32[1,32], index: 9, kind: input, shape index: {}]
  %s10 = inlined_call_operand.vmem [shape: bf16[32,128], index: 10, kind: input, shape index: {}]
  %s11 = inlined_call_operand.vmem [shape: f32[1,128], index: 11, kind: input, shape index: {}]
  %s12 = inlined_call_operand.vmem [shape: bf16[128,32], index: 12, kind: input, shape index: {}]
  %s13 = inlined_call_operand.vmem [shape: f32[1,32], index: 13, kind: input, shape index: {}]
  %s14 = inlined_call_operand.vmem [shape: f32[1,32], index: 14, kind: input, shape index: {}]
  %s15 = inlined_call_operand.vmem [shape: f32[1,32], index: 15, kind: input, shape index: {}]
  %s16 = inlined_call_operand.hbm [shape: f32[16,32], index: 16, kind: output, shape index: {}]
  %s17 = sld [smem:[#allocation0]]
  $region97: #{middle_forward.5} parent=0
    _
  %s19 = ssub.s32 1, %s17
  %s20 = scalar_select 0, %s19, %s17
  $region1: #{middle_forward.5} parent=0
    #allocation2 [shape = 'u8[8192]{0}', space=vmem, size = 0x2000, scoped, tag = 'output window, operand 0']
    #allocation3 [shape = 's32[2]{0}', space=sflag, size = 0x8, scoped, tag = 'scoped memory for middle_forward.5']
    %21 = vsyncpa [#allocation3], 0
    %s22 = scalar_lea.sflag [#allocation3], 1
    %23 = vsyncpa %s22, 0
    loop: start=0, step=1, limit=4
    $region2: #{middle_forward.5} parent=1 // loop_pre_header
      _
    $region3: #{middle_forward.5} parent=1 // loop_header
      %s25 = sphi 0, %s29
      %p26 = scmp.ge.s32.totalorder %s25, 4
      %s35 = sphi 0, %s37
      %s38 = sphi 0, %s35
      %s39 = sphi 0, %s38
      %s55 = sphi 0, %s39
      %s61 = sphi 0, %s63
      %s64 = sphi 0, %s61
      %s65 = sphi 0, %s64
      %s81 = sphi 0, %s65
      %s85 = sphi 0, %s85
      %s87 = sphi 0, %s85
      %s88 = sphi 0, %s87
      %s102 = sphi 0, %s88
      %s106 = sphi 0, %s106
      %s108 = sphi 0, %s106
      %s109 = sphi 0, %s108
      %s123 = sphi 0, %s109
      %s127 = sphi 0, %s127
      %s129 = sphi 0, %s127
      %s130 = sphi 0, %s129
      %s144 = sphi 0, %s130
      %s148 = sphi 0, %s148
      %s150 = sphi 0, %s148
      %s151 = sphi 0, %s150
      %s165 = sphi 0, %s151
      %s169 = sphi 0, %s169
      %s171 = sphi 0, %s169
      %s172 = sphi 0, %s171
      %s186 = sphi 0, %s172
      %s190 = sphi 0, %s190
      %s192 = sphi 0, %s190
      %s193 = sphi 0, %s192
      %s207 = sphi 0, %s193
      %s211 = sphi 0, %s211
      %s213 = sphi 0, %s211
      %s214 = sphi 0, %s213
      %s228 = sphi 0, %s214
      %s232 = sphi 0, %s232
      %s234 = sphi 0, %s232
      %s235 = sphi 0, %s234
      %s249 = sphi 0, %s235
      %s253 = sphi 0, %s253
      %s255 = sphi 0, %s253
      %s256 = sphi 0, %s255
      %s270 = sphi 0, %s256
      %s274 = sphi 0, %s274
      %s276 = sphi 0, %s274
      %s277 = sphi 0, %s276
      %s291 = sphi 0, %s277
      %s295 = sphi 0, %s295
      %s297 = sphi 0, %s295
      %s298 = sphi 0, %s297
      %s312 = sphi 0, %s298
      %s316 = sphi 0, %s316
      %s318 = sphi 0, %s316
      %s319 = sphi 0, %s318
      %s333 = sphi 0, %s319
      %s337 = sphi 0, %s337
      %s339 = sphi 0, %s337
      %s340 = sphi 0, %s339
      %s354 = sphi 0, %s340
      %s358 = sphi 0, %s358
      %s360 = sphi 0, %s358
      %s361 = sphi 0, %s360
      %s375 = sphi 0, %s361
      %s381 = sphi 0, %s383
      %s384 = sphi 0, %s381
      %s385 = sphi 0, %s384
      %s401 = sphi 0, %s385
    $region4: #{middle_forward.5} parent=1 // loop_header_branch
      %28 = sbr.rel (%p26) target = $region8
    $region5: #{middle_forward.5} parent=1 // loop_body
      %s30 = ssub.s32 %s25, 1
      %s31 = ssub.s32 %s25, 2
      %s32 = sadd.s32 %s25, 1
      %s33 = ssub.s32 %s25, %s32
      %p34 = scmp.eq.s32.totalorder %s33, 0
      %s36 = sadd.s32 %s35, 1
      %s37 = scalar_select %p34, %s35, %s36
      %p40 = pneg %p34
      %p41 = scmp.eq.s32.totalorder %s25, 1
      %p42 = por %p40, %p41
      %p43 = scmp.ne.s32.totalorder %s35, %s38
      %p44 = scmp.eq.s32.totalorder %s25, 0
      %p45 = por %p43, %p44
      %p46 = scmp.ne.s32.totalorder %s35, %s38
      %p47 = scmp.eq.s32.totalorder %s30, 1
      %p48 = por %p46, %p47
      %p49 = scmp.ne.s32.totalorder %s38, %s39
      %p50 = scmp.eq.s32.totalorder %s30, 0
      %p51 = por %p49, %p50
      %p52 = scmp.ne.s32.totalorder %s38, %s39
      %p53 = scmp.eq.s32.totalorder %s31, 1
      %p54 = por %p52, %p53
      %p56 = scmp.ne.s32.totalorder %s39, %s55
      %p57 = scmp.eq.s32.totalorder %s31, 0
      %p58 = por %p56, %p57
      %s59 = ssub.s32 %s25, %s32
      %p60 = scmp.eq.s32.totalorder %s59, 0
      %s62 = sadd.s32 %s61, 1
      %s63 = scalar_select %p60, %s61, %s62
      %p66 = pneg %p60
      %p67 = scmp.eq.s32.totalorder %s25, 1
      %p68 = por %p66, %p67
      %p69 = scmp.ne.s32.totalorder %s61, %s64
      %p70 = scmp.eq.s32.totalorder %s25, 0
      %p71 = por %p69, %p70
      %p72 = scmp.ne.s32.totalorder %s61, %s64
      %p73 = scmp.eq.s32.totalorder %s30, 1
      %p74 = por %p72, %p73
      %p75 = scmp.ne.s32.totalorder %s64, %s65
      %p76 = scmp.eq.s32.totalorder %s30, 0
      %p77 = por %p75, %p76
      %p78 = scmp.ne.s32.totalorder %s64, %s65
      %p79 = scmp.eq.s32.totalorder %s31, 1
      %p80 = por %p78, %p79
      %p82 = scmp.ne.s32.totalorder %s65, %s81
      %p83 = scmp.eq.s32.totalorder %s31, 0
      %p84 = por %p82, %p83
      %s86 = sadd.s32 %s85, 1
      %p89 = scmp.eq.s32.totalorder %s25, 1
      %p90 = scmp.ne.s32.totalorder %s85, %s87
      %p91 = scmp.eq.s32.totalorder %s25, 0
      %p92 = por %p90, %p91
      %p93 = scmp.ne.s32.totalorder %s85, %s87
      %p94 = scmp.eq.s32.totalorder %s30, 1
      %p95 = por %p93, %p94
      %p96 = scmp.ne.s32.totalorder %s87, %s88
      %p97 = scmp.eq.s32.totalorder %s30, 0
      %p98 = por %p96, %p97
      %p99 = scmp.ne.s32.totalorder %s87, %s88
      %p100 = scmp.eq.s32.totalorder %s31, 1
      %p101 = por %p99, %p100
      %p103 = scmp.ne.s32.totalorder %s88, %s102
      %p104 = scmp.eq.s32.totalorder %s31, 0
      %p105 = por %p103, %p104
      %s107 = sadd.s32 %s106, 1
      %p110 = scmp.eq.s32.totalorder %s25, 1
      %p111 = scmp.ne.s32.totalorder %s106, %s108
      %p112 = scmp.eq.s32.totalorder %s25, 0
      %p113 = por %p111, %p112
      %p114 = scmp.ne.s32.totalorder %s106, %s108
      %p115 = scmp.eq.s32.totalorder %s30, 1
      %p116 = por %p114, %p115
      %p117 = scmp.ne.s32.totalorder %s108, %s109
      %p118 = scmp.eq.s32.totalorder %s30, 0
      %p119 = por %p117, %p118
      %p120 = scmp.ne.s32.totalorder %s108, %s109
      %p121 = scmp.eq.s32.totalorder %s31, 1
      %p122 = por %p120, %p121
      %p124 = scmp.ne.s32.totalorder %s109, %s123
      %p125 = scmp.eq.s32.totalorder %s31, 0
      %p126 = por %p124, %p125
      %s128 = sadd.s32 %s127, 1
      %p131 = scmp.eq.s32.totalorder %s25, 1
      %p132 = scmp.ne.s32.totalorder %s127, %s129
      %p133 = scmp.eq.s32.totalorder %s25, 0
      %p134 = por %p132, %p133
      %p135 = scmp.ne.s32.totalorder %s127, %s129
      %p136 = scmp.eq.s32.totalorder %s30, 1
      %p137 = por %p135, %p136
      %p138 = scmp.ne.s32.totalorder %s129, %s130
      %p139 = scmp.eq.s32.totalorder %s30, 0
      %p140 = por %p138, %p139
      %p141 = scmp.ne.s32.totalorder %s129, %s130
      %p142 = scmp.eq.s32.totalorder %s31, 1
      %p143 = por %p141, %p142
      %p145 = scmp.ne.s32.totalorder %s130, %s144
      %p146 = scmp.eq.s32.totalorder %s31, 0
      %p147 = por %p145, %p146
      %s149 = sadd.s32 %s148, 1
      %p152 = scmp.eq.s32.totalorder %s25, 1
      %p153 = scmp.ne.s32.totalorder %s148, %s150
      %p154 = scmp.eq.s32.totalorder %s25, 0
      %p155 = por %p153, %p154
      %p156 = scmp.ne.s32.totalorder %s148, %s150
      %p157 = scmp.eq.s32.totalorder %s30, 1
      %p158 = por %p156, %p157
      %p159 = scmp.ne.s32.totalorder %s150, %s151
      %p160 = scmp.eq.s32.totalorder %s30, 0
      %p161 = por %p159, %p160
      %p162 = scmp.ne.s32.totalorder %s150, %s151
      %p163 = scmp.eq.s32.totalorder %s31, 1
      %p164 = por %p162, %p163
      %p166 = scmp.ne.s32.totalorder %s151, %s165
      %p167 = scmp.eq.s32.totalorder %s31, 0
      %p168 = por %p166, %p167
      %s170 = sadd.s32 %s169, 1
      %p173 = scmp.eq.s32.totalorder %s25, 1
      %p174 = scmp.ne.s32.totalorder %s169, %s171
      %p175 = scmp.eq.s32.totalorder %s25, 0
      %p176 = por %p174, %p175
      %p177 = scmp.ne.s32.totalorder %s169, %s171
      %p178 = scmp.eq.s32.totalorder %s30, 1
      %p179 = por %p177, %p178
      %p180 = scmp.ne.s32.totalorder %s171, %s172
      %p181 = scmp.eq.s32.totalorder %s30, 0
      %p182 = por %p180, %p181
      %p183 = scmp.ne.s32.totalorder %s171, %s172
      %p184 = scmp.eq.s32.totalorder %s31, 1
      %p185 = por %p183, %p184
      %p187 = scmp.ne.s32.totalorder %s172, %s186
      %p188 = scmp.eq.s32.totalorder %s31, 0
      %p189 = por %p187, %p188
      %s191 = sadd.s32 %s190, 1
      %p194 = scmp.eq.s32.totalorder %s25, 1
      %p195 = scmp.ne.s32.totalorder %s190, %s192
      %p196 = scmp.eq.s32.totalorder %s25, 0
      %p197 = por %p195, %p196
      %p198 = scmp.ne.s32.totalorder %s190, %s192
      %p199 = scmp.eq.s32.totalorder %s30, 1
      %p200 = por %p198, %p199
      %p201 = scmp.ne.s32.totalorder %s192, %s193
      %p202 = scmp.eq.s32.totalorder %s30, 0
      %p203 = por %p201, %p202
      %p204 = scmp.ne.s32.totalorder %s192, %s193
      %p205 = scmp.eq.s32.totalorder %s31, 1
      %p206 = por %p204, %p205
      %p208 = scmp.ne.s32.totalorder %s193, %s207
      %p209 = scmp.eq.s32.totalorder %s31, 0
      %p210 = por %p208, %p209
      %s212 = sadd.s32 %s211, 1
      %p215 = scmp.eq.s32.totalorder %s25, 1
      %p216 = scmp.ne.s32.totalorder %s211, %s213
      %p217 = scmp.eq.s32.totalorder %s25, 0
      %p218 = por %p216, %p217
      %p219 = scmp.ne.s32.totalorder %s211, %s213
      %p220 = scmp.eq.s32.totalorder %s30, 1
      %p221 = por %p219, %p220
      %p222 = scmp.ne.s32.totalorder %s213, %s214
      %p223 = scmp.eq.s32.totalorder %s30, 0
      %p224 = por %p222, %p223
      %p225 = scmp.ne.s32.totalorder %s213, %s214
      %p226 = scmp.eq.s32.totalorder %s31, 1
      %p227 = por %p225, %p226
      %p229 = scmp.ne.s32.totalorder %s214, %s228
      %p230 = scmp.eq.s32.totalorder %s31, 0
      %p231 = por %p229, %p230
      %s233 = sadd.s32 %s232, 1
      %p236 = scmp.eq.s32.totalorder %s25, 1
      %p237 = scmp.ne.s32.totalorder %s232, %s234
      %p238 = scmp.eq.s32.totalorder %s25, 0
      %p239 = por %p237, %p238
      %p240 = scmp.ne.s32.totalorder %s232, %s234
      %p241 = scmp.eq.s32.totalorder %s30, 1
      %p242 = por %p240, %p241
      %p243 = scmp.ne.s32.totalorder %s234, %s235
      %p244 = scmp.eq.s32.totalorder %s30, 0
      %p245 = por %p243, %p244
      %p246 = scmp.ne.s32.totalorder %s234, %s235
      %p247 = scmp.eq.s32.totalorder %s31, 1
      %p248 = por %p246, %p247
      %p250 = scmp.ne.s32.totalorder %s235, %s249
      %p251 = scmp.eq.s32.totalorder %s31, 0
      %p252 = por %p250, %p251
      %s254 = sadd.s32 %s253, 1
      %p257 = scmp.eq.s32.totalorder %s25, 1
      %p258 = scmp.ne.s32.totalorder %s253, %s255
      %p259 = scmp.eq.s32.totalorder %s25, 0
      %p260 = por %p258, %p259
      %p261 = scmp.ne.s32.totalorder %s253, %s255
      %p262 = scmp.eq.s32.totalorder %s30, 1
      %p263 = por %p261, %p262
      %p264 = scmp.ne.s32.totalorder %s255, %s256
      %p265 = scmp.eq.s32.totalorder %s30, 0
      %p266 = por %p264, %p265
      %p267 = scmp.ne.s32.totalorder %s255, %s256
      %p268 = scmp.eq.s32.totalorder %s31, 1
      %p269 = por %p267, %p268
      %p271 = scmp.ne.s32.totalorder %s256, %s270
      %p272 = scmp.eq.s32.totalorder %s31, 0
      %p273 = por %p271, %p272
      %s275 = sadd.s32 %s274, 1
      %p278 = scmp.eq.s32.totalorder %s25, 1
      %p279 = scmp.ne.s32.totalorder %s274, %s276
      %p280 = scmp.eq.s32.totalorder %s25, 0
      %p281 = por %p279, %p280
      %p282 = scmp.ne.s32.totalorder %s274, %s276
      %p283 = scmp.eq.s32.totalorder %s30, 1
      %p284 = por %p282, %p283
      %p285 = scmp.ne.s32.totalorder %s276, %s277
      %p286 = scmp.eq.s32.totalorder %s30, 0
      %p287 = por %p285, %p286
      %p288 = scmp.ne.s32.totalorder %s276, %s277
      %p289 = scmp.eq.s32.totalorder %s31, 1
      %p290 = por %p288, %p289
      %p292 = scmp.ne.s32.totalorder %s277, %s291
      %p293 = scmp.eq.s32.totalorder %s31, 0
      %p294 = por %p292, %p293
      %s296 = sadd.s32 %s295, 1
      %p299 = scmp.eq.s32.totalorder %s25, 1
      %p300 = scmp.ne.s32.totalorder %s295, %s297
      %p301 = scmp.eq.s32.totalorder %s25, 0
      %p302 = por %p300, %p301
      %p303 = scmp.ne.s32.totalorder %s295, %s297
      %p304 = scmp.eq.s32.totalorder %s30, 1
      %p305 = por %p303, %p304
      %p306 = scmp.ne.s32.totalorder %s297, %s298
      %p307 = scmp.eq.s32.totalorder %s30, 0
      %p308 = por %p306, %p307
      %p309 = scmp.ne.s32.totalorder %s297, %s298
      %p310 = scmp.eq.s32.totalorder %s31, 1
      %p311 = por %p309, %p310
      %p313 = scmp.ne.s32.totalorder %s298, %s312
      %p314 = scmp.eq.s32.totalorder %s31, 0
      %p315 = por %p313, %p314
      %s317 = sadd.s32 %s316, 1
      %p320 = scmp.eq.s32.totalorder %s25, 1
      %p321 = scmp.ne.s32.totalorder %s316, %s318
      %p322 = scmp.eq.s32.totalorder %s25, 0
      %p323 = por %p321, %p322
      %p324 = scmp.ne.s32.totalorder %s316, %s318
      %p325 = scmp.eq.s32.totalorder %s30, 1
      %p326 = por %p324, %p325
      %p327 = scmp.ne.s32.totalorder %s318, %s319
      %p328 = scmp.eq.s32.totalorder %s30, 0
      %p329 = por %p327, %p328
      %p330 = scmp.ne.s32.totalorder %s318, %s319
      %p331 = scmp.eq.s32.totalorder %s31, 1
      %p332 = por %p330, %p331
      %p334 = scmp.ne.s32.totalorder %s319, %s333
      %p335 = scmp.eq.s32.totalorder %s31, 0
      %p336 = por %p334, %p335
      %s338 = sadd.s32 %s337, 1
      %p341 = scmp.eq.s32.totalorder %s25, 1
      %p342 = scmp.ne.s32.totalorder %s337, %s339
      %p343 = scmp.eq.s32.totalorder %s25, 0
      %p344 = por %p342, %p343
      %p345 = scmp.ne.s32.totalorder %s337, %s339
      %p346 = scmp.eq.s32.totalorder %s30, 1
      %p347 = por %p345, %p346
      %p348 = scmp.ne.s32.totalorder %s339, %s340
      %p349 = scmp.eq.s32.totalorder %s30, 0
      %p350 = por %p348, %p349
      %p351 = scmp.ne.s32.totalorder %s339, %s340
      %p352 = scmp.eq.s32.totalorder %s31, 1
      %p353 = por %p351, %p352
      %p355 = scmp.ne.s32.totalorder %s340, %s354
      %p356 = scmp.eq.s32.totalorder %s31, 0
      %p357 = por %p355, %p356
      %s359 = sadd.s32 %s358, 1
      %p362 = scmp.eq.s32.totalorder %s25, 1
      %p363 = scmp.ne.s32.totalorder %s358, %s360
      %p364 = scmp.eq.s32.totalorder %s25, 0
      %p365 = por %p363, %p364
      %p366 = scmp.ne.s32.totalorder %s358, %s360
      %p367 = scmp.eq.s32.totalorder %s30, 1
      %p368 = por %p366, %p367
      %p369 = scmp.ne.s32.totalorder %s360, %s361
      %p370 = scmp.eq.s32.totalorder %s30, 0
      %p371 = por %p369, %p370
      %p372 = scmp.ne.s32.totalorder %s360, %s361
      %p373 = scmp.eq.s32.totalorder %s31, 1
      %p374 = por %p372, %p373
      %p376 = scmp.ne.s32.totalorder %s361, %s375
      %p377 = scmp.eq.s32.totalorder %s31, 0
      %p378 = por %p376, %p377
      %s379 = ssub.s32 %s25, %s32
      %p380 = scmp.eq.s32.totalorder %s379, 0
      %s382 = sadd.s32 %s381, 1
      %s383 = scalar_select %p380, %s381, %s382
      %p386 = pneg %p380
      %p387 = scmp.eq.s32.totalorder %s25, 1
      %p388 = por %p386, %p387
      %p389 = scmp.ne.s32.totalorder %s381, %s384
      %p390 = scmp.eq.s32.totalorder %s25, 0
      %p391 = por %p389, %p390
      %p392 = scmp.ne.s32.totalorder %s381, %s384
      %p393 = scmp.eq.s32.totalorder %s30, 1
      %p394 = por %p392, %p393
      %p395 = scmp.ne.s32.totalorder %s384, %s385
      %p396 = scmp.eq.s32.totalorder %s30, 0
      %p397 = por %p395, %p396
      %p398 = scmp.ne.s32.totalorder %s384, %s385
      %p399 = scmp.eq.s32.totalorder %s31, 1
      %p400 = por %p398, %p399
      %p402 = scmp.ne.s32.totalorder %s385, %s401
      %p403 = scmp.eq.s32.totalorder %s31, 0
      %p404 = por %p402, %p403
      %p405 = scmp.le.s32.totalorder 1, %s25
      %p406 = scmp.lt.s32.totalorder %s25, 3
      %p407 = pnand %p405, %p406
      %p408 = pneg %p407
      // Predicated region
      $region9: #{middle_forward.5} parent=5 // pred_check
        _
      $region10: #{middle_forward.5} parent=5 // pred_check_branch
        %410 = sbr.rel (%p407) target = $region12
      $region11: #{middle_forward.5} parent=5 // pred_region
        %s411 = ssub.s32 %s25, 1
        // Predicated region
        $region13: #{middle_forward.5} parent=11 // pred_check
          %p412 = pneg %p98
        $region14: #{middle_forward.5} parent=11 // pred_check_branch
          %414 = sbr.rel (%p412) target = $region16
        $region15: #{middle_forward.5} parent=11 // pred_region
          _
        $region16: #{middle_forward.5} parent=11 // pred_fallthru
          _
        // Predicated region
        $region17: #{middle_forward.5} parent=11 // pred_check
          %p415 = pneg %p119
        $region18: #{middle_forward.5} parent=11 // pred_check_branch
          %417 = sbr.rel (%p415) target = $region20
        $region19: #{middle_forward.5} parent=11 // pred_region
          _
        $region20: #{middle_forward.5} parent=11 // pred_fallthru
          _
        // Predicated region
        $region21: #{middle_forward.5} parent=11 // pred_check
          %p418 = pneg %p140
        $region22: #{middle_forward.5} parent=11 // pred_check_branch
          %420 = sbr.rel (%p418) target = $region24
        $region23: #{middle_forward.5} parent=11 // pred_region
          _
        $region24: #{middle_forward.5} parent=11 // pred_fallthru
          _
        // Predicated region
        $region25: #{middle_forward.5} parent=11 // pred_check
          %p421 = pneg %p161
        $region26: #{middle_forward.5} parent=11 // pred_check_branch
          %423 = sbr.rel (%p421) target = $region28
        $region27: #{middle_forward.5} parent=11 // pred_region
          _
        $region28: #{middle_forward.5} parent=11 // pred_fallthru
          _
        // Predicated region
        $region29: #{middle_forward.5} parent=11 // pred_check
          %p424 = pneg %p182
        $region30: #{middle_forward.5} parent=11 // pred_check_branch
          %426 = sbr.rel (%p424) target = $region32
        $region31: #{middle_forward.5} parent=11 // pred_region
          _
        $region32: #{middle_forward.5} parent=11 // pred_fallthru
          _
        // Predicated region
        $region33: #{middle_forward.5} parent=11 // pred_check
          %p427 = pneg %p203
        $region34: #{middle_forward.5} parent=11 // pred_check_branch
          %429 = sbr.rel (%p427) target = $region36
        $region35: #{middle_forward.5} parent=11 // pred_region
          _
        $region36: #{middle_forward.5} parent=11 // pred_fallthru
          _
        // Predicated region
        $region37: #{middle_forward.5} parent=11 // pred_check
          %p430 = pneg %p224
        $region38: #{middle_forward.5} parent=11 // pred_check_branch
          %432 = sbr.rel (%p430) target = $region40
        $region39: #{middle_forward.5} parent=11 // pred_region
          _
        $region40: #{middle_forward.5} parent=11 // pred_fallthru
          _
        // Predicated region
        $region41: #{middle_forward.5} parent=11 // pred_check
          %p433 = pneg %p245
        $region42: #{middle_forward.5} parent=11 // pred_check_branch
          %435 = sbr.rel (%p433) target = $region44
        $region43: #{middle_forward.5} parent=11 // pred_region
          _
        $region44: #{middle_forward.5} parent=11 // pred_fallthru
          _
        // Predicated region
        $region45: #{middle_forward.5} parent=11 // pred_check
          %p436 = pneg %p266
        $region46: #{middle_forward.5} parent=11 // pred_check_branch
          %438 = sbr.rel (%p436) target = $region48
        $region47: #{middle_forward.5} parent=11 // pred_region
          _
        $region48: #{middle_forward.5} parent=11 // pred_fallthru
          _
        // Predicated region
        $region49: #{middle_forward.5} parent=11 // pred_check
          %p439 = pneg %p287
        $region50: #{middle_forward.5} parent=11 // pred_check_branch
          %441 = sbr.rel (%p439) target = $region52
        $region51: #{middle_forward.5} parent=11 // pred_region
          _
        $region52: #{middle_forward.5} parent=11 // pred_fallthru
          _
        // Predicated region
        $region53: #{middle_forward.5} parent=11 // pred_check
          %p442 = pneg %p308
        $region54: #{middle_forward.5} parent=11 // pred_check_branch
          %444 = sbr.rel (%p442) target = $region56
        $region55: #{middle_forward.5} parent=11 // pred_region
          _
        $region56: #{middle_forward.5} parent=11 // pred_fallthru
          _
        // Predicated region
        $region57: #{middle_forward.5} parent=11 // pred_check
          %p445 = pneg %p329
        $region58: #{middle_forward.5} parent=11 // pred_check_branch
          %447 = sbr.rel (%p445) target = $region60
        $region59: #{middle_forward.5} parent=11 // pred_region
          _
        $region60: #{middle_forward.5} parent=11 // pred_fallthru
          _
        // Predicated region
        $region61: #{middle_forward.5} parent=11 // pred_check
          %p448 = pneg %p350
        $region62: #{middle_forward.5} parent=11 // pred_check_branch
          %450 = sbr.rel (%p448) target = $region64
        $region63: #{middle_forward.5} parent=11 // pred_region
          _
        $region64: #{middle_forward.5} parent=11 // pred_fallthru
          _
        // Predicated region
        $region65: #{middle_forward.5} parent=11 // pred_check
          %p451 = pneg %p371
        $region66: #{middle_forward.5} parent=11 // pred_check_branch
          %453 = sbr.rel (%p451) target = $region68
        $region67: #{middle_forward.5} parent=11 // pred_region
          _
        $region68: #{middle_forward.5} parent=11 // pred_fallthru
          _
      $region12: #{middle_forward.5} parent=5 // pred_fallthru
        _
      %p454 = scmp.lt.s32.totalorder %s25, 2
      // Predicated region
      $region69: #{middle_forward.5} parent=5 // pred_check
        %p455 = pneg %p454
      $region70: #{middle_forward.5} parent=5 // pred_check_branch
        %457 = sbr.rel (%p455) target = $region72
      $region71: #{middle_forward.5} parent=5 // pred_region
        // Predicated region
        $region73: #{middle_forward.5} parent=71 // pred_check
          %p458 = pneg %p45
        $region74: #{middle_forward.5} parent=71 // pred_check_branch
          %460 = sbr.rel (%p458) target = $region76
        $region75: #{middle_forward.5} parent=71 // pred_region
          %p461 = scmp.lt.s32.totalorder %s25, 1
          %s462 = scalar_select %p461, %s25, 1
          %s463 = smul.addr %s462, 8
          %s464 = scalar_lea.vmem %s0, %s463
        $region76: #{middle_forward.5} parent=71 // pred_fallthru
          _
        // Predicated region
        $region77: #{middle_forward.5} parent=71 // pred_check
          %p465 = pneg %p71
        $region78: #{middle_forward.5} parent=71 // pred_check_branch
          %467 = sbr.rel (%p465) target = $region80
        $region79: #{middle_forward.5} parent=71 // pred_region
          %p468 = scmp.lt.s32.totalorder %s25, 1
          %s469 = scalar_select %p468, %s25, 1
          %s470 = smul.addr %s469, 8
          %s471 = scalar_lea.vmem %s1, %s470
        $region80: #{middle_forward.5} parent=71 // pred_fallthru
          _
      $region72: #{middle_forward.5} parent=5 // pred_fallthru
        _
      %p472 = scmp.le.s32.totalorder 1, %s25
      %p473 = scmp.lt.s32.totalorder %s25, 3
      %p474 = pnand %p472, %p473
      %p475 = pneg %p474
      // Predicated region
      $region81: #{middle_forward.5} parent=5 // pred_check
        _
      $region82: #{middle_forward.5} parent=5 // pred_check_branch
        %477 = sbr.rel (%p474) target = $region84
      $region83: #{middle_forward.5} parent=5 // pred_region
        %s478 = ssub.s32 %s25, 1
        %p479 = scmp.lt.s32.totalorder %s30, 1
        %s480 = scalar_select %p479, %s30, 1
        %s481 = smul.addr %s480, 8
        %s482 = scalar_lea.vmem %s0, %s481
        %p483 = pneg %p51
        %p484 = pneg %p48
        %p485 = scmp.lt.s32.totalorder %s30, 1
        %s486 = scalar_select %p485, %s30, 1
        %s487 = smul.addr %s486, 8
        %s488 = scalar_lea.vmem %s1, %s487
        %p489 = pneg %p77
        %p490 = pneg %p74
        %p491 = pneg %p98
        %p492 = pneg %p95
        %p493 = pneg %p119
        %p494 = pneg %p116
        %p495 = pneg %p140
        %p496 = pneg %p137
        %p497 = pneg %p161
        %p498 = pneg %p158
        %p499 = pneg %p182
        %p500 = pneg %p179
        %p501 = pneg %p203
        %p502 = pneg %p200
        %p503 = pneg %p224
        %p504 = pneg %p221
        %p505 = pneg %p245
        %p506 = pneg %p242
        %p507 = pneg %p266
        %p508 = pneg %p263
        %p509 = pneg %p287
        %p510 = pneg %p284
        %p511 = pneg %p308
        %p512 = pneg %p305
        %p513 = pneg %p329
        %p514 = pneg %p326
        %p515 = pneg %p350
        %p516 = pneg %p347
        %p517 = pneg %p371
        %p518 = pneg %p368
        %p519 = pneg %p397
        %p520 = pneg %p394
        %s521 = sand.u32 %s384, 1
        %s522 = scalar_lea.sflag [#allocation3], %s521
        %s523 = sand.u32 %s384, 1
        %s524 = smul.addr %s523, 8
        %s525 = scalar_lea.vmem [#allocation2], %s524
        %p526 = scmp.lt.s32.totalorder %s30, 1
        %s527 = scalar_select %p526, %s30, 1
        %s528 = smul.addr %s527, 8
        %s529 = scalar_lea.vmem %s0, %s528
        %p530 = scmp.lt.s32.totalorder %s30, 1
        %s531 = scalar_select %p530, %s30, 1
        %s532 = smul.addr %s531, 8
        %s533 = scalar_lea.vmem %s1, %s532
        %v535 = vld [vmem:[%s529] sm:$0xff]
        %v536 = vld [vmem:[%s533] sm:$0xff]
        %v537 = vld [vmem:[%s2] sm:$0x1]
        %v539 = vlaneseq
        %v540 = vshrl.u32 %v539, 7
        %v541 = vsub.s32 0, %v540
        %v542 = vrot.slane %v537, %v541
        %v544 = vsub.f32 %v535, %v542
        %v545 = vld [vmem:[%s3] sm:$0x1]
        %v547 = vlaneseq
        %v548 = vshrl.u32 %v547, 7
        %v549 = vsub.s32 0, %v548
        %v550 = vrot.slane %v545, %v549
        %v552 = vmul.f32 %v544, %v550
        %v553 = vld [vmem:[%s4] sm:$0x1]
        %v555 = vlaneseq
        %v556 = vshrl.u32 %v555, 7
        %v557 = vsub.s32 0, %v556
        %v558 = vrot.slane %v553, %v557
        %v560 = vmul.f32 %v552, %v558
        %v561 = vld [vmem:[%s5] sm:$0x1]
        %v563 = vlaneseq
        %v564 = vshrl.u32 %v563, 7
        %v565 = vsub.s32 0, %v564
        %v566 = vrot.slane %v561, %v565
        %v568 = vadd.f32 %v560, %v566
        %v569 = vxor.u32 %v568, 2147483648
        %v570 = vmul.f32 %v569, 1.442695
        %v571 = vpow.pop %v570
        %v572 = vadd.f32 %v571, 1.0
        %v573 = vrcp.pop %v572
        %v574 = vmul.f32 1.0, %v573
        %v575 = vmul.f32 %v568, %v574
        %v576 = vpack.c.bf16 %v575, %v575
        %v577 = vld [vmem:[%s6] sm:$0xf]
        %v578 = vld [vmem:[%s6 + $0x4] sm:$0xf]
        %v579 = vld [vmem:[%s6 + $0x8] sm:$0xf]
        %v580 = vld [vmem:[%s6 + $0xc] sm:$0xf]
        %v581 = vld [vmem:[%s7] sm:$0x1]
        %v583 = vlaneseq
        %v584 = vshrl.u32 %v583, 7
        %v585 = vsub.s32 0, %v584
        %v586 = vrot.slane %v581, %v585
        %v592 = vunpack.c.l.b16 %v577
        %v593 = vunpack.c.l.b16 %v578
        %v594 = vunpack.c.l.b16 %v579
        %v595 = vunpack.c.l.b16 %v580
        %v596 = vpack.c.b16 %v593, %v592
        %v597 = vpack.c.b16 %v595, %v594
        %vm600 = vcmask 261120
        %v602 = vsel %vm600, %v576, 0
        %604 = vmatprep.subr.bf16.mxu0 0
        %605 = vmatpush1.bf16.msra.mxu0 %v596
        %606 = vmatprep.subr.bf16.mxu0 0
        %607 = vmatpush1.bf16.msra.mxu0 %v597
        %608 = vmatprep.subr.bf16.mxu0 0
        %609 = vmatpush1.bf16.msra.mxu0 0
        %610 = vmatprep.subr.bf16.mxu0 0
        %611 = vmatpush1.bf16.msra.mxu0 0
        %612 = vmatprep.subr.bf16.mxu0 0
        %613 = vmatpush1.bf16.msra.mxu0 0
        %614 = vmatprep.subr.bf16.mxu0 0
        %615 = vmatpush1.bf16.msra.mxu0 0
        %616 = vmatprep.subr.bf16.mxu0 0
        %617 = vmatpush1.bf16.msra.mxu0 0
        %618 = vmatprep.subr.bf16.mxu0 0
        %619 = vmatpush1.bf16.msra.mxu0 0
        %620 = vmatprep.subr.bf16.mxu0 0
        %621 = vmatpush1.bf16.msra.mxu0 0
        %622 = vmatprep.subr.bf16.mxu0 0
        %623 = vmatpush1.bf16.msra.mxu0 0
        %624 = vmatprep.subr.bf16.mxu0 0
        %625 = vmatpush1.bf16.msra.mxu0 0
        %626 = vmatprep.subr.bf16.mxu0 0
        %627 = vmatpush1.bf16.msra.mxu0 0
        %628 = vmatprep.subr.bf16.mxu0 0
        %629 = vmatpush1.bf16.msra.mxu0 0
        %630 = vmatprep.subr.bf16.mxu0 0
        %631 = vmatpush1.bf16.msra.mxu0 0
        %632 = vmatprep.subr.bf16.mxu0 0
        %633 = vmatpush1.bf16.msra.mxu0 0
        %634 = vmatprep.subr.bf16.mxu0 0
        %635 = vmatpush1.bf16.msra.mxu0 0
        %636 = vmatprep.mubr.bf16.mxu0 0
        %637 = vmatmul.mubr.bf16.gmra.mrb[0].mxu0 %v602
        %v638 = vpop.f32.mrb[0].mxu0
        %v639 = vadd.f32 %v586, %v638
        %v640 = vpop.f32.mrb[0].mxu0
        %v641 = vpop.f32.mrb[0].mxu0
        %v642 = vpop.f32.mrb[0].mxu0
        %643 = vdwg.mxu0
        %v644 = vadd.f32 %v536, %v639
        %v645 = vld [vmem:[%s8] sm:$0x1]
        %v646 = vld [vmem:[%s9] sm:$0x1]
        %v647 = vsel %vm600, %v644, 0.0
        %648 = vadd.xlane.f32.xlu0 %v647
        %v649 = vpop.xlane.xlu0 %648
        %v650 = vrcp.pop 32.0
        %v651 = vmul.f32 %v649, %v650
        %v652 = vsub.f32 %v644, %v651
        %v653 = vmul.f32 %v652, %v652
        %v654 = vsel %vm600, %v653, 0.0
        %655 = vadd.xlane.f32.xlu0 %v654
        %v656 = vpop.xlane.xlu0 %655
        %v657 = vmul.f32 %v656, %v650
        %v658 = vadd.f32 %v657, 1e-05
        %v659 = vrsqrt.pop %v658
        %v660 = vmul.f32 %v652, %v659
        %v662 = vlaneseq
        %v663 = vshrl.u32 %v662, 7
        %v664 = vsub.s32 0, %v663
        %v665 = vrot.slane %v645, %v664
        %v667 = vmul.f32 %v660, %v665
        %v669 = vlaneseq
        %v670 = vshrl.u32 %v669, 7
        %v671 = vsub.s32 0, %v670
        %v672 = vrot.slane %v646, %v671
        %v674 = vadd.f32 %v667, %v672
        %v675 = vpack.c.bf16 %v674, %v674
        %v676 = vld [vmem:[%s10] sm:$0xf]
        %v677 = vld [vmem:[%s10 + $0x4] sm:$0xf]
        %v678 = vld [vmem:[%s10 + $0x8] sm:$0xf]
        %v679 = vld [vmem:[%s10 + $0xc] sm:$0xf]
        %v680 = vld [vmem:[%s11] sm:$0x1]
        %v682 = vlaneseq
        %v683 = vshrl.u32 %v682, 7
        %v684 = vsub.s32 0, %v683
        %v685 = vrot.slane %v680, %v684
        %v691 = vunpack.c.l.b16 %v676
        %v692 = vunpack.c.l.b16 %v677
        %v693 = vunpack.c.l.b16 %v678
        %v694 = vunpack.c.l.b16 %v679
        %v695 = vpack.c.b16 %v692, %v691
        %v696 = vpack.c.b16 %v694, %v693
        %v700 = vsel %vm600, %v675, 0
        %702 = vmatprep.subr.bf16.mxu0 0
        %703 = vmatpush1.bf16.msra.mxu0 %v695
        %704 = vmatprep.subr.bf16.mxu0 0
        %705 = vmatpush1.bf16.msra.mxu0 %v696
        %706 = vmatprep.subr.bf16.mxu0 0
        %707 = vmatpush1.bf16.msra.mxu0 0
        %708 = vmatprep.subr.bf16.mxu0 0
        %709 = vmatpush1.bf16.msra.mxu0 0
        %710 = vmatprep.subr.bf16.mxu0 0
        %711 = vmatpush1.bf16.msra.mxu0 0
        %712 = vmatprep.subr.bf16.mxu0 0
        %713 = vmatpush1.bf16.msra.mxu0 0
        %714 = vmatprep.subr.bf16.mxu0 0
        %715 = vmatpush1.bf16.msra.mxu0 0
        %716 = vmatprep.subr.bf16.mxu0 0
        %717 = vmatpush1.bf16.msra.mxu0 0
        %718 = vmatprep.subr.bf16.mxu0 0
        %719 = vmatpush1.bf16.msra.mxu0 0
        %720 = vmatprep.subr.bf16.mxu0 0
        %721 = vmatpush1.bf16.msra.mxu0 0
        %722 = vmatprep.subr.bf16.mxu0 0
        %723 = vmatpush1.bf16.msra.mxu0 0
        %724 = vmatprep.subr.bf16.mxu0 0
        %725 = vmatpush1.bf16.msra.mxu0 0
        %726 = vmatprep.subr.bf16.mxu0 0
        %727 = vmatpush1.bf16.msra.mxu0 0
        %728 = vmatprep.subr.bf16.mxu0 0
        %729 = vmatpush1.bf16.msra.mxu0 0
        %730 = vmatprep.subr.bf16.mxu0 0
        %731 = vmatpush1.bf16.msra.mxu0 0
        %732 = vmatprep.subr.bf16.mxu0 0
        %733 = vmatpush1.bf16.msra.mxu0 0
        %734 = vmatprep.mubr.bf16.mxu0 0
        %735 = vmatmul.mubr.bf16.gmra.mrb[0].mxu0 %v700
        %v736 = vpop.f32.mrb[0].mxu0
        %v737 = vadd.f32 %v685, %v736
        %v738 = vpop.f32.mrb[0].mxu0
        %v739 = vpop.f32.mrb[0].mxu0
        %v740 = vpop.f32.mrb[0].mxu0
        %741 = vdwg.mxu0
        %v742 = vxor.u32 %v737, 2147483648
        %v743 = vmul.f32 %v742, 1.442695
        %v744 = vpow.pop %v743
        %v745 = vadd.f32 %v744, 1.0
        %v746 = vrcp.pop %v745
        %v747 = vmul.f32 1.0, %v746
        %v748 = vmul.f32 %v737, %v747
        %v749 = vpack.c.bf16 %v748, %v748
        %v750 = vld [vmem:[%s12] sm:$0xf]
        %v751 = vld [vmem:[%s12 + $0x4] sm:$0xf]
        %v752 = vld [vmem:[%s12 + $0x8] sm:$0xf]
        %v753 = vld [vmem:[%s12 + $0xc] sm:$0xf]
        %v754 = vld [vmem:[%s12 + $0x10] sm:$0xf]
        %v755 = vld [vmem:[%s12 + $0x14] sm:$0xf]
        %v756 = vld [vmem:[%s12 + $0x18] sm:$0xf]
        %v757 = vld [vmem:[%s12 + $0x1c] sm:$0xf]
        %v758 = vld [vmem:[%s12 + $0x20] sm:$0xf]
        %v759 = vld [vmem:[%s12 + $0x24] sm:$0xf]
        %v760 = vld [vmem:[%s12 + $0x28] sm:$0xf]
        %v761 = vld [vmem:[%s12 + $0x2c] sm:$0xf]
        %v762 = vld [vmem:[%s12 + $0x30] sm:$0xf]
        %v763 = vld [vmem:[%s12 + $0x34] sm:$0xf]
        %v764 = vld [vmem:[%s12 + $0x38] sm:$0xf]
        %v765 = vld [vmem:[%s12 + $0x3c] sm:$0xf]
        %v766 = vld [vmem:[%s13] sm:$0x1]
        %v768 = vlaneseq
        %v769 = vshrl.u32 %v768, 7
        %v770 = vsub.s32 0, %v769
        %v771 = vrot.slane %v766, %v770
        %v789 = vunpack.c.l.b16 %v750
        %v790 = vunpack.c.l.b16 %v751
        %v791 = vunpack.c.l.b16 %v752
        %v792 = vunpack.c.l.b16 %v753
        %v793 = vunpack.c.l.b16 %v754
        %v794 = vunpack.c.l.b16 %v755
        %v795 = vunpack.c.l.b16 %v756
        %v796 = vunpack.c.l.b16 %v757
        %v797 = vunpack.c.l.b16 %v758
        %v798 = vunpack.c.l.b16 %v759
        %v799 = vunpack.c.l.b16 %v760
        %v800 = vunpack.c.l.b16 %v761
        %v801 = vunpack.c.l.b16 %v762
        %v802 = vunpack.c.l.b16 %v763
        %v803 = vunpack.c.l.b16 %v764
        %v804 = vunpack.c.l.b16 %v765
        %v805 = vpack.c.b16 %v790, %v789
        %v806 = vpack.c.b16 %v792, %v791
        %v807 = vpack.c.b16 %v794, %v793
        %v808 = vpack.c.b16 %v796, %v795
        %v809 = vpack.c.b16 %v798, %v797
        %v810 = vpack.c.b16 %v800, %v799
        %v811 = vpack.c.b16 %v802, %v801
        %v812 = vpack.c.b16 %v804, %v803
        %821 = vmatprep.subr.bf16.mxu0 0
        %822 = vmatpush1.bf16.msra.mxu0 %v805
        %823 = vmatprep.subr.bf16.mxu0 0
        %824 = vmatpush1.bf16.msra.mxu0 %v806
        %825 = vmatprep.subr.bf16.mxu0 0
        %826 = vmatpush1.bf16.msra.mxu0 %v807
        %827 = vmatprep.subr.bf16.mxu0 0
        %828 = vmatpush1.bf16.msra.mxu0 %v808
        %829 = vmatprep.subr.bf16.mxu0 0
        %830 = vmatpush1.bf16.msra.mxu0 %v809
        %831 = vmatprep.subr.bf16.mxu0 0
        %832 = vmatpush1.bf16.msra.mxu0 %v810
        %833 = vmatprep.subr.bf16.mxu0 0
        %834 = vmatpush1.bf16.msra.mxu0 %v811
        %835 = vmatprep.subr.bf16.mxu0 0
        %836 = vmatpush1.bf16.msra.mxu0 %v812
        %837 = vmatprep.subr.bf16.mxu0 0
        %838 = vmatpush1.bf16.msra.mxu0 0
        %839 = vmatprep.subr.bf16.mxu0 0
        %840 = vmatpush1.bf16.msra.mxu0 0
        %841 = vmatprep.subr.bf16.mxu0 0
        %842 = vmatpush1.bf16.msra.mxu0 0
        %843 = vmatprep.subr.bf16.mxu0 0
        %844 = vmatpush1.bf16.msra.mxu0 0
        %845 = vmatprep.subr.bf16.mxu0 0
        %846 = vmatpush1.bf16.msra.mxu0 0
        %847 = vmatprep.subr.bf16.mxu0 0
        %848 = vmatpush1.bf16.msra.mxu0 0
        %849 = vmatprep.subr.bf16.mxu0 0
        %850 = vmatpush1.bf16.msra.mxu0 0
        %851 = vmatprep.subr.bf16.mxu0 0
        %852 = vmatpush1.bf16.msra.mxu0 0
        %853 = vmatprep.mubr.bf16.mxu0 0
        %854 = vmatmul.mubr.bf16.gmra.mrb[0].mxu0 %v749
        %v855 = vpop.f32.mrb[0].mxu0
        %v856 = vadd.f32 %v771, %v855
        %v857 = vpop.f32.mrb[0].mxu0
        %v858 = vpop.f32.mrb[0].mxu0
        %v859 = vpop.f32.mrb[0].mxu0
        %860 = vdwg.mxu0
        %v861 = vmul.f32 %v856, 0.5
        %v862 = vadd.f32 %v644, %v861
        %v863 = vld [vmem:[%s14] sm:$0x1]
        %v864 = vld [vmem:[%s15] sm:$0x1]
        %v865 = vsel %vm600, %v862, 0.0
        %866 = vadd.xlane.f32.xlu0 %v865
        %v867 = vpop.xlane.xlu0 %866
        %v868 = vmul.f32 %v867, %v650
        %v869 = vsub.f32 %v862, %v868
        %v870 = vmul.f32 %v869, %v869
        %v871 = vsel %vm600, %v870, 0.0
        %872 = vadd.xlane.f32.xlu0 %v871
        %v873 = vpop.xlane.xlu0 %872
        %v874 = vmul.f32 %v873, %v650
        %v875 = vadd.f32 %v874, 1e-05
        %v876 = vrsqrt.pop %v875
        %v877 = vmul.f32 %v869, %v876
        %v879 = vlaneseq
        %v880 = vshrl.u32 %v879, 7
        %v881 = vsub.s32 0, %v880
        %v882 = vrot.slane %v863, %v881
        %v884 = vmul.f32 %v877, %v882
        %v886 = vlaneseq
        %v887 = vshrl.u32 %v886, 7
        %v888 = vsub.s32 0, %v887
        %v889 = vrot.slane %v864, %v888
        %v891 = vadd.f32 %v884, %v889
        %892 = vst.msk [vmem:[%s525] sm:$0xff] %vm600, %v891
        %s893 = sand.u32 %s384, 1
        %s894 = scalar_lea.sflag [#allocation3], %s893
        %s895 = sand.u32 %s384, 1
        %s896 = smul.addr %s895, 8
        %s897 = scalar_lea.vmem [#allocation2], %s896
        // Predicated region
        $region85: #{middle_forward.5} parent=83 // pred_check
          %p898 = pneg %p394
        $region86: #{middle_forward.5} parent=83 // pred_check_branch
          %900 = sbr.rel (%p898) target = $region88
        $region87: #{middle_forward.5} parent=83 // pred_region
          %s902 = ssub.s32 128, 128
          %903 = vsyncadd %s894, %s902
          %s904 = smul.addr %s30, 128
          %s905 = scalar_lea.hbm %s16, %s904
          %s907 = sshll.u32 %s897, 4
          %s908 = int_to_ptr.vmem [resolvable:$true] %s907
          %910 = dma.vmem_to_hbm [thread:$0]  %s908, 128, %s905, %s894
        $region88: #{middle_forward.5} parent=83 // pred_fallthru
          _
      $region84: #{middle_forward.5} parent=5 // pred_fallthru
        _
      %p911 = scmp.le.s32.totalorder 2, %s25
      // Predicated region
      $region89: #{middle_forward.5} parent=5 // pred_check
        %p912 = pneg %p911
      $region90: #{middle_forward.5} parent=5 // pred_check_branch
        %914 = sbr.rel (%p912) target = $region92
      $region91: #{middle_forward.5} parent=5 // pred_region
        %s915 = ssub.s32 %s25, 2
        // Predicated region
        $region93: #{middle_forward.5} parent=91 // pred_check
          %p916 = pneg %p400
        $region94: #{middle_forward.5} parent=91 // pred_check_branch
          %918 = sbr.rel (%p916) target = $region96
        $region95: #{middle_forward.5} parent=91 // pred_region
          %s919 = sand.u32 %s385, 1
          %s920 = scalar_lea.sflag [#allocation3], %s919
          %s921 = sand.u32 %s385, 1
          %s922 = smul.addr %s921, 8
          %s923 = scalar_lea.vmem [#allocation2], %s922
          %924 = dma.done %s920, 128
        $region96: #{middle_forward.5} parent=91 // pred_fallthru
          _
      $region92: #{middle_forward.5} parent=5 // pred_fallthru
        _
    $region6: #{middle_forward.5} parent=1 // loop_footer
      %s29 = sadd.s32 1, %s25
    $region7: #{middle_forward.5} parent=1 // loop_footer_branch
      %24 = sbr.rel target = $region3
    $region8: #{middle_forward.5} parent=1 // loop_exit
      _
    %925 = vsyncpa [#allocation3], 1
    %s926 = scalar_lea.sflag [#allocation3], 1
    %927 = vsyncpa %s926, 1

// kernel: middle_forward.4
$region0: #{middle_forward.4}
  #allocation0 [shape = 'u32[]', space=smem, size = 0x4, offset = 0x4, fixed_abs, tag = 'smem constant byte address 0x4 - core index']
  #allocation1 [shape = 'u32[144,128]{1,0:T(1,128)}', space=vmem, size = 0x12000, scoped, tag = 'internal scratch']
  #allocation2 [shape = 'f32[8,32]{1,0:T(8,128)}', space=vmem, size = 0x1000, scoped, tag = 'scratch operand']
  %s0 = inlined_call_operand.vmem [shape: f32[2,8,32], index: 0, kind: input, shape index: {}]
  %s1 = inlined_call_operand.vmem [shape: f32[1,32], index: 1, kind: input, shape index: {}]
  %s2 = inlined_call_operand.vmem [shape: f32[1,32], index: 2, kind: input, shape index: {}]
  %s3 = inlined_call_operand.vmem [shape: bf16[32,96], index: 3, kind: input, shape index: {}]
  %s4 = inlined_call_operand.vmem [shape: f32[1,96], index: 4, kind: input, shape index: {}]
  %s5 = inlined_call_operand.vmem [shape: bf16[32,32], index: 5, kind: input, shape index: {}]
  %s6 = inlined_call_operand.vmem [shape: f32[1,32], index: 6, kind: input, shape index: {}]
  %s7 = inlined_call_operand.vmem [shape: f32[1,32], index: 7, kind: input, shape index: {}]
  %s8 = inlined_call_operand.vmem [shape: f32[1,32], index: 8, kind: input, shape index: {}]
  %s9 = inlined_call_operand.vmem [shape: bf16[32,64], index: 9, kind: input, shape index: {}]
  %s10 = inlined_call_operand.vmem [shape: f32[1,64], index: 10, kind: input, shape index: {}]
  %s11 = inlined_call_operand.vmem [shape: f32[31,32], index: 11, kind: input, shape index: {}]
  %s12 = inlined_call_operand.vmem [shape: f32[2,8,32], index: 12, kind: output, shape index: {0}]
  %s13 = inlined_call_operand.vmem [shape: f32[2,8,32], index: 13, kind: output, shape index: {1}]
  %s14 = inlined_call_operand.vmem [shape: f32[2,1,32], index: 14, kind: output, shape index: {2}]
  %s15 = inlined_call_operand.vmem [shape: f32[2,1,32], index: 15, kind: output, shape index: {3}]
  %16 = xla_tuple %s12, %s13, %s14, %s15
  %s17 = sld [smem:[#allocation0]]
  $region105: #{middle_forward.4} parent=0
    _
  %s19 = ssub.s32 1, %s17
  %s20 = scalar_select 0, %s19, %s17
  loop: start=0, step=1, limit=4
  $region2: #{middle_forward.4} parent=0 // loop_pre_header
    _
  $region3: #{middle_forward.4} parent=0 // loop_header
    %s22 = sphi 0, %s26
    %p23 = scmp.ge.s32.totalorder %s22, 4
    %s32 = sphi 0, %s34
    %s35 = sphi 0, %s32
    %s36 = sphi 0, %s35
    %s52 = sphi 0, %s36
    %s56 = sphi 0, %s56
    %s58 = sphi 0, %s56
    %s59 = sphi 0, %s58
    %s73 = sphi 0, %s59
    %s77 = sphi 0, %s77
    %s79 = sphi 0, %s77
    %s80 = sphi 0, %s79
    %s94 = sphi 0, %s80
    %s98 = sphi 0, %s98
    %s100 = sphi 0, %s98
    %s101 = sphi 0, %s100
    %s115 = sphi 0, %s101
    %s119 = sphi 0, %s119
    %s121 = sphi 0, %s119
    %s122 = sphi 0, %s121
    %s136 = sphi 0, %s122
    %s140 = sphi 0, %s140
    %s142 = sphi 0, %s140
    %s143 = sphi 0, %s142
    %s157 = sphi 0, %s143
    %s161 = sphi 0, %s161
    %s163 = sphi 0, %s161
    %s164 = sphi 0, %s163
    %s178 = sphi 0, %s164
    %s182 = sphi 0, %s182
    %s184 = sphi 0, %s182
    %s185 = sphi 0, %s184
    %s199 = sphi 0, %s185
    %s203 = sphi 0, %s203
    %s205 = sphi 0, %s203
    %s206 = sphi 0, %s205
    %s220 = sphi 0, %s206
    %s224 = sphi 0, %s224
    %s226 = sphi 0, %s224
    %s227 = sphi 0, %s226
    %s241 = sphi 0, %s227
    %s245 = sphi 0, %s245
    %s247 = sphi 0, %s245
    %s248 = sphi 0, %s247
    %s262 = sphi 0, %s248
    %s266 = sphi 0, %s266
    %s268 = sphi 0, %s266
    %s269 = sphi 0, %s268
    %s283 = sphi 0, %s269
    %s289 = sphi 0, %s291
    %s292 = sphi 0, %s289
    %s293 = sphi 0, %s292
    %s309 = sphi 0, %s293
    %s315 = sphi 0, %s317
    %s318 = sphi 0, %s315
    %s319 = sphi 0, %s318
    %s335 = sphi 0, %s319
    %s341 = sphi 0, %s343
    %s344 = sphi 0, %s341
    %s345 = sphi 0, %s344
    %s361 = sphi 0, %s345
    %s367 = sphi 0, %s369
    %s370 = sphi 0, %s367
    %s371 = sphi 0, %s370
    %s387 = sphi 0, %s371
  $region4: #{middle_forward.4} parent=0 // loop_header_branch
    %25 = sbr.rel (%p23) target = $region8
  $region5: #{middle_forward.4} parent=0 // loop_body
    %s27 = ssub.s32 %s22, 1
    %s28 = ssub.s32 %s22, 2
    %s29 = sadd.s32 %s22, 1
    %s30 = ssub.s32 %s22, %s29
    %p31 = scmp.eq.s32.totalorder %s30, 0
    %s33 = sadd.s32 %s32, 1
    %s34 = scalar_select %p31, %s32, %s33
    %p37 = pneg %p31
    %p38 = scmp.eq.s32.totalorder %s22, 1
    %p39 = por %p37, %p38
    %p40 = scmp.ne.s32.totalorder %s32, %s35
    %p41 = scmp.eq.s32.totalorder %s22, 0
    %p42 = por %p40, %p41
    %p43 = scmp.ne.s32.totalorder %s32, %s35
    %p44 = scmp.eq.s32.totalorder %s27, 1
    %p45 = por %p43, %p44
    %p46 = scmp.ne.s32.totalorder %s35, %s36
    %p47 = scmp.eq.s32.totalorder %s27, 0
    %p48 = por %p46, %p47
    %p49 = scmp.ne.s32.totalorder %s35, %s36
    %p50 = scmp.eq.s32.totalorder %s28, 1
    %p51 = por %p49, %p50
    %p53 = scmp.ne.s32.totalorder %s36, %s52
    %p54 = scmp.eq.s32.totalorder %s28, 0
    %p55 = por %p53, %p54
    %s57 = sadd.s32 %s56, 1
    %p60 = scmp.eq.s32.totalorder %s22, 1
    %p61 = scmp.ne.s32.totalorder %s56, %s58
    %p62 = scmp.eq.s32.totalorder %s22, 0
    %p63 = por %p61, %p62
    %p64 = scmp.ne.s32.totalorder %s56, %s58
    %p65 = scmp.eq.s32.totalorder %s27, 1
    %p66 = por %p64, %p65
    %p67 = scmp.ne.s32.totalorder %s58, %s59
    %p68 = scmp.eq.s32.totalorder %s27, 0
    %p69 = por %p67, %p68
    %p70 = scmp.ne.s32.totalorder %s58, %s59
    %p71 = scmp.eq.s32.totalorder %s28, 1
    %p72 = por %p70, %p71
    %p74 = scmp.ne.s32.totalorder %s59, %s73
    %p75 = scmp.eq.s32.totalorder %s28, 0
    %p76 = por %p74, %p75
    %s78 = sadd.s32 %s77, 1
    %p81 = scmp.eq.s32.totalorder %s22, 1
    %p82 = scmp.ne.s32.totalorder %s77, %s79
    %p83 = scmp.eq.s32.totalorder %s22, 0
    %p84 = por %p82, %p83
    %p85 = scmp.ne.s32.totalorder %s77, %s79
    %p86 = scmp.eq.s32.totalorder %s27, 1
    %p87 = por %p85, %p86
    %p88 = scmp.ne.s32.totalorder %s79, %s80
    %p89 = scmp.eq.s32.totalorder %s27, 0
    %p90 = por %p88, %p89
    %p91 = scmp.ne.s32.totalorder %s79, %s80
    %p92 = scmp.eq.s32.totalorder %s28, 1
    %p93 = por %p91, %p92
    %p95 = scmp.ne.s32.totalorder %s80, %s94
    %p96 = scmp.eq.s32.totalorder %s28, 0
    %p97 = por %p95, %p96
    %s99 = sadd.s32 %s98, 1
    %p102 = scmp.eq.s32.totalorder %s22, 1
    %p103 = scmp.ne.s32.totalorder %s98, %s100
    %p104 = scmp.eq.s32.totalorder %s22, 0
    %p105 = por %p103, %p104
    %p106 = scmp.ne.s32.totalorder %s98, %s100
    %p107 = scmp.eq.s32.totalorder %s27, 1
    %p108 = por %p106, %p107
    %p109 = scmp.ne.s32.totalorder %s100, %s101
    %p110 = scmp.eq.s32.totalorder %s27, 0
    %p111 = por %p109, %p110
    %p112 = scmp.ne.s32.totalorder %s100, %s101
    %p113 = scmp.eq.s32.totalorder %s28, 1
    %p114 = por %p112, %p113
    %p116 = scmp.ne.s32.totalorder %s101, %s115
    %p117 = scmp.eq.s32.totalorder %s28, 0
    %p118 = por %p116, %p117
    %s120 = sadd.s32 %s119, 1
    %p123 = scmp.eq.s32.totalorder %s22, 1
    %p124 = scmp.ne.s32.totalorder %s119, %s121
    %p125 = scmp.eq.s32.totalorder %s22, 0
    %p126 = por %p124, %p125
    %p127 = scmp.ne.s32.totalorder %s119, %s121
    %p128 = scmp.eq.s32.totalorder %s27, 1
    %p129 = por %p127, %p128
    %p130 = scmp.ne.s32.totalorder %s121, %s122
    %p131 = scmp.eq.s32.totalorder %s27, 0
    %p132 = por %p130, %p131
    %p133 = scmp.ne.s32.totalorder %s121, %s122
    %p134 = scmp.eq.s32.totalorder %s28, 1
    %p135 = por %p133, %p134
    %p137 = scmp.ne.s32.totalorder %s122, %s136
    %p138 = scmp.eq.s32.totalorder %s28, 0
    %p139 = por %p137, %p138
    %s141 = sadd.s32 %s140, 1
    %p144 = scmp.eq.s32.totalorder %s22, 1
    %p145 = scmp.ne.s32.totalorder %s140, %s142
    %p146 = scmp.eq.s32.totalorder %s22, 0
    %p147 = por %p145, %p146
    %p148 = scmp.ne.s32.totalorder %s140, %s142
    %p149 = scmp.eq.s32.totalorder %s27, 1
    %p150 = por %p148, %p149
    %p151 = scmp.ne.s32.totalorder %s142, %s143
    %p152 = scmp.eq.s32.totalorder %s27, 0
    %p153 = por %p151, %p152
    %p154 = scmp.ne.s32.totalorder %s142, %s143
    %p155 = scmp.eq.s32.totalorder %s28, 1
    %p156 = por %p154, %p155
    %p158 = scmp.ne.s32.totalorder %s143, %s157
    %p159 = scmp.eq.s32.totalorder %s28, 0
    %p160 = por %p158, %p159
    %s162 = sadd.s32 %s161, 1
    %p165 = scmp.eq.s32.totalorder %s22, 1
    %p166 = scmp.ne.s32.totalorder %s161, %s163
    %p167 = scmp.eq.s32.totalorder %s22, 0
    %p168 = por %p166, %p167
    %p169 = scmp.ne.s32.totalorder %s161, %s163
    %p170 = scmp.eq.s32.totalorder %s27, 1
    %p171 = por %p169, %p170
    %p172 = scmp.ne.s32.totalorder %s163, %s164
    %p173 = scmp.eq.s32.totalorder %s27, 0
    %p174 = por %p172, %p173
    %p175 = scmp.ne.s32.totalorder %s163, %s164
    %p176 = scmp.eq.s32.totalorder %s28, 1
    %p177 = por %p175, %p176
    %p179 = scmp.ne.s32.totalorder %s164, %s178
    %p180 = scmp.eq.s32.totalorder %s28, 0
    %p181 = por %p179, %p180
    %s183 = sadd.s32 %s182, 1
    %p186 = scmp.eq.s32.totalorder %s22, 1
    %p187 = scmp.ne.s32.totalorder %s182, %s184
    %p188 = scmp.eq.s32.totalorder %s22, 0
    %p189 = por %p187, %p188
    %p190 = scmp.ne.s32.totalorder %s182, %s184
    %p191 = scmp.eq.s32.totalorder %s27, 1
    %p192 = por %p190, %p191
    %p193 = scmp.ne.s32.totalorder %s184, %s185
    %p194 = scmp.eq.s32.totalorder %s27, 0
    %p195 = por %p193, %p194
    %p196 = scmp.ne.s32.totalorder %s184, %s185
    %p197 = scmp.eq.s32.totalorder %s28, 1
    %p198 = por %p196, %p197
    %p200 = scmp.ne.s32.totalorder %s185, %s199
    %p201 = scmp.eq.s32.totalorder %s28, 0
    %p202 = por %p200, %p201
    %s204 = sadd.s32 %s203, 1
    %p207 = scmp.eq.s32.totalorder %s22, 1
    %p208 = scmp.ne.s32.totalorder %s203, %s205
    %p209 = scmp.eq.s32.totalorder %s22, 0
    %p210 = por %p208, %p209
    %p211 = scmp.ne.s32.totalorder %s203, %s205
    %p212 = scmp.eq.s32.totalorder %s27, 1
    %p213 = por %p211, %p212
    %p214 = scmp.ne.s32.totalorder %s205, %s206
    %p215 = scmp.eq.s32.totalorder %s27, 0
    %p216 = por %p214, %p215
    %p217 = scmp.ne.s32.totalorder %s205, %s206
    %p218 = scmp.eq.s32.totalorder %s28, 1
    %p219 = por %p217, %p218
    %p221 = scmp.ne.s32.totalorder %s206, %s220
    %p222 = scmp.eq.s32.totalorder %s28, 0
    %p223 = por %p221, %p222
    %s225 = sadd.s32 %s224, 1
    %p228 = scmp.eq.s32.totalorder %s22, 1
    %p229 = scmp.ne.s32.totalorder %s224, %s226
    %p230 = scmp.eq.s32.totalorder %s22, 0
    %p231 = por %p229, %p230
    %p232 = scmp.ne.s32.totalorder %s224, %s226
    %p233 = scmp.eq.s32.totalorder %s27, 1
    %p234 = por %p232, %p233
    %p235 = scmp.ne.s32.totalorder %s226, %s227
    %p236 = scmp.eq.s32.totalorder %s27, 0
    %p237 = por %p235, %p236
    %p238 = scmp.ne.s32.totalorder %s226, %s227
    %p239 = scmp.eq.s32.totalorder %s28, 1
    %p240 = por %p238, %p239
    %p242 = scmp.ne.s32.totalorder %s227, %s241
    %p243 = scmp.eq.s32.totalorder %s28, 0
    %p244 = por %p242, %p243
    %s246 = sadd.s32 %s245, 1
    %p249 = scmp.eq.s32.totalorder %s22, 1
    %p250 = scmp.ne.s32.totalorder %s245, %s247
    %p251 = scmp.eq.s32.totalorder %s22, 0
    %p252 = por %p250, %p251
    %p253 = scmp.ne.s32.totalorder %s245, %s247
    %p254 = scmp.eq.s32.totalorder %s27, 1
    %p255 = por %p253, %p254
    %p256 = scmp.ne.s32.totalorder %s247, %s248
    %p257 = scmp.eq.s32.totalorder %s27, 0
    %p258 = por %p256, %p257
    %p259 = scmp.ne.s32.totalorder %s247, %s248
    %p260 = scmp.eq.s32.totalorder %s28, 1
    %p261 = por %p259, %p260
    %p263 = scmp.ne.s32.totalorder %s248, %s262
    %p264 = scmp.eq.s32.totalorder %s28, 0
    %p265 = por %p263, %p264
    %s267 = sadd.s32 %s266, 1
    %p270 = scmp.eq.s32.totalorder %s22, 1
    %p271 = scmp.ne.s32.totalorder %s266, %s268
    %p272 = scmp.eq.s32.totalorder %s22, 0
    %p273 = por %p271, %p272
    %p274 = scmp.ne.s32.totalorder %s266, %s268
    %p275 = scmp.eq.s32.totalorder %s27, 1
    %p276 = por %p274, %p275
    %p277 = scmp.ne.s32.totalorder %s268, %s269
    %p278 = scmp.eq.s32.totalorder %s27, 0
    %p279 = por %p277, %p278
    %p280 = scmp.ne.s32.totalorder %s268, %s269
    %p281 = scmp.eq.s32.totalorder %s28, 1
    %p282 = por %p280, %p281
    %p284 = scmp.ne.s32.totalorder %s269, %s283
    %p285 = scmp.eq.s32.totalorder %s28, 0
    %p286 = por %p284, %p285
    %s287 = ssub.s32 %s22, %s29
    %p288 = scmp.eq.s32.totalorder %s287, 0
    %s290 = sadd.s32 %s289, 1
    %s291 = scalar_select %p288, %s289, %s290
    %p294 = pneg %p288
    %p295 = scmp.eq.s32.totalorder %s22, 1
    %p296 = por %p294, %p295
    %p297 = scmp.ne.s32.totalorder %s289, %s292
    %p298 = scmp.eq.s32.totalorder %s22, 0
    %p299 = por %p297, %p298
    %p300 = scmp.ne.s32.totalorder %s289, %s292
    %p301 = scmp.eq.s32.totalorder %s27, 1
    %p302 = por %p300, %p301
    %p303 = scmp.ne.s32.totalorder %s292, %s293
    %p304 = scmp.eq.s32.totalorder %s27, 0
    %p305 = por %p303, %p304
    %p306 = scmp.ne.s32.totalorder %s292, %s293
    %p307 = scmp.eq.s32.totalorder %s28, 1
    %p308 = por %p306, %p307
    %p310 = scmp.ne.s32.totalorder %s293, %s309
    %p311 = scmp.eq.s32.totalorder %s28, 0
    %p312 = por %p310, %p311
    %s313 = ssub.s32 %s22, %s29
    %p314 = scmp.eq.s32.totalorder %s313, 0
    %s316 = sadd.s32 %s315, 1
    %s317 = scalar_select %p314, %s315, %s316
    %p320 = pneg %p314
    %p321 = scmp.eq.s32.totalorder %s22, 1
    %p322 = por %p320, %p321
    %p323 = scmp.ne.s32.totalorder %s315, %s318
    %p324 = scmp.eq.s32.totalorder %s22, 0
    %p325 = por %p323, %p324
    %p326 = scmp.ne.s32.totalorder %s315, %s318
    %p327 = scmp.eq.s32.totalorder %s27, 1
    %p328 = por %p326, %p327
    %p329 = scmp.ne.s32.totalorder %s318, %s319
    %p330 = scmp.eq.s32.totalorder %s27, 0
    %p331 = por %p329, %p330
    %p332 = scmp.ne.s32.totalorder %s318, %s319
    %p333 = scmp.eq.s32.totalorder %s28, 1
    %p334 = por %p332, %p333
    %p336 = scmp.ne.s32.totalorder %s319, %s335
    %p337 = scmp.eq.s32.totalorder %s28, 0
    %p338 = por %p336, %p337
    %s339 = ssub.s32 %s22, %s29
    %p340 = scmp.eq.s32.totalorder %s339, 0
    %s342 = sadd.s32 %s341, 1
    %s343 = scalar_select %p340, %s341, %s342
    %p346 = pneg %p340
    %p347 = scmp.eq.s32.totalorder %s22, 1
    %p348 = por %p346, %p347
    %p349 = scmp.ne.s32.totalorder %s341, %s344
    %p350 = scmp.eq.s32.totalorder %s22, 0
    %p351 = por %p349, %p350
    %p352 = scmp.ne.s32.totalorder %s341, %s344
    %p353 = scmp.eq.s32.totalorder %s27, 1
    %p354 = por %p352, %p353
    %p355 = scmp.ne.s32.totalorder %s344, %s345
    %p356 = scmp.eq.s32.totalorder %s27, 0
    %p357 = por %p355, %p356
    %p358 = scmp.ne.s32.totalorder %s344, %s345
    %p359 = scmp.eq.s32.totalorder %s28, 1
    %p360 = por %p358, %p359
    %p362 = scmp.ne.s32.totalorder %s345, %s361
    %p363 = scmp.eq.s32.totalorder %s28, 0
    %p364 = por %p362, %p363
    %s365 = ssub.s32 %s22, %s29
    %p366 = scmp.eq.s32.totalorder %s365, 0
    %s368 = sadd.s32 %s367, 1
    %s369 = scalar_select %p366, %s367, %s368
    %p372 = pneg %p366
    %p373 = scmp.eq.s32.totalorder %s22, 1
    %p374 = por %p372, %p373
    %p375 = scmp.ne.s32.totalorder %s367, %s370
    %p376 = scmp.eq.s32.totalorder %s22, 0
    %p377 = por %p375, %p376
    %p378 = scmp.ne.s32.totalorder %s367, %s370
    %p379 = scmp.eq.s32.totalorder %s27, 1
    %p380 = por %p378, %p379
    %p381 = scmp.ne.s32.totalorder %s370, %s371
    %p382 = scmp.eq.s32.totalorder %s27, 0
    %p383 = por %p381, %p382
    %p384 = scmp.ne.s32.totalorder %s370, %s371
    %p385 = scmp.eq.s32.totalorder %s28, 1
    %p386 = por %p384, %p385
    %p388 = scmp.ne.s32.totalorder %s371, %s387
    %p389 = scmp.eq.s32.totalorder %s28, 0
    %p390 = por %p388, %p389
    %p391 = scmp.le.s32.totalorder 1, %s22
    %p392 = scmp.lt.s32.totalorder %s22, 3
    %p393 = pnand %p391, %p392
    %p394 = pneg %p393
    // Predicated region
    $region9: #{middle_forward.4} parent=5 // pred_check
      _
    $region10: #{middle_forward.4} parent=5 // pred_check_branch
      %396 = sbr.rel (%p393) target = $region12
    $region11: #{middle_forward.4} parent=5 // pred_region
      %s397 = ssub.s32 %s22, 1
      // Predicated region
      $region13: #{middle_forward.4} parent=11 // pred_check
        %p398 = pneg %p69
      $region14: #{middle_forward.4} parent=11 // pred_check_branch
        %400 = sbr.rel (%p398) target = $region16
      $region15: #{middle_forward.4} parent=11 // pred_region
        _
      $region16: #{middle_forward.4} parent=11 // pred_fallthru
        _
      // Predicated region
      $region17: #{middle_forward.4} parent=11 // pred_check
        %p401 = pneg %p90
      $region18: #{middle_forward.4} parent=11 // pred_check_branch
        %403 = sbr.rel (%p401) target = $region20
      $region19: #{middle_forward.4} parent=11 // pred_region
        _
      $region20: #{middle_forward.4} parent=11 // pred_fallthru
        _
      // Predicated region
      $region21: #{middle_forward.4} parent=11 // pred_check
        %p404 = pneg %p111
      $region22: #{middle_forward.4} parent=11 // pred_check_branch
        %406 = sbr.rel (%p404) target = $region24
      $region23: #{middle_forward.4} parent=11 // pred_region
        _
      $region24: #{middle_forward.4} parent=11 // pred_fallthru
        _
      // Predicated region
      $region25: #{middle_forward.4} parent=11 // pred_check
        %p407 = pneg %p132
      $region26: #{middle_forward.4} parent=11 // pred_check_branch
        %409 = sbr.rel (%p407) target = $region28
      $region27: #{middle_forward.4} parent=11 // pred_region
        _
      $region28: #{middle_forward.4} parent=11 // pred_fallthru
        _
      // Predicated region
      $region29: #{middle_forward.4} parent=11 // pred_check
        %p410 = pneg %p153
      $region30: #{middle_forward.4} parent=11 // pred_check_branch
        %412 = sbr.rel (%p410) target = $region32
      $region31: #{middle_forward.4} parent=11 // pred_region
        _
      $region32: #{middle_forward.4} parent=11 // pred_fallthru
        _
      // Predicated region
      $region33: #{middle_forward.4} parent=11 // pred_check
        %p413 = pneg %p174
      $region34: #{middle_forward.4} parent=11 // pred_check_branch
        %415 = sbr.rel (%p413) target = $region36
      $region35: #{middle_forward.4} parent=11 // pred_region
        _
      $region36: #{middle_forward.4} parent=11 // pred_fallthru
        _
      // Predicated region
      $region37: #{middle_forward.4} parent=11 // pred_check
        %p416 = pneg %p195
      $region38: #{middle_forward.4} parent=11 // pred_check_branch
        %418 = sbr.rel (%p416) target = $region40
      $region39: #{middle_forward.4} parent=11 // pred_region
        _
      $region40: #{middle_forward.4} parent=11 // pred_fallthru
        _
      // Predicated region
      $region41: #{middle_forward.4} parent=11 // pred_check
        %p419 = pneg %p216
      $region42: #{middle_forward.4} parent=11 // pred_check_branch
        %421 = sbr.rel (%p419) target = $region44
      $region43: #{middle_forward.4} parent=11 // pred_region
        _
      $region44: #{middle_forward.4} parent=11 // pred_fallthru
        _
      // Predicated region
      $region45: #{middle_forward.4} parent=11 // pred_check
        %p422 = pneg %p237
      $region46: #{middle_forward.4} parent=11 // pred_check_branch
        %424 = sbr.rel (%p422) target = $region48
      $region47: #{middle_forward.4} parent=11 // pred_region
        _
      $region48: #{middle_forward.4} parent=11 // pred_fallthru
        _
      // Predicated region
      $region49: #{middle_forward.4} parent=11 // pred_check
        %p425 = pneg %p258
      $region50: #{middle_forward.4} parent=11 // pred_check_branch
        %427 = sbr.rel (%p425) target = $region52
      $region51: #{middle_forward.4} parent=11 // pred_region
        _
      $region52: #{middle_forward.4} parent=11 // pred_fallthru
        _
      // Predicated region
      $region53: #{middle_forward.4} parent=11 // pred_check
        %p428 = pneg %p279
      $region54: #{middle_forward.4} parent=11 // pred_check_branch
        %430 = sbr.rel (%p428) target = $region56
      $region55: #{middle_forward.4} parent=11 // pred_region
        _
      $region56: #{middle_forward.4} parent=11 // pred_fallthru
        _
    $region12: #{middle_forward.4} parent=5 // pred_fallthru
      _
    %p431 = scmp.lt.s32.totalorder %s22, 2
    // Predicated region
    $region57: #{middle_forward.4} parent=5 // pred_check
      %p432 = pneg %p431
    $region58: #{middle_forward.4} parent=5 // pred_check_branch
      %434 = sbr.rel (%p432) target = $region60
    $region59: #{middle_forward.4} parent=5 // pred_region
      // Predicated region
      $region61: #{middle_forward.4} parent=59 // pred_check
        %p435 = pneg %p42
      $region62: #{middle_forward.4} parent=59 // pred_check_branch
        %437 = sbr.rel (%p435) target = $region64
      $region63: #{middle_forward.4} parent=59 // pred_region
        %p438 = scmp.lt.s32.totalorder %s22, 1
        %s439 = scalar_select %p438, %s22, 1
        %s440 = smul.addr %s439, 8
        %s441 = scalar_lea.vmem %s0, %s440
      $region64: #{middle_forward.4} parent=59 // pred_fallthru
        _
    $region60: #{middle_forward.4} parent=5 // pred_fallthru
      _
    %p442 = scmp.le.s32.totalorder 1, %s22
    %p443 = scmp.lt.s32.totalorder %s22, 3
    %p444 = pnand %p442, %p443
    %p445 = pneg %p444
    // Predicated region
    $region65: #{middle_forward.4} parent=5 // pred_check
      _
    $region66: #{middle_forward.4} parent=5 // pred_check_branch
      %447 = sbr.rel (%p444) target = $region68
    $region67: #{middle_forward.4} parent=5 // pred_region
      %s448 = ssub.s32 %s22, 1
      %p449 = scmp.lt.s32.totalorder %s27, 1
      %s450 = scalar_select %p449, %s27, 1
      %s451 = smul.addr %s450, 8
      %s452 = scalar_lea.vmem %s0, %s451
      %p453 = pneg %p48
      %p454 = pneg %p45
      %p455 = pneg %p69
      %p456 = pneg %p66
      %p457 = pneg %p90
      %p458 = pneg %p87
      %p459 = pneg %p111
      %p460 = pneg %p108
      %p461 = pneg %p132
      %p462 = pneg %p129
      %p463 = pneg %p153
      %p464 = pneg %p150
      %p465 = pneg %p174
      %p466 = pneg %p171
      %p467 = pneg %p195
      %p468 = pneg %p192
      %p469 = pneg %p216
      %p470 = pneg %p213
      %p471 = pneg %p237
      %p472 = pneg %p234
      %p473 = pneg %p258
      %p474 = pneg %p255
      %p475 = pneg %p279
      %p476 = pneg %p276
      %p477 = pneg %p305
      %p478 = pneg %p302
      %p479 = scmp.lt.s32.totalorder %s27, 1
      %s480 = scalar_select %p479, %s27, 1
      %s481 = smul.addr %s480, 8
      %s482 = scalar_lea.vmem %s12, %s481
      %p483 = pneg %p331
      %p484 = pneg %p328
      %p485 = scmp.lt.s32.totalorder %s27, 1
      %s486 = scalar_select %p485, %s27, 1
      %s487 = smul.addr %s486, 8
      %s488 = scalar_lea.vmem %s13, %s487
      %p489 = pneg %p357
      %p490 = pneg %p354
      %p491 = scmp.lt.s32.totalorder %s27, 1
      %s492 = scalar_select %p491, %s27, 1
      %s493 = scalar_lea.vmem %s14, %s492
      %p494 = pneg %p383
      %p495 = pneg %p380
      %p496 = scmp.lt.s32.totalorder %s27, 1
      %s497 = scalar_select %p496, %s27, 1
      %s498 = scalar_lea.vmem %s15, %s497
      %p499 = scmp.lt.s32.totalorder %s27, 1
      %s500 = scalar_select %p499, %s27, 1
      %s501 = smul.addr %s500, 8
      %s502 = scalar_lea.vmem %s0, %s501
      %p503 = scmp.lt.s32.totalorder %s27, 1
      %s504 = scalar_select %p503, %s27, 1
      %s505 = smul.addr %s504, 8
      %s506 = scalar_lea.vmem %s12, %s505
      %p507 = scmp.lt.s32.totalorder %s27, 1
      %s508 = scalar_select %p507, %s27, 1
      %s509 = smul.addr %s508, 8
      %s510 = scalar_lea.vmem %s13, %s509
      %p511 = scmp.lt.s32.totalorder %s27, 1
      %s512 = scalar_select %p511, %s27, 1
      %s513 = scalar_lea.vmem %s14, %s512
      %p514 = scmp.lt.s32.totalorder %s27, 1
      %s515 = scalar_select %p514, %s27, 1
      %s516 = scalar_lea.vmem %s15, %s515
      %v518 = vld [vmem:[%s502] sm:$0xff]
      %v519 = vld [vmem:[%s1] sm:$0x1]
      %v520 = vld [vmem:[%s2] sm:$0x1]
      %vm521 = vcmask 261120
      %v522 = vsel %vm521, %v518, 0.0
      %523 = vadd.xlane.f32.xlu0 %v522
      %v524 = vpop.xlane.xlu0 %523
      %v525 = vrcp.pop 32.0
      %v526 = vmul.f32 %v524, %v525
      %v527 = vsub.f32 %v518, %v526
      %v528 = vmul.f32 %v527, %v527
      %v529 = vsel %vm521, %v528, 0.0
      %530 = vadd.xlane.f32.xlu0 %v529
      %v531 = vpop.xlane.xlu0 %530
      %v532 = vmul.f32 %v531, %v525
      %v533 = vadd.f32 %v532, 1e-05
      %v534 = vrsqrt.pop %v533
      %v535 = vmul.f32 %v527, %v534
      %v537 = vlaneseq
      %v538 = vshrl.u32 %v537, 7
      %v539 = vsub.s32 0, %v538
      %v540 = vrot.slane %v519, %v539
      %v542 = vmul.f32 %v535, %v540
      %v544 = vlaneseq
      %v545 = vshrl.u32 %v544, 7
      %v546 = vsub.s32 0, %v545
      %v547 = vrot.slane %v520, %v546
      %v549 = vadd.f32 %v542, %v547
      %v550 = vpack.c.bf16 %v549, %v549
      %v551 = vld [vmem:[%s3] sm:$0xf]
      %v552 = vld [vmem:[%s3 + $0x4] sm:$0xf]
      %v553 = vld [vmem:[%s3 + $0x8] sm:$0xf]
      %v554 = vld [vmem:[%s3 + $0xc] sm:$0xf]
      %v555 = vld [vmem:[%s4] sm:$0x1]
      %v557 = vlaneseq
      %v558 = vshrl.u32 %v557, 7
      %v559 = vsub.s32 0, %v558
      %v560 = vrot.slane %v555, %v559
      %v566 = vunpack.c.l.b16 %v551
      %v567 = vunpack.c.l.b16 %v552
      %v568 = vunpack.c.l.b16 %v553
      %v569 = vunpack.c.l.b16 %v554
      %v570 = vpack.c.b16 %v567, %v566
      %v571 = vpack.c.b16 %v569, %v568
      %v575 = vsel %vm521, %v550, 0
      %577 = vmatprep.subr.bf16.mxu0 0
      %578 = vmatpush1.bf16.msra.mxu0 %v570
      %579 = vmatprep.subr.bf16.mxu0 0
      %580 = vmatpush1.bf16.msra.mxu0 %v571
      %581 = vmatprep.subr.bf16.mxu0 0
      %582 = vmatpush1.bf16.msra.mxu0 0
      %583 = vmatprep.subr.bf16.mxu0 0
      %584 = vmatpush1.bf16.msra.mxu0 0
      %585 = vmatprep.subr.bf16.mxu0 0
      %586 = vmatpush1.bf16.msra.mxu0 0
      %587 = vmatprep.subr.bf16.mxu0 0
      %588 = vmatpush1.bf16.msra.mxu0 0
      %589 = vmatprep.subr.bf16.mxu0 0
      %590 = vmatpush1.bf16.msra.mxu0 0
      %591 = vmatprep.subr.bf16.mxu0 0
      %592 = vmatpush1.bf16.msra.mxu0 0
      %593 = vmatprep.subr.bf16.mxu0 0
      %594 = vmatpush1.bf16.msra.mxu0 0
      %595 = vmatprep.subr.bf16.mxu0 0
      %596 = vmatpush1.bf16.msra.mxu0 0
      %597 = vmatprep.subr.bf16.mxu0 0
      %598 = vmatpush1.bf16.msra.mxu0 0
      %599 = vmatprep.subr.bf16.mxu0 0
      %600 = vmatpush1.bf16.msra.mxu0 0
      %601 = vmatprep.subr.bf16.mxu0 0
      %602 = vmatpush1.bf16.msra.mxu0 0
      %603 = vmatprep.subr.bf16.mxu0 0
      %604 = vmatpush1.bf16.msra.mxu0 0
      %605 = vmatprep.subr.bf16.mxu0 0
      %606 = vmatpush1.bf16.msra.mxu0 0
      %607 = vmatprep.subr.bf16.mxu0 0
      %608 = vmatpush1.bf16.msra.mxu0 0
      %609 = vmatprep.mubr.bf16.mxu0 0
      %610 = vmatmul.mubr.bf16.gmra.mrb[0].mxu0 %v575
      %v611 = vpop.f32.mrb[0].mxu0
      %v612 = vadd.f32 %v560, %v611
      %v613 = vpop.f32.mrb[0].mxu0
      %v614 = vpop.f32.mrb[0].mxu0
      %v615 = vpop.f32.mrb[0].mxu0
      %616 = vdwg.mxu0
      %v617 = vpack.c.bf16 %v612, %v612
      %619 = vrot.lane.b32.xlu0 %v617, 96
      %v620 = vpop.permute.xlu0 %619
      %vm621 = vcmask 64512
      %v623 = vsel %vm621, %v617, 0
      %v626 = vsel %vm621, %v620, 0
      %628 = vmatprep.subr.bf16.mxu0 0
      %629 = vmatpush1.bf16.xpose.msra.mxu0 %v626
      %630 = vmatprep.subr.bf16.mxu0 0
      %631 = vmatpush1.bf16.xpose.msra.mxu0 0
      %632 = vmatprep.subr.bf16.mxu0 0
      %633 = vmatpush1.bf16.xpose.msra.mxu0 0
      %634 = vmatprep.subr.bf16.mxu0 0
      %635 = vmatpush1.bf16.xpose.msra.mxu0 0
      %636 = vmatprep.subr.bf16.mxu0 0
      %637 = vmatpush1.bf16.xpose.msra.mxu0 0
      %638 = vmatprep.subr.bf16.mxu0 0
      %639 = vmatpush1.bf16.xpose.msra.mxu0 0
      %640 = vmatprep.subr.bf16.mxu0 0
      %641 = vmatpush1.bf16.xpose.msra.mxu0 0
      %642 = vmatprep.subr.bf16.mxu0 0
      %643 = vmatpush1.bf16.xpose.msra.mxu0 0
      %644 = vmatprep.subr.bf16.mxu0 0
      %645 = vmatpush1.bf16.xpose.msra.mxu0 0
      %646 = vmatprep.subr.bf16.mxu0 0
      %647 = vmatpush1.bf16.xpose.msra.mxu0 0
      %648 = vmatprep.subr.bf16.mxu0 0
      %649 = vmatpush1.bf16.xpose.msra.mxu0 0
      %650 = vmatprep.subr.bf16.mxu0 0
      %651 = vmatpush1.bf16.xpose.msra.mxu0 0
      %652 = vmatprep.subr.bf16.mxu0 0
      %653 = vmatpush1.bf16.xpose.msra.mxu0 0
      %654 = vmatprep.subr.bf16.mxu0 0
      %655 = vmatpush1.bf16.xpose.msra.mxu0 0
      %656 = vmatprep.subr.bf16.mxu0 0
      %657 = vmatpush1.bf16.xpose.msra.mxu0 0
      %658 = vmatprep.subr.bf16.mxu0 0
      %659 = vmatpush1.bf16.xpose.msra.mxu0 0
      %660 = vmatprep.mubr.bf16.mxu0 0
      %661 = vmatmul.mubr.bf16.gmra.mrb[0].mxu0 %v623
      %v662 = vpop.f32.mrb[0].mxu0
      %v663 = vadd.f32 0.0, %v662
      %v664 = vpop.f32.mrb[0].mxu0
      %v665 = vpop.f32.mrb[0].mxu0
      %v666 = vpop.f32.mrb[0].mxu0
      %667 = vdwg.mxu0
      %v668 = vsel %vm621, %v663, -inf
      %669 = vmax.xlane.f32.xlu0 %v668
      %v670 = vpop.xlane.xlu0 %669
      %v671 = vsub.f32 %v663, %v670
      %v672 = vmul.f32 %v671, 1.442695
      %v673 = vpow.pop %v672
      %v674 = vsel %vm621, %v673, 0.0
      %675 = vadd.xlane.f32.xlu0 %v674
      %v676 = vpop.xlane.xlu0 %675
      %v677 = vrcp.pop %v676
      %v678 = vmul.f32 %v673, %v677
      %v679 = vpack.c.bf16 %v678, %v678
      %680 = vrot.lane.b32.xlu0 %v617, 64
      %v681 = vpop.permute.xlu0 %680
      %v683 = vsel %vm621, %v679, 0
      %vm685 = vcmask 1043456
      %v687 = vsel %vm685, %v681, 0
      %689 = vmatprep.subr.bf16.mxu0 0
      %690 = vmatpush1.bf16.msra.mxu0 %v687
      %691 = vmatprep.subr.bf16.mxu0 0
      %692 = vmatpush1.bf16.msra.mxu0 0
      %693 = vmatprep.subr.bf16.mxu0 0
      %694 = vmatpush1.bf16.msra.mxu0 0
      %695 = vmatprep.subr.bf16.mxu0 0
      %696 = vmatpush1.bf16.msra.mxu0 0
      %697 = vmatprep.subr.bf16.mxu0 0
      %698 = vmatpush1.bf16.msra.mxu0 0
      %699 = vmatprep.subr.bf16.mxu0 0
      %700 = vmatpush1.bf16.msra.mxu0 0
      %701 = vmatprep.subr.bf16.mxu0 0
      %702 = vmatpush1.bf16.msra.mxu0 0
      %703 = vmatprep.subr.bf16.mxu0 0
      %704 = vmatpush1.bf16.msra.mxu0 0
      %705 = vmatprep.subr.bf16.mxu0 0
      %706 = vmatpush1.bf16.msra.mxu0 0
      %707 = vmatprep.subr.bf16.mxu0 0
      %708 = vmatpush1.bf16.msra.mxu0 0
      %709 = vmatprep.subr.bf16.mxu0 0
      %710 = vmatpush1.bf16.msra.mxu0 0
      %711 = vmatprep.subr.bf16.mxu0 0
      %712 = vmatpush1.bf16.msra.mxu0 0
      %713 = vmatprep.subr.bf16.mxu0 0
      %714 = vmatpush1.bf16.msra.mxu0 0
      %715 = vmatprep.subr.bf16.mxu0 0
      %716 = vmatpush1.bf16.msra.mxu0 0
      %717 = vmatprep.subr.bf16.mxu0 0
      %718 = vmatpush1.bf16.msra.mxu0 0
      %719 = vmatprep.subr.bf16.mxu0 0
      %720 = vmatpush1.bf16.msra.mxu0 0
      %721 = vmatprep.mubr.bf16.mxu0 0
      %722 = vmatmul.mubr.bf16.gmra.mrb[0].mxu0 %v683
      %v723 = vpop.f32.mrb[0].mxu0
      %v724 = vadd.f32 0.0, %v723
      %v725 = vpop.f32.mrb[0].mxu0
      %v726 = vpop.f32.mrb[0].mxu0
      %v727 = vpop.f32.mrb[0].mxu0
      %728 = vdwg.mxu0
      %729 = vst.msk [vmem:[#allocation2] sm:$0xff] %vm621, %v724
      %730 = vrot.lane.b32.xlu0 %v617, 120
      %v731 = vpop.permute.xlu0 %730
      %732 = vrot.lane.b32.xlu0 %v617, 88
      %v733 = vpop.permute.xlu0 %732
      %v735 = vsel %vm621, %v731, 0
      %v738 = vsel %vm621, %v733, 0
      %740 = vmatprep.subr.bf16.mxu0 0
      %741 = vmatpush1.bf16.xpose.msra.mxu0 %v738
      %742 = vmatprep.subr.bf16.mxu0 0
      %743 = vmatpush1.bf16.xpose.msra.mxu0 0
      %744 = vmatprep.subr.bf16.mxu0 0
      %745 = vmatpush1.bf16.xpose.msra.mxu0 0
      %746 = vmatprep.subr.bf16.mxu0 0
      %747 = vmatpush1.bf16.xpose.msra.mxu0 0
      %748 = vmatprep.subr.bf16.mxu0 0
      %749 = vmatpush1.bf16.xpose.msra.mxu0 0
      %750 = vmatprep.subr.bf16.mxu0 0
      %751 = vmatpush1.bf16.xpose.msra.mxu0 0
      %752 = vmatprep.subr.bf16.mxu0 0
      %753 = vmatpush1.bf16.xpose.msra.mxu0 0
      %754 = vmatprep.subr.bf16.mxu0 0
      %755 = vmatpush1.bf16.xpose.msra.mxu0 0
      %756 = vmatprep.subr.bf16.mxu0 0
      %757 = vmatpush1.bf16.xpose.msra.mxu0 0
      %758 = vmatprep.subr.bf16.mxu0 0
      %759 = vmatpush1.bf16.xpose.msra.mxu0 0
      %760 = vmatprep.subr.bf16.mxu0 0
      %761 = vmatpush1.bf16.xpose.msra.mxu0 0
      %762 = vmatprep.subr.bf16.mxu0 0
      %763 = vmatpush1.bf16.xpose.msra.mxu0 0
      %764 = vmatprep.subr.bf16.mxu0 0
      %765 = vmatpush1.bf16.xpose.msra.mxu0 0
      %766 = vmatprep.subr.bf16.mxu0 0
      %767 = vmatpush1.bf16.xpose.msra.mxu0 0
      %768 = vmatprep.subr.bf16.mxu0 0
      %769 = vmatpush1.bf16.xpose.msra.mxu0 0
      %770 = vmatprep.subr.bf16.mxu0 0
      %771 = vmatpush1.bf16.xpose.msra.mxu0 0
      %772 = vmatprep.mubr.bf16.mxu0 0
      %773 = vmatmul.mubr.bf16.gmra.mrb[0].mxu0 %v735
      %v774 = vpop.f32.mrb[0].mxu0
      %v775 = vadd.f32 0.0, %v774
      %v776 = vpop.f32.mrb[0].mxu0
      %v777 = vpop.f32.mrb[0].mxu0
      %v778 = vpop.f32.mrb[0].mxu0
      %779 = vdwg.mxu0
      %v780 = vsel %vm621, %v775, -inf
      %781 = vmax.xlane.f32.xlu0 %v780
      %v782 = vpop.xlane.xlu0 %781
      %v783 = vsub.f32 %v775, %v782
      %v784 = vmul.f32 %v783, 1.442695
      %v785 = vpow.pop %v784
      %v786 = vsel %vm621, %v785, 0.0
      %787 = vadd.xlane.f32.xlu0 %v786
      %v788 = vpop.xlane.xlu0 %787
      %v789 = vrcp.pop %v788
      %v790 = vmul.f32 %v785, %v789
      %v791 = vpack.c.bf16 %v790, %v790
      %792 = vrot.lane.b32.xlu0 %v617, 56
      %v793 = vpop.permute.xlu0 %792
      %v795 = vsel %vm621, %v791, 0
      %v798 = vsel %vm685, %v793, 0
      %800 = vmatprep.subr.bf16.mxu0 0
      %801 = vmatpush1.bf16.msra.mxu0 %v798
      %802 = vmatprep.subr.bf16.mxu0 0
      %803 = vmatpush1.bf16.msra.mxu0 0
      %804 = vmatprep.subr.bf16.mxu0 0
      %805 = vmatpush1.bf16.msra.mxu0 0
      %806 = vmatprep.subr.bf16.mxu0 0
      %807 = vmatpush1.bf16.msra.mxu0 0
      %808 = vmatprep.subr.bf16.mxu0 0
      %809 = vmatpush1.bf16.msra.mxu0 0
      %810 = vmatprep.subr.bf16.mxu0 0
      %811 = vmatpush1.bf16.msra.mxu0 0
      %812 = vmatprep.subr.bf16.mxu0 0
      %813 = vmatpush1.bf16.msra.mxu0 0
      %814 = vmatprep.subr.bf16.mxu0 0
      %815 = vmatpush1.bf16.msra.mxu0 0
      %816 = vmatprep.subr.bf16.mxu0 0
      %817 = vmatpush1.bf16.msra.mxu0 0
      %818 = vmatprep.subr.bf16.mxu0 0
      %819 = vmatpush1.bf16.msra.mxu0 0
      %820 = vmatprep.subr.bf16.mxu0 0
      %821 = vmatpush1.bf16.msra.mxu0 0
      %822 = vmatprep.subr.bf16.mxu0 0
      %823 = vmatpush1.bf16.msra.mxu0 0
      %824 = vmatprep.subr.bf16.mxu0 0
      %825 = vmatpush1.bf16.msra.mxu0 0
      %826 = vmatprep.subr.bf16.mxu0 0
      %827 = vmatpush1.bf16.msra.mxu0 0
      %828 = vmatprep.subr.bf16.mxu0 0
      %829 = vmatpush1.bf16.msra.mxu0 0
      %830 = vmatprep.subr.bf16.mxu0 0
      %831 = vmatpush1.bf16.msra.mxu0 0
      %832 = vmatprep.mubr.bf16.mxu0 0
      %833 = vmatmul.mubr.bf16.gmra.mrb[0].mxu0 %v795
      %v834 = vpop.f32.mrb[0].mxu0
      %v835 = vadd.f32 0.0, %v834
      %v836 = vpop.f32.mrb[0].mxu0
      %v837 = vpop.f32.mrb[0].mxu0
      %v838 = vpop.f32.mrb[0].mxu0
      %839 = vdwg.mxu0
      %841 = vrot.lane.b32.xlu0 %v835, 8
      %v842 = vpop.permute.xlu0 %841
      %vm844 = vcmask 130112
      %845 = vst.msk [vmem:[#allocation2] sm:$0xff] %vm844, %v842
      %846 = vrot.lane.b32.xlu0 %v617, 112
      %v847 = vpop.permute.xlu0 %846
      %848 = vrot.lane.b32.xlu0 %v617, 80
      %v849 = vpop.permute.xlu0 %848
      %v851 = vsel %vm621, %v847, 0
      %v854 = vsel %vm621, %v849, 0
      %856 = vmatprep.subr.bf16.mxu0 0
      %857 = vmatpush1.bf16.xpose.msra.mxu0 %v854
      %858 = vmatprep.subr.bf16.mxu0 0
      %859 = vmatpush1.bf16.xpose.msra.mxu0 0
      %860 = vmatprep.subr.bf16.mxu0 0
      %861 = vmatpush1.bf16.xpose.msra.mxu0 0
      %862 = vmatprep.subr.bf16.mxu0 0
      %863 = vmatpush1.bf16.xpose.msra.mxu0 0
      %864 = vmatprep.subr.bf16.mxu0 0
      %865 = vmatpush1.bf16.xpose.msra.mxu0 0
      %866 = vmatprep.subr.bf16.mxu0 0
      %867 = vmatpush1.bf16.xpose.msra.mxu0 0
      %868 = vmatprep.subr.bf16.mxu0 0
      %869 = vmatpush1.bf16.xpose.msra.mxu0 0
      %870 = vmatprep.subr.bf16.mxu0 0
      %871 = vmatpush1.bf16.xpose.msra.mxu0 0
      %872 = vmatprep.subr.bf16.mxu0 0
      %873 = vmatpush1.bf16.xpose.msra.mxu0 0
      %874 = vmatprep.subr.bf16.mxu0 0
      %875 = vmatpush1.bf16.xpose.msra.mxu0 0
      %876 = vmatprep.subr.bf16.mxu0 0
      %877 = vmatpush1.bf16.xpose.msra.mxu0 0
      %878 = vmatprep.subr.bf16.mxu0 0
      %879 = vmatpush1.bf16.xpose.msra.mxu0 0
      %880 = vmatprep.subr.bf16.mxu0 0
      %881 = vmatpush1.bf16.xpose.msra.mxu0 0
      %882 = vmatprep.subr.bf16.mxu0 0
      %883 = vmatpush1.bf16.xpose.msra.mxu0 0
      %884 = vmatprep.subr.bf16.mxu0 0
      %885 = vmatpush1.bf16.xpose.msra.mxu0 0
      %886 = vmatprep.subr.bf16.mxu0 0
      %887 = vmatpush1.bf16.xpose.msra.mxu0 0
      %888 = vmatprep.mubr.bf16.mxu0 0
      %889 = vmatmul.mubr.bf16.gmra.mrb[0].mxu0 %v851
      %v890 = vpop.f32.mrb[0].mxu0
      %v891 = vadd.f32 0.0, %v890
      %v892 = vpop.f32.mrb[0].mxu0
      %v893 = vpop.f32.mrb[0].mxu0
      %v894 = vpop.f32.mrb[0].mxu0
      %895 = vdwg.mxu0
      %v896 = vsel %vm621, %v891, -inf
      %897 = vmax.xlane.f32.xlu0 %v896
      %v898 = vpop.xlane.xlu0 %897
      %v899 = vsub.f32 %v891, %v898
      %v900 = vmul.f32 %v899, 1.442695
      %v901 = vpow.pop %v900
      %v902 = vsel %vm621, %v901, 0.0
      %903 = vadd.xlane.f32.xlu0 %v902
      %v904 = vpop.xlane.xlu0 %903
      %v905 = vrcp.pop %v904
      %v906 = vmul.f32 %v901, %v905
      %v907 = vpack.c.bf16 %v906, %v906
      %908 = vrot.lane.b32.xlu0 %v617, 48
      %v909 = vpop.permute.xlu0 %908
      %v911 = vsel %vm621, %v907, 0
      %v914 = vsel %vm685, %v909, 0
      %916 = vmatprep.subr.bf16.mxu0 0
      %917 = vmatpush1.bf16.msra.mxu0 %v914
      %918 = vmatprep.subr.bf16.mxu0 0
      %919 = vmatpush1.bf16.msra.mxu0 0
      %920 = vmatprep.subr.bf16.mxu0 0
      %921 = vmatpush1.bf16.msra.mxu0 0
      %922 = vmatprep.subr.bf16.mxu0 0
      %923 = vmatpush1.bf16.msra.mxu0 0
      %924 = vmatprep.subr.bf16.mxu0 0
      %925 = vmatpush1.bf16.msra.mxu0 0
      %926 = vmatprep.subr.bf16.mxu0 0
      %927 = vmatpush1.bf16.msra.mxu0 0
      %928 = vmatprep.subr.bf16.mxu0 0
      %929 = vmatpush1.bf16.msra.mxu0 0
      %930 = vmatprep.subr.bf16.mxu0 0
      %931 = vmatpush1.bf16.msra.mxu0 0
      %932 = vmatprep.subr.bf16.mxu0 0
      %933 = vmatpush1.bf16.msra.mxu0 0
      %934 = vmatprep.subr.bf16.mxu0 0
      %935 = vmatpush1.bf16.msra.mxu0 0
      %936 = vmatprep.subr.bf16.mxu0 0
      %937 = vmatpush1.bf16.msra.mxu0 0
      %938 = vmatprep.subr.bf16.mxu0 0
      %939 = vmatpush1.bf16.msra.mxu0 0
      %940 = vmatprep.subr.bf16.mxu0 0
      %941 = vmatpush1.bf16.msra.mxu0 0
      %942 = vmatprep.subr.bf16.mxu0 0
      %943 = vmatpush1.bf16.msra.mxu0 0
      %944 = vmatprep.subr.bf16.mxu0 0
      %945 = vmatpush1.bf16.msra.mxu0 0
      %946 = vmatprep.subr.bf16.mxu0 0
      %947 = vmatpush1.bf16.msra.mxu0 0
      %948 = vmatprep.mubr.bf16.mxu0 0
      %949 = vmatmul.mubr.bf16.gmra.mrb[0].mxu0 %v911
      %v950 = vpop.f32.mrb[0].mxu0
      %v951 = vadd.f32 0.0, %v950
      %v952 = vpop.f32.mrb[0].mxu0
      %v953 = vpop.f32.mrb[0].mxu0
      %v954 = vpop.f32.mrb[0].mxu0
      %955 = vdwg.mxu0
      %957 = vrot.lane.b32.xlu0 %v951, 16
      %v958 = vpop.permute.xlu0 %957
      %vm960 = vcmask 195712
      %961 = vst.msk [vmem:[#allocation2] sm:$0xff] %vm960, %v958
      %962 = vrot.lane.b32.xlu0 %v617, 104
      %v963 = vpop.permute.xlu0 %962
      %964 = vrot.lane.b32.xlu0 %v617, 72
      %v965 = vpop.permute.xlu0 %964
      %v967 = vsel %vm621, %v963, 0
      %v970 = vsel %vm621, %v965, 0
      %972 = vmatprep.subr.bf16.mxu0 0
      %973 = vmatpush1.bf16.xpose.msra.mxu0 %v970
      %974 = vmatprep.subr.bf16.mxu0 0
      %975 = vmatpush1.bf16.xpose.msra.mxu0 0
      %976 = vmatprep.subr.bf16.mxu0 0
      %977 = vmatpush1.bf16.xpose.msra.mxu0 0
      %978 = vmatprep.subr.bf16.mxu0 0
      %979 = vmatpush1.bf16.xpose.msra.mxu0 0
      %980 = vmatprep.subr.bf16.mxu0 0
      %981 = vmatpush1.bf16.xpose.msra.mxu0 0
      %982 = vmatprep.subr.bf16.mxu0 0
      %983 = vmatpush1.bf16.xpose.msra.mxu0 0
      %984 = vmatprep.subr.bf16.mxu0 0
      %985 = vmatpush1.bf16.xpose.msra.mxu0 0
      %986 = vmatprep.subr.bf16.mxu0 0
      %987 = vmatpush1.bf16.xpose.msra.mxu0 0
      %988 = vmatprep.subr.bf16.mxu0 0
      %989 = vmatpush1.bf16.xpose.msra.mxu0 0
      %990 = vmatprep.subr.bf16.mxu0 0
      %991 = vmatpush1.bf16.xpose.msra.mxu0 0
      %992 = vmatprep.subr.bf16.mxu0 0
      %993 = vmatpush1.bf16.xpose.msra.mxu0 0
      %994 = vmatprep.subr.bf16.mxu0 0
      %995 = vmatpush1.bf16.xpose.msra.mxu0 0
      %996 = vmatprep.subr.bf16.mxu0 0
      %997 = vmatpush1.bf16.xpose.msra.mxu0 0
      %998 = vmatprep.subr.bf16.mxu0 0
      %999 = vmatpush1.bf16.xpose.msra.mxu0 0
      %1000 = vmatprep.subr.bf16.mxu0 0
      %1001 = vmatpush1.bf16.xpose.msra.mxu0 0
      %1002 = vmatprep.subr.bf16.mxu0 0
      %1003 = vmatpush1.bf16.xpose.msra.mxu0 0
      %1004 = vmatprep.mubr.bf16.mxu0 0
      %1005 = vmatmul.mubr.bf16.gmra.mrb[0].mxu0 %v967
      %v1006 = vpop.f32.mrb[0].mxu0
      %v1007 = vadd.f32 0.0, %v1006
      %v1008 = vpop.f32.mrb[0].mxu0
      %v1009 = vpop.f32.mrb[0].mxu0
      %v1010 = vpop.f32.mrb[0].mxu0
      %1011 = vdwg.mxu0
      %v1012 = vsel %vm621, %v1007, -inf
      %1013 = vmax.xlane.f32.xlu0 %v1012
      %v1014 = vpop.xlane.xlu0 %1013
      %v1015 = vsub.f32 %v1007, %v1014
      %v1016 = vmul.f32 %v1015, 1.442695
      %v1017 = vpow.pop %v1016
      %v1018 = vsel %vm621, %v1017, 0.0
      %1019 = vadd.xlane.f32.xlu0 %v1018
      %v1020 = vpop.xlane.xlu0 %1019
      %v1021 = vrcp.pop %v1020
      %v1022 = vmul.f32 %v1017, %v1021
      %v1023 = vpack.c.bf16 %v1022, %v1022
      %1024 = vrot.lane.b32.xlu0 %v617, 40
      %v1025 = vpop.permute.xlu0 %1024
      %v1027 = vsel %vm621, %v1023, 0
      %v1030 = vsel %vm685, %v1025, 0
      %1032 = vmatprep.subr.bf16.mxu0 0
      %1033 = vmatpush1.bf16.msra.mxu0 %v1030
      %1034 = vmatprep.subr.bf16.mxu0 0
      %1035 = vmatpush1.bf16.msra.mxu0 0
      %1036 = vmatprep.subr.bf16.mxu0 0
      %1037 = vmatpush1.bf16.msra.mxu0 0
      %1038 = vmatprep.subr.bf16.mxu0 0
      %1039 = vmatpush1.bf16.msra.mxu0 0
      %1040 = vmatprep.subr.bf16.mxu0 0
      %1041 = vmatpush1.bf16.msra.mxu0 0
      %1042 = vmatprep.subr.bf16.mxu0 0
      %1043 = vmatpush1.bf16.msra.mxu0 0
      %1044 = vmatprep.subr.bf16.mxu0 0
      %1045 = vmatpush1.bf16.msra.mxu0 0
      %1046 = vmatprep.subr.bf16.mxu0 0
      %1047 = vmatpush1.bf16.msra.mxu0 0
      %1048 = vmatprep.subr.bf16.mxu0 0
      %1049 = vmatpush1.bf16.msra.mxu0 0
      %1050 = vmatprep.subr.bf16.mxu0 0
      %1051 = vmatpush1.bf16.msra.mxu0 0
      %1052 = vmatprep.subr.bf16.mxu0 0
      %1053 = vmatpush1.bf16.msra.mxu0 0
      %1054 = vmatprep.subr.bf16.mxu0 0
      %1055 = vmatpush1.bf16.msra.mxu0 0
      %1056 = vmatprep.subr.bf16.mxu0 0
      %1057 = vmatpush1.bf16.msra.mxu0 0
      %1058 = vmatprep.subr.bf16.mxu0 0
      %1059 = vmatpush1.bf16.msra.mxu0 0
      %1060 = vmatprep.subr.bf16.mxu0 0
      %1061 = vmatpush1.bf16.msra.mxu0 0
      %1062 = vmatprep.subr.bf16.mxu0 0
      %1063 = vmatpush1.bf16.msra.mxu0 0
      %1064 = vmatprep.mubr.bf16.mxu0 0
      %1065 = vmatmul.mubr.bf16.gmra.mrb[0].mxu0 %v1027
      %v1066 = vpop.f32.mrb[0].mxu0
      %v1067 = vadd.f32 0.0, %v1066
      %v1068 = vpop.f32.mrb[0].mxu0
      %v1069 = vpop.f32.mrb[0].mxu0
      %v1070 = vpop.f32.mrb[0].mxu0
      %1071 = vdwg.mxu0
      %1073 = vrot.lane.b32.xlu0 %v1067, 24
      %v1074 = vpop.permute.xlu0 %1073
      %vm1076 = vcmask 261312
      %1077 = vst.msk [vmem:[#allocation2] sm:$0xff] %vm1076, %v1074
      %v1078 = vld [vmem:[#allocation2] sm:$0xff]
      %v1079 = vpack.c.bf16 %v1078, %v1078
      %v1080 = vld [vmem:[%s5] sm:$0xf]
      %v1081 = vld [vmem:[%s5 + $0x4] sm:$0xf]
      %v1082 = vld [vmem:[%s5 + $0x8] sm:$0xf]
      %v1083 = vld [vmem:[%s5 + $0xc] sm:$0xf]
      %v1084 = vld [vmem:[%s6] sm:$0x1]
      %v1086 = vlaneseq
      %v1087 = vshrl.u32 %v1086, 7
      %v1088 = vsub.s32 0, %v1087
      %v1089 = vrot.slane %v1084, %v1088
      %v1095 = vunpack.c.l.b16 %v1080
      %v1096 = vunpack.c.l.b16 %v1081
      %v1097 = vunpack.c.l.b16 %v1082
      %v1098 = vunpack.c.l.b16 %v1083
      %v1099 = vpack.c.b16 %v1096, %v1095
      %v1100 = vpack.c.b16 %v1098, %v1097
      %v1104 = vsel %vm521, %v1079, 0
      %1106 = vmatprep.subr.bf16.mxu0 0
      %1107 = vmatpush1.bf16.msra.mxu0 %v1099
      %1108 = vmatprep.subr.bf16.mxu0 0
      %1109 = vmatpush1.bf16.msra.mxu0 %v1100
      %1110 = vmatprep.subr.bf16.mxu0 0
      %1111 = vmatpush1.bf16.msra.mxu0 0
      %1112 = vmatprep.subr.bf16.mxu0 0
      %1113 = vmatpush1.bf16.msra.mxu0 0
      %1114 = vmatprep.subr.bf16.mxu0 0
      %1115 = vmatpush1.bf16.msra.mxu0 0
      %1116 = vmatprep.subr.bf16.mxu0 0
      %1117 = vmatpush1.bf16.msra.mxu0 0
      %1118 = vmatprep.subr.bf16.mxu0 0
      %1119 = vmatpush1.bf16.msra.mxu0 0
      %1120 = vmatprep.subr.bf16.mxu0 0
      %1121 = vmatpush1.bf16.msra.mxu0 0
      %1122 = vmatprep.subr.bf16.mxu0 0
      %1123 = vmatpush1.bf16.msra.mxu0 0
      %1124 = vmatprep.subr.bf16.mxu0 0
      %1125 = vmatpush1.bf16.msra.mxu0 0
      %1126 = vmatprep.subr.bf16.mxu0 0
      %1127 = vmatpush1.bf16.msra.mxu0 0
      %1128 = vmatprep.subr.bf16.mxu0 0
      %1129 = vmatpush1.bf16.msra.mxu0 0
      %1130 = vmatprep.subr.bf16.mxu0 0
      %1131 = vmatpush1.bf16.msra.mxu0 0
      %1132 = vmatprep.subr.bf16.mxu0 0
      %1133 = vmatpush1.bf16.msra.mxu0 0
      %1134 = vmatprep.subr.bf16.mxu0 0
      %1135 = vmatpush1.bf16.msra.mxu0 0
      %1136 = vmatprep.subr.bf16.mxu0 0
      %1137 = vmatpush1.bf16.msra.mxu0 0
      %1138 = vmatprep.mubr.bf16.mxu0 0
      %1139 = vmatmul.mubr.bf16.gmra.mrb[0].mxu0 %v1104
      %v1140 = vpop.f32.mrb[0].mxu0
      %v1141 = vadd.f32 %v1089, %v1140
      %v1142 = vpop.f32.mrb[0].mxu0
      %v1143 = vpop.f32.mrb[0].mxu0
      %v1144 = vpop.f32.mrb[0].mxu0
      %1145 = vdwg.mxu0
      %v1146 = vadd.f32 %v518, %v1141
      %1147 = vst.msk [vmem:[%s506] sm:$0xff] %vm521, %v1146
      %v1148 = vld [vmem:[%s7] sm:$0x1]
      %v1149 = vld [vmem:[%s8] sm:$0x1]
      %v1150 = vsel %vm521, %v1146, 0.0
      %1151 = vadd.xlane.f32.xlu0 %v1150
      %v1152 = vpop.xlane.xlu0 %1151
      %v1153 = vmul.f32 %v1152, %v525
      %v1154 = vsub.f32 %v1146, %v1153
      %v1155 = vmul.f32 %v1154, %v1154
      %v1156 = vsel %vm521, %v1155, 0.0
      %1157 = vadd.xlane.f32.xlu0 %v1156
      %v1158 = vpop.xlane.xlu0 %1157
      %v1159 = vmul.f32 %v1158, %v525
      %v1160 = vadd.f32 %v1159, 1e-05
      %v1161 = vrsqrt.pop %v1160
      %v1162 = vmul.f32 %v1154, %v1161
      %v1164 = vlaneseq
      %v1165 = vshrl.u32 %v1164, 7
      %v1166 = vsub.s32 0, %v1165
      %v1167 = vrot.slane %v1148, %v1166
      %v1169 = vmul.f32 %v1162, %v1167
      %v1171 = vlaneseq
      %v1172 = vshrl.u32 %v1171, 7
      %v1173 = vsub.s32 0, %v1172
      %v1174 = vrot.slane %v1149, %v1173
      %v1176 = vadd.f32 %v1169, %v1174
      %v1177 = vpack.c.bf16 %v1176, %v1176
      %v1178 = vld [vmem:[%s9] sm:$0xf]
      %v1179 = vld [vmem:[%s9 + $0x4] sm:$0xf]
      %v1180 = vld [vmem:[%s9 + $0x8] sm:$0xf]
      %v1181 = vld [vmem:[%s9 + $0xc] sm:$0xf]
      %v1182 = vld [vmem:[%s10] sm:$0x1]
      %v1184 = vlaneseq
      %v1185 = vshrl.u32 %v1184, 7
      %v1186 = vsub.s32 0, %v1185
      %v1187 = vrot.slane %v1182, %v1186
      %v1193 = vunpack.c.l.b16 %v1178
      %v1194 = vunpack.c.l.b16 %v1179
      %v1195 = vunpack.c.l.b16 %v1180
      %v1196 = vunpack.c.l.b16 %v1181
      %v1197 = vpack.c.b16 %v1194, %v1193
      %v1198 = vpack.c.b16 %v1196, %v1195
      %v1202 = vsel %vm521, %v1177, 0
      %1204 = vmatprep.subr.bf16.mxu0 0
      %1205 = vmatpush1.bf16.msra.mxu0 %v1197
      %1206 = vmatprep.subr.bf16.mxu0 0
      %1207 = vmatpush1.bf16.msra.mxu0 %v1198
      %1208 = vmatprep.subr.bf16.mxu0 0
      %1209 = vmatpush1.bf16.msra.mxu0 0
      %1210 = vmatprep.subr.bf16.mxu0 0
      %1211 = vmatpush1.bf16.msra.mxu0 0
      %1212 = vmatprep.subr.bf16.mxu0 0
      %1213 = vmatpush1.bf16.msra.mxu0 0
      %1214 = vmatprep.subr.bf16.mxu0 0
      %1215 = vmatpush1.bf16.msra.mxu0 0
      %1216 = vmatprep.subr.bf16.mxu0 0
      %1217 = vmatpush1.bf16.msra.mxu0 0
      %1218 = vmatprep.subr.bf16.mxu0 0
      %1219 = vmatpush1.bf16.msra.mxu0 0
      %1220 = vmatprep.subr.bf16.mxu0 0
      %1221 = vmatpush1.bf16.msra.mxu0 0
      %1222 = vmatprep.subr.bf16.mxu0 0
      %1223 = vmatpush1.bf16.msra.mxu0 0
      %1224 = vmatprep.subr.bf16.mxu0 0
      %1225 = vmatpush1.bf16.msra.mxu0 0
      %1226 = vmatprep.subr.bf16.mxu0 0
      %1227 = vmatpush1.bf16.msra.mxu0 0
      %1228 = vmatprep.subr.bf16.mxu0 0
      %1229 = vmatpush1.bf16.msra.mxu0 0
      %1230 = vmatprep.subr.bf16.mxu0 0
      %1231 = vmatpush1.bf16.msra.mxu0 0
      %1232 = vmatprep.subr.bf16.mxu0 0
      %1233 = vmatpush1.bf16.msra.mxu0 0
      %1234 = vmatprep.subr.bf16.mxu0 0
      %1235 = vmatpush1.bf16.msra.mxu0 0
      %1236 = vmatprep.mubr.bf16.mxu0 0
      %1237 = vmatmul.mubr.bf16.gmra.mrb[0].mxu0 %v1202
      %v1238 = vpop.f32.mrb[0].mxu0
      %v1239 = vadd.f32 %v1187, %v1238
      %v1240 = vpop.f32.mrb[0].mxu0
      %v1241 = vpop.f32.mrb[0].mxu0
      %v1242 = vpop.f32.mrb[0].mxu0
      %1243 = vdwg.mxu0
      %v1244 = vxor.u32 %v1239, 2147483648
      %v1245 = vmul.f32 %v1244, 1.442695
      %v1246 = vpow.pop %v1245
      %v1247 = vadd.f32 %v1246, 1.0
      %v1248 = vrcp.pop %v1247
      %v1249 = vmul.f32 1.0, %v1248
      %1251 = vrot.lane.b32.xlu0 %v1249, 96
      %v1252 = vpop.permute.xlu0 %1251
      %v1254 = vmul.f32 %v1239, %v1252
      %v1255 = vld [vmem:[%s11 + $0x8] sm:$0xff]
      %v1256 = vld [vmem:[%s11 + $0x10] sm:$0xff]
      %v1257 = vlaneseq
      %v1258 = vshrl.u32 %v1257, 7
      %v1259 = vrot.slane %v1254, 1
      %v1260 = vadd.s32 %v1258, 4294967289
      %vm1261 = vcmp.ge.s32.totalorder %v1260, 0
      %vm1262 = vcmp.lt.s32.totalorder %v1260, 8
      %vm1263 = vmand %vm1261, %vm1262
      %v1264 = vsel %vm1263, 1, 0
      %vm1265 = vcmp.eq.s32.totalorder %v1264, 1
      %v1266 = vsel %vm1265, %v1259, 0.0
      %v1267 = vlaneseq
      %v1268 = vshrl.u32 %v1267, 7
      %v1269 = vsub.s32 0, %v1268
      %v1270 = vrot.slane %v1255, %v1269
      %v1271 = vmul.f32 %v1266, %v1270
      %v1272 = vadd.f32 %v1271, 0.0
      %v1273 = vrot.slane %v1254, 2
      %v1274 = vadd.s32 %v1258, 4294967290
      %vm1275 = vcmp.ge.s32.totalorder %v1274, 0
      %vm1276 = vcmp.lt.s32.totalorder %v1274, 8
      %vm1277 = vmand %vm1275, %vm1276
      %v1278 = vsel %vm1277, 1, 0
      %vm1279 = vcmp.eq.s32.totalorder %v1278, 1
      %v1280 = vsel %vm1279, %v1273, 0.0
      %v1281 = vlaneseq
      %v1282 = vshrl.u32 %v1281, 7
      %v1283 = vsub.s32 1, %v1282
      %v1284 = vrot.slane %v1255, %v1283
      %v1285 = vmul.f32 %v1280, %v1284
      %v1286 = vadd.f32 %v1272, %v1285
      %v1287 = vrot.slane %v1254, 3
      %v1288 = vadd.s32 %v1258, 4294967291
      %vm1289 = vcmp.ge.s32.totalorder %v1288, 0
      %vm1290 = vcmp.lt.s32.totalorder %v1288, 8
      %vm1291 = vmand %vm1289, %vm1290
      %v1292 = vsel %vm1291, 1, 0
      %vm1293 = vcmp.eq.s32.totalorder %v1292, 1
      %v1294 = vsel %vm1293, %v1287, 0.0
      %v1295 = vlaneseq
      %v1296 = vshrl.u32 %v1295, 7
      %v1297 = vsub.s32 2, %v1296
      %v1298 = vrot.slane %v1255, %v1297
      %v1299 = vmul.f32 %v1294, %v1298
      %v1300 = vadd.f32 %v1286, %v1299
      %v1301 = vrot.slane %v1254, 4
      %v1302 = vadd.s32 %v1258, 4294967292
      %vm1303 = vcmp.ge.s32.totalorder %v1302, 0
      %vm1304 = vcmp.lt.s32.totalorder %v1302, 8
      %vm1305 = vmand %vm1303, %vm1304
      %v1306 = vsel %vm1305, 1, 0
      %vm1307 = vcmp.eq.s32.totalorder %v1306, 1
      %v1308 = vsel %vm1307, %v1301, 0.0
      %v1309 = vlaneseq
      %v1310 = vshrl.u32 %v1309, 7
      %v1311 = vsub.s32 3, %v1310
      %v1312 = vrot.slane %v1255, %v1311
      %v1313 = vmul.f32 %v1308, %v1312
      %v1314 = vadd.f32 %v1300, %v1313
      %v1315 = vrot.slane %v1254, 5
      %v1316 = vadd.s32 %v1258, 4294967293
      %vm1317 = vcmp.ge.s32.totalorder %v1316, 0
      %vm1318 = vcmp.lt.s32.totalorder %v1316, 8
      %vm1319 = vmand %vm1317, %vm1318
      %v1320 = vsel %vm1319, 1, 0
      %vm1321 = vcmp.eq.s32.totalorder %v1320, 1
      %v1322 = vsel %vm1321, %v1315, 0.0
      %v1323 = vlaneseq
      %v1324 = vshrl.u32 %v1323, 7
      %v1325 = vsub.s32 4, %v1324
      %v1326 = vrot.slane %v1255, %v1325
      %v1327 = vmul.f32 %v1322, %v1326
      %v1328 = vadd.f32 %v1314, %v1327
      %v1329 = vrot.slane %v1254, 6
      %v1330 = vadd.s32 %v1258, 4294967294
      %vm1331 = vcmp.ge.s32.totalorder %v1330, 0
      %vm1332 = vcmp.lt.s32.totalorder %v1330, 8
      %vm1333 = vmand %vm1331, %vm1332
      %v1334 = vsel %vm1333, 1, 0
      %vm1335 = vcmp.eq.s32.totalorder %v1334, 1
      %v1336 = vsel %vm1335, %v1329, 0.0
      %v1337 = vlaneseq
      %v1338 = vshrl.u32 %v1337, 7
      %v1339 = vsub.s32 5, %v1338
      %v1340 = vrot.slane %v1255, %v1339
      %v1341 = vmul.f32 %v1336, %v1340
      %v1342 = vadd.f32 %v1328, %v1341
      %v1343 = vrot.slane %v1254, 7
      %v1344 = vadd.s32 %v1258, 4294967295
      %vm1345 = vcmp.ge.s32.totalorder %v1344, 0
      %vm1346 = vcmp.lt.s32.totalorder %v1344, 8
      %vm1347 = vmand %vm1345, %vm1346
      %v1348 = vsel %vm1347, 1, 0
      %vm1349 = vcmp.eq.s32.totalorder %v1348, 1
      %v1350 = vsel %vm1349, %v1343, 0.0
      %v1351 = vlaneseq
      %v1352 = vshrl.u32 %v1351, 7
      %v1353 = vsub.s32 6, %v1352
      %v1354 = vrot.slane %v1255, %v1353
      %v1355 = vmul.f32 %v1350, %v1354
      %v1356 = vadd.f32 %v1342, %v1355
      %v1357 = vlaneseq
      %v1358 = vshrl.u32 %v1357, 7
      %v1359 = vsub.s32 7, %v1358
      %v1360 = vrot.slane %v1255, %v1359
      %v1361 = vmul.f32 %v1254, %v1360
      %v1362 = vadd.f32 %v1356, %v1361
      %v1363 = vadd.s32 %v1258, 1
      %vm1364 = vcmp.ge.s32.totalorder %v1363, 0
      %vm1365 = vcmp.lt.s32.totalorder %v1363, 8
      %vm1366 = vmand %vm1364, %vm1365
      %v1367 = vsel %vm1366, 1, 0
      %vm1368 = vcmp.eq.s32.totalorder %v1367, 1
      %v1369 = vsel %vm1368, %v1259, 0.0
      %v1370 = vlaneseq
      %v1371 = vshrl.u32 %v1370, 7
      %v1372 = vsub.s32 0, %v1371
      %v1373 = vrot.slane %v1256, %v1372
      %v1374 = vmul.f32 %v1369, %v1373
      %v1375 = vadd.f32 %v1362, %v1374
      %v1376 = vadd.s32 %v1258, 2
      %vm1377 = vcmp.ge.s32.totalorder %v1376, 0
      %vm1378 = vcmp.lt.s32.totalorder %v1376, 8
      %vm1379 = vmand %vm1377, %vm1378
      %v1380 = vsel %vm1379, 1, 0
      %vm1381 = vcmp.eq.s32.totalorder %v1380, 1
      %v1382 = vsel %vm1381, %v1273, 0.0
      %v1383 = vlaneseq
      %v1384 = vshrl.u32 %v1383, 7
      %v1385 = vsub.s32 1, %v1384
      %v1386 = vrot.slane %v1256, %v1385
      %v1387 = vmul.f32 %v1382, %v1386
      %v1388 = vadd.f32 %v1375, %v1387
      %v1389 = vadd.s32 %v1258, 3
      %vm1390 = vcmp.ge.s32.totalorder %v1389, 0
      %vm1391 = vcmp.lt.s32.totalorder %v1389, 8
      %vm1392 = vmand %vm1390, %vm1391
      %v1393 = vsel %vm1392, 1, 0
      %vm1394 = vcmp.eq.s32.totalorder %v1393, 1
      %v1395 = vsel %vm1394, %v1287, 0.0
      %v1396 = vlaneseq
      %v1397 = vshrl.u32 %v1396, 7
      %v1398 = vsub.s32 2, %v1397
      %v1399 = vrot.slane %v1256, %v1398
      %v1400 = vmul.f32 %v1395, %v1399
      %v1401 = vadd.f32 %v1388, %v1400
      %v1402 = vadd.s32 %v1258, 4
      %vm1403 = vcmp.ge.s32.totalorder %v1402, 0
      %vm1404 = vcmp.lt.s32.totalorder %v1402, 8
      %vm1405 = vmand %vm1403, %vm1404
      %v1406 = vsel %vm1405, 1, 0
      %vm1407 = vcmp.eq.s32.totalorder %v1406, 1
      %v1408 = vsel %vm1407, %v1301, 0.0
      %v1409 = vlaneseq
      %v1410 = vshrl.u32 %v1409, 7
      %v1411 = vsub.s32 3, %v1410
      %v1412 = vrot.slane %v1256, %v1411
      %v1413 = vmul.f32 %v1408, %v1412
      %v1414 = vadd.f32 %v1401, %v1413
      %v1415 = vadd.s32 %v1258, 5
      %vm1416 = vcmp.ge.s32.totalorder %v1415, 0
      %vm1417 = vcmp.lt.s32.totalorder %v1415, 8
      %vm1418 = vmand %vm1416, %vm1417
      %v1419 = vsel %vm1418, 1, 0
      %vm1420 = vcmp.eq.s32.totalorder %v1419, 1
      %v1421 = vsel %vm1420, %v1315, 0.0
      %v1422 = vlaneseq
      %v1423 = vshrl.u32 %v1422, 7
      %v1424 = vsub.s32 4, %v1423
      %v1425 = vrot.slane %v1256, %v1424
      %v1426 = vmul.f32 %v1421, %v1425
      %v1427 = vadd.f32 %v1414, %v1426
      %v1428 = vadd.s32 %v1258, 6
      %vm1429 = vcmp.ge.s32.totalorder %v1428, 0
      %vm1430 = vcmp.lt.s32.totalorder %v1428, 8
      %vm1431 = vmand %vm1429, %vm1430
      %v1432 = vsel %vm1431, 1, 0
      %vm1433 = vcmp.eq.s32.totalorder %v1432, 1
      %v1434 = vsel %vm1433, %v1329, 0.0
      %v1435 = vlaneseq
      %v1436 = vshrl.u32 %v1435, 7
      %v1437 = vsub.s32 5, %v1436
      %v1438 = vrot.slane %v1256, %v1437
      %v1439 = vmul.f32 %v1434, %v1438
      %v1440 = vadd.f32 %v1427, %v1439
      %v1441 = vadd.s32 %v1258, 7
      %vm1442 = vcmp.ge.s32.totalorder %v1441, 0
      %vm1443 = vcmp.lt.s32.totalorder %v1441, 8
      %vm1444 = vmand %vm1442, %vm1443
      %v1445 = vsel %vm1444, 1, 0
      %vm1446 = vcmp.eq.s32.totalorder %v1445, 1
      %v1447 = vsel %vm1446, %v1343, 0.0
      %v1448 = vlaneseq
      %v1449 = vshrl.u32 %v1448, 7
      %v1450 = vsub.s32 6, %v1449
      %v1451 = vrot.slane %v1256, %v1450
      %v1452 = vmul.f32 %v1447, %v1451
      %v1453 = vadd.f32 %v1440, %v1452
      %1454 = vst.msk [vmem:[%s510] sm:$0xff] %vm521, %v1453
      %v1455 = vsel %vm521, %v1453, 0.0
      %v1456 = vrot.slane %v1455, 4
      %v1457 = vadd.f32 %v1455, %v1456
      %v1458 = vrot.slane %v1457, 2
      %v1459 = vadd.f32 %v1457, %v1458
      %v1460 = vrot.slane %v1459, 1
      %v1461 = vadd.f32 %v1459, %v1460
      %vm1462 = vcmask 253952
      %1463 = vst.msk [vmem:[%s513] sm:$0x1] %vm1462, %v1461
      %v1464 = vmul.f32 %v1453, %v1453
      %v1465 = vsel %vm521, %v1464, 0.0
      %v1466 = vrot.slane %v1465, 4
      %v1467 = vadd.f32 %v1465, %v1466
      %v1468 = vrot.slane %v1467, 2
      %v1469 = vadd.f32 %v1467, %v1468
      %v1470 = vrot.slane %v1469, 1
      %v1471 = vadd.f32 %v1469, %v1470
      %1472 = vst.msk [vmem:[%s516] sm:$0x1] %vm1462, %v1471
      %p1473 = scmp.lt.s32.totalorder %s27, 1
      %s1474 = scalar_select %p1473, %s27, 1
      %s1475 = smul.addr %s1474, 8
      %s1476 = scalar_lea.vmem %s12, %s1475
      %p1477 = scmp.lt.s32.totalorder %s27, 1
      %s1478 = scalar_select %p1477, %s27, 1
      %s1479 = smul.addr %s1478, 8
      %s1480 = scalar_lea.vmem %s13, %s1479
      %p1481 = scmp.lt.s32.totalorder %s27, 1
      %s1482 = scalar_select %p1481, %s27, 1
      %s1483 = scalar_lea.vmem %s14, %s1482
      %p1484 = scmp.lt.s32.totalorder %s27, 1
      %s1485 = scalar_select %p1484, %s27, 1
      %s1486 = scalar_lea.vmem %s15, %s1485
      // Predicated region
      $region69: #{middle_forward.4} parent=67 // pred_check
        %p1487 = pneg %p302
      $region70: #{middle_forward.4} parent=67 // pred_check_branch
        %1489 = sbr.rel (%p1487) target = $region72
      $region71: #{middle_forward.4} parent=67 // pred_region
        _
      $region72: #{middle_forward.4} parent=67 // pred_fallthru
        _
      // Predicated region
      $region73: #{middle_forward.4} parent=67 // pred_check
        %p1490 = pneg %p328
      $region74: #{middle_forward.4} parent=67 // pred_check_branch
        %1492 = sbr.rel (%p1490) target = $region76
      $region75: #{middle_forward.4} parent=67 // pred_region
        _
      $region76: #{middle_forward.4} parent=67 // pred_fallthru
        _
      // Predicated region
      $region77: #{middle_forward.4} parent=67 // pred_check
        %p1493 = pneg %p354
      $region78: #{middle_forward.4} parent=67 // pred_check_branch
        %1495 = sbr.rel (%p1493) target = $region80
      $region79: #{middle_forward.4} parent=67 // pred_region
        _
      $region80: #{middle_forward.4} parent=67 // pred_fallthru
        _
      // Predicated region
      $region81: #{middle_forward.4} parent=67 // pred_check
        %p1496 = pneg %p380
      $region82: #{middle_forward.4} parent=67 // pred_check_branch
        %1498 = sbr.rel (%p1496) target = $region84
      $region83: #{middle_forward.4} parent=67 // pred_region
        _
      $region84: #{middle_forward.4} parent=67 // pred_fallthru
        _
    $region68: #{middle_forward.4} parent=5 // pred_fallthru
      _
    %p1499 = scmp.le.s32.totalorder 2, %s22
    // Predicated region
    $region85: #{middle_forward.4} parent=5 // pred_check
      %p1500 = pneg %p1499
    $region86: #{middle_forward.4} parent=5 // pred_check_branch
      %1502 = sbr.rel (%p1500) target = $region88
    $region87: #{middle_forward.4} parent=5 // pred_region
      %s1503 = ssub.s32 %s22, 2
      // Predicated region
      $region89: #{middle_forward.4} parent=87 // pred_check
        %p1504 = pneg %p308
      $region90: #{middle_forward.4} parent=87 // pred_check_branch
        %1506 = sbr.rel (%p1504) target = $region92
      $region91: #{middle_forward.4} parent=87 // pred_region
        %p1507 = scmp.lt.s32.totalorder %s28, 1
        %s1508 = scalar_select %p1507, %s28, 1
        %s1509 = smul.addr %s1508, 8
        %s1510 = scalar_lea.vmem %s12, %s1509
      $region92: #{middle_forward.4} parent=87 // pred_fallthru
        _
      // Predicated region
      $region93: #{middle_forward.4} parent=87 // pred_check
        %p1511 = pneg %p334
      $region94: #{middle_forward.4} parent=87 // pred_check_branch
        %1513 = sbr.rel (%p1511) target = $region96
      $region95: #{middle_forward.4} parent=87 // pred_region
        %p1514 = scmp.lt.s32.totalorder %s28, 1
        %s1515 = scalar_select %p1514, %s28, 1
        %s1516 = smul.addr %s1515, 8
        %s1517 = scalar_lea.vmem %s13, %s1516
      $region96: #{middle_forward.4} parent=87 // pred_fallthru
        _
      // Predicated region
      $region97: #{middle_forward.4} parent=87 // pred_check
        %p1518 = pneg %p360
      $region98: #{middle_forward.4} parent=87 // pred_check_branch
        %1520 = sbr.rel (%p1518) target = $region100
      $region99: #{middle_forward.4} parent=87 // pred_region
        %p1521 = scmp.lt.s32.totalorder %s28, 1
        %s1522 = scalar_select %p1521, %s28, 1
        %s1523 = scalar_lea.vmem %s14, %s1522
      $region100: #{middle_forward.4} parent=87 // pred_fallthru
        _
      // Predicated region
      $region101: #{middle_forward.4} parent=87 // pred_check
        %p1524 = pneg %p386
      $region102: #{middle_forward.4} parent=87 // pred_check_branch
        %1526 = sbr.rel (%p1524) target = $region104
      $region103: #{middle_forward.4} parent=87 // pred_region
        %p1527 = scmp.lt.s32.totalorder %s28, 1
        %s1528 = scalar_select %p1527, %s28, 1
        %s1529 = scalar_lea.vmem %s15, %s1528
      $region104: #{middle_forward.4} parent=87 // pred_fallthru
        _
    $region88: #{middle_forward.4} parent=5 // pred_fallthru
      _
  $region6: #{middle_forward.4} parent=0 // loop_footer
    %s26 = sadd.s32 1, %s22
  $region7: #{middle_forward.4} parent=0 // loop_footer_branch
    %21 = sbr.rel target = $region3
  $region8: #{middle_forward.4} parent=0 // loop_exit
    _

</llo_original>
